<compile_context>
chip_gen: v5e
topology: v5e:2x2
jax: 0.10.0
libtpu: 0.0.40
codegen_flags: <defaults>
</compile_context>

<pallas_src>
import functools

import jax
import jax.numpy as jnp
from jax.experimental import pallas as pl
from jax.experimental.pallas import tpu as pltpu


# --------------------------------------------------------------------------
# exact-GELU availability probe
# --------------------------------------------------------------------------

@functools.lru_cache(maxsize=None)
def _erf_lowers_in_pallas():
    """Probe whether lax.erf has a Mosaic lowering on this build (exact GELU)."""
    def _k(x_ref, o_ref):
        o_ref[...] = jax.lax.erf(x_ref[...])
    try:
        f = pl.pallas_call(_k, out_shape=jax.ShapeDtypeStruct((8, 128), jnp.float32))
        jax.block_until_ready(jax.jit(f)(jnp.zeros((8, 128), jnp.float32)))
        return True
    except Exception:
        return False


# --------------------------------------------------------------------------
# fused per-stage Pallas kernel
# --------------------------------------------------------------------------

def _serial_stage_kernel(
    # inputs
    x_ref, gate_ref, hmask_ref,
    cpe_w_ref, cpe_b_ref, crpe_w_ref, crpe_b_ref,
    ln1_g_ref, ln1_b_ref, wq_ref, wk_ref, wv_ref, bq_ref, bk_ref, bv_ref,
    proj_w_ref, proj_b_ref, ln2_g_ref, ln2_b_ref,
    fc1_w_ref, fc1_b_ref, fc2_w_ref, fc2_b_ref,
    # outputs
    o_ref,
    # scratch
    nbuf, cbuf,
    *, H, W, C, scale, cpe_k, crpe_k, eps, use_erf, PAD, CSTART, Wp8, RB):
    N = H * W

    # First layer for this batch: seed the VMEM-resident activation and zero the conv
    # halo ONCE per batch (guarded on the layer axis -> megacore-safe on v7x).  The
    # interior is fully rewritten by every dwconv and the halo is never stored to.
    @pl.when(pl.program_id(1) == 0)
    def _():
        o_ref[...] = x_ref[...]
        nbuf[...] = jnp.zeros_like(nbuf)

    def dwconv(x2d, w_kc, b_row, ksz):
        """Depthwise SAME cross-correlation on the flattened (H*W, C) token map.

        Padded-image layout: row stride Wp8 (multiple of 8), interior starting at the
        sublane-aligned column CSTART >= PAD.  Reads can never wrap into a neighbouring
        image row (they hit zero halo instead), so no per-tap masks; vertical tap shifts
        are sublane-aligned.  Loop interchange: row-blocks outer, k*k taps inner, with a
        per-block accumulator that fits in vregs (no VMEM round trip per tap).
        """
        p = ksz // 2
        # stage the interior rows (stores are sublane-aligned: (y+PAD)*Wp8 + CSTART)
        for y in range(H):
            dst = (y + PAD) * Wp8 + CSTART
            nbuf[dst:dst + W, :] = x2d[y * W:(y + 1) * W, :]
        for yb in range(0, H, RB):                       # static unroll over row blocks
            rb = min(RB, H - yb)
            span = (rb - 1) * Wp8 + W
            base = (yb + PAD) * Wp8 + CSTART
            acc = jnp.zeros((span, C), jnp.float32)
            for dy in range(ksz):                        # static unroll over kernel taps
                for dx in range(ksz):
                    s = (dy - p) * Wp8 + (dx - p)
                    t = dy * ksz + dx
                    acc = acc + nbuf[base + s:base + s + span, :] * w_kc[t:t + 1, :]
            for r in range(rb):
                row0 = (yb + r) * W
                cbuf[row0:row0 + W, :] = acc[r * Wp8:r * Wp8 + W, :] + b_row
        return cbuf[...]

    def layer_norm(v, g, b):
        mu = jnp.mean(v, axis=-1, keepdims=True)
        vc = v - mu
        var = jnp.mean(vc * vc, axis=-1, keepdims=True)
        return vc * jax.lax.rsqrt(var + eps) * g + b

    def mm(a, w_bf16):
        # bf16 operands, f32 accumulation: feeds the 256-wide bf16 MXU on v6e/v7x and
        # halves per-layer weight DMA; residual / LayerNorm math stays in f32.
        return jnp.dot(a.astype(jnp.bfloat16), w_bf16, preferred_element_type=jnp.float32)

    x = o_ref[0]                                         # (N, C) layer-resident activation
    g_row = gate_ref[0, 0]                               # (1, C) domain-attention gate

    # ---- shared ConvPosEnc: depthwise 3x3 + residual -------------------------
    x = dwconv(x, cpe_w_ref[...], cpe_b_ref[...], cpe_k) + x

    # ---- norm1 + FactorAtt_ConvRelPosEnc_Sup ---------------------------------
    cur = layer_norm(x, ln1_g_ref[0], ln1_b_ref[0])
    q = mm(cur, wq_ref[0]) + bq_ref[0]
    k = mm(cur, wk_ref[0]) + bk_ref[0]
    v = mm(cur, wv_ref[0]) + bv_ref[0]

    # softmax_N(k)^T v done unnormalized on the MXU (contract over dim 0, no explicit
    # transpose); the row normalization (approx reciprocal on the EUP), qk-scale,
    # block-diagonal head mask and the per-(batch,channel) domain gate are all folded
    # into the small (C,C) tensor instead of touching (N,C) maps.
    km = jnp.max(k, axis=0, keepdims=True)
    ke = jnp.exp(k - km)
    ktv = jax.lax.dot_general(ke, v, (((0,), (0,)), ((), ())),
                              preferred_element_type=jnp.float32)           # (C, C)
    ksum = jax.lax.dot_general(ke, jnp.ones((N, 1), jnp.float32),
                               (((0,), (0,)), ((), ())),
                               preferred_element_type=jnp.float32)          # (C, 1)
    ktv = ktv * (hmask_ref[...] * pl.reciprocal(ksum, approx=True) * (scale * g_row))
    fa = jnp.dot(q.astype(jnp.bfloat16), ktv.astype(jnp.bfloat16),
                 preferred_element_type=jnp.float32)                        # gated scale*fa

    # conv relative position encoding: q * depthwise_conv(v) (3/5/7 windows merged into
    # one 7x7 filter); the domain gate is folded into the (k*k, C) weights / (1, C) bias
    # (depthwise conv is linear per channel), so no extra (N,C) gate multiply is needed.
    crpe_conv = dwconv(v, crpe_w_ref[...] * g_row, crpe_b_ref[...] * g_row, crpe_k)
    gated = fa + q * crpe_conv
    x = x + (mm(gated, proj_w_ref[0]) + proj_b_ref[0])

    # ---- norm2 + MLP (GELU fused in-kernel) ----------------------------------
    cur = layer_norm(x, ln2_g_ref[0], ln2_b_ref[0])
    h1 = mm(cur, fc1_w_ref[0]) + fc1_b_ref[0]
    if use_erf:
        h1 = 0.5 * h1 * (1.0 + jax.lax.erf(h1 * 0.7071067811865476))
    else:
        # TODO(synk): lax.erf has no Mosaic lowering on this build -> tanh-approx GELU
        # (~1e-3 abs deviation vs the exact erf GELU of torch.nn.GELU()).
        h1 = 0.5 * h1 * (1.0 + jnp.tanh(0.7978845608028654 * (h1 + 0.044715 * h1 * h1 * h1)))
    x = x + (mm(h1, fc2_w_ref[0]) + fc2_b_ref[0])

    o_ref[0] = x


# --------------------------------------------------------------------------
# wrapper: parameter packing + pallas_call
# --------------------------------------------------------------------------

def mhsa_stage_adapt(x, H, W, domain_label, params, *, num_heads):
    """MDViT MHSA stage: a chain of SerialBlock_adapt blocks with shared cpe/crpe."""
    B, N, C = x.shape
    assert N == H * W
    Ch = C // num_heads
    layers = params["layers"]
    L = len(layers)
    scale = Ch ** (-0.5)          # qk_scale = None -> head_dim ** -0.5
    hidden = layers[0]["fc1_w"].shape[1]

    # ---- shared ConvPosEnc weights, flattened to (k*k, C) ----
    cpe_k = params["cpe_w"].shape[0]
    cpe_w = params["cpe_w"].reshape(cpe_k * cpe_k, C).astype(jnp.float32)
    cpe_b = params["cpe_b"].reshape(1, C).astype(jnp.float32)

    # ---- shared ConvRelPosEnc: merge 3/5/7 head-group windows into one filter ----
    kmax = max(p["w"].shape[0] for p in params["crpe"])
    crpe_w = jnp.zeros((kmax, kmax, C), jnp.float32)
    crpe_bs, c0 = [], 0
    for p in params["crpe"]:
        ksz, cg = p["w"].shape[0], p["w"].shape[2]
        off = (kmax - ksz) // 2
        crpe_w = crpe_w.at[off:off + ksz, off:off + ksz, c0:c0 + cg].set(p["w"])
        crpe_bs.append(p["b"])
        c0 += cg
    crpe_w = crpe_w.reshape(kmax * kmax, C)
    crpe_b = jnp.concatenate(crpe_bs).reshape(1, C)

    # ---- block-diagonal head mask, hoisted out of the kernel ----
    hid = jnp.arange(C, dtype=jnp.int32) // Ch
    head_mask = (hid[:, None] == hid[None, :]).astype(jnp.float32)

    # ---- per-layer parameter stacks (leading L axis); matmul weights in bf16 ----
    def stack(name, dtype=jnp.float32):
        return jnp.stack([lp[name] for lp in layers]).astype(dtype)

    qkv_w = stack("qkv_w", jnp.bfloat16)                       # (L, C, 3C) bf16
    qkv_b = stack("qkv_b")                                     # (L, 3C)    f32
    wq, wk, wv = qkv_w[:, :, :C], qkv_w[:, :, C:2 * C], qkv_w[:, :, 2 * C:]
    bq = qkv_b[:, None, :C]
    bk = qkv_b[:, None, C:2 * C]
    bv = qkv_b[:, None, 2 * C:]
    ln1_g = stack("ln1_g")[:, None, :]
    ln1_b = stack("ln1_b")[:, None, :]
    proj_w = stack("proj_w", jnp.bfloat16)
    proj_b = stack("proj_b")[:, None, :]
    ln2_g = stack("ln2_g")[:, None, :]
    ln2_b = stack("ln2_b")[:, None, :]
    fc1_w = stack("fc1_w", jnp.bfloat16)
    fc1_b = stack("fc1_b")[:, None, :]
    fc2_w = stack("fc2_w", jnp.bfloat16)
    fc2_b = stack("fc2_b")[:, None, :]

    # ---- domain attention (tiny MLP + softmax over heads): plain JAX ----
    gates = []
    for lp in layers:
        d = jnp.maximum(domain_label @ lp["dom_w1"] + lp["dom_b1"], 0.0)
        d = d @ lp["dom_w2"] + lp["dom_b2"]                    # (B, C), head-major columns
        d = jax.nn.softmax(d.reshape(B, num_heads, Ch), axis=1).reshape(B, C)
        gates.append(d)
    d_gate = jnp.stack(gates)[:, :, None, :]                   # (L, B, 1, C)

    shared_in = (head_mask, cpe_w, cpe_b, crpe_w, crpe_b)
    layer_in = (ln1_g, ln1_b, wq, wk, wv, bq, bk, bv,
                proj_w, proj_b, ln2_g, ln2_b, fc1_w, fc1_b, fc2_w, fc2_b)

    def full_spec(a):
        nd = a.ndim
        return pl.BlockSpec(a.shape, lambda b, l, nd=nd: (0,) * nd)

    def layer_spec(a):
        nd = a.ndim
        return pl.BlockSpec((1,) + a.shape[1:],
                            lambda b, l, nd=nd: (l,) + (0,) * (nd - 1))

    in_specs = (
        [pl.BlockSpec((1, N, C), lambda b, l: (b, 0, 0)),          # x
         pl.BlockSpec((1, 1, 1, C), lambda b, l: (l, b, 0, 0))]    # domain gates
        + [full_spec(a) for a in shared_in]
        + [layer_spec(a) for a in layer_in]
    )

    # ---- conv halo geometry (padded-image layout) ----
    PAD = max(cpe_k, kmax) // 2
    CSTART = ((PAD + 7) // 8) * 8                # sublane-aligned interior start column
    Wp8 = ((CSTART + W + PAD + 7) // 8) * 8      # padded row stride (multiple of 8)
    Hp = H + 2 * PAD
    # row-block size: keep the per-block f32 conv accumulator within ~16 vregs
    target_rows = max(Wp8, (16 * 8 * 128) // max(C, 1))
    RB = max(1, min(H, target_rows // Wp8))

    # ---- explicit VMEM budget (v7x has only 64 MiB physical / 32 MiB scoped default) ----
    bpf = 4
    est = (
        4 * N * C * bpf                                      # x in/out blocks (double-buffered)
        + 2 * ((4 * C * C + 2 * C * hidden) * 2              # per-layer bf16 weights (2 buffers)
               + (9 * C + hidden) * bpf)                     # per-layer f32 biases / norms
        + (cpe_k * cpe_k + kmax * kmax + 2) * C * bpf        # shared conv weights
        + C * C * bpf                                        # head mask
        + (Hp * Wp8 * C + N * C) * bpf                       # scratch (nbuf + cbuf)
        + (10 * N * C + 2 * N * hidden) * bpf                # in-kernel f32 temporaries
    )
    vmem_limit = int(min(40 << 20, max(16 << 20, 2 * est)))

    kernel = functools.partial(
        _serial_stage_kernel,
        H=H, W=W, C=C, scale=scale,
        cpe_k=cpe_k, crpe_k=kmax, eps=1e-5, use_erf=_erf_lowers_in_pallas(),
        PAD=PAD, CSTART=CSTART, Wp8=Wp8, RB=RB,
    )

    return pl.pallas_call(
        kernel,
        out_shape=jax.ShapeDtypeStruct((B, N, C), jnp.float32),
        grid=(B, L),
        in_specs=in_specs,
        out_specs=pl.BlockSpec((1, N, C), lambda b, l: (b, 0, 0)),
        scratch_shapes=[pltpu.VMEM((Hp * Wp8, C), jnp.float32),   # zero-halo conv staging
                        pltpu.VMEM((N, C), jnp.float32)],         # conv output staging
        compiler_params=pltpu.CompilerParams(
            dimension_semantics=("parallel", "arbitrary"),
            vmem_limit_bytes=vmem_limit),
    )(x, d_gate, *shared_in, *layer_in)


# --------------------------------------------------------------------------
# deterministic parameter construction
# --------------------------------------------------------------------------

def init_params(key, dim, num_heads, num_layers, mlp_ratio, num_domains, crpe_window, r=2):
    Ch = dim // num_heads
    hidden = int(dim * mlp_ratio)
    dom_hidden = max(dim // r, 4)
    keys = iter(jax.random.split(key, 128))

    def w(shape, scale=0.02):
        return (scale * jax.random.normal(next(keys), shape)).astype(jnp.float32)

    params = {
        # shared ConvPosEnc (depthwise 3x3); weight layout (kh, kw, C)
        "cpe_w": w((3, 3, dim)),
        "cpe_b": jnp.zeros((dim,), jnp.float32),
        # shared ConvRelPosEnc: head-group depthwise convs (windows 3/5/7, splits 2/3/3)
        "crpe": [
            {"w": w((ksz, ksz, hsplit * Ch)), "b": jnp.zeros((hsplit * Ch,), jnp.float32)}
            for ksz, hsplit in crpe_window.items()
        ],
        "layers": [],
    }
    for _ in range(num_layers):
        params["layers"].append({
            "ln1_g": jnp.ones((dim,), jnp.float32), "ln1_b": jnp.zeros((dim,), jnp.float32),
            "qkv_w": w((dim, 3 * dim)), "qkv_b": jnp.zeros((3 * dim,), jnp.float32),
            "proj_w": w((dim, dim)), "proj_b": jnp.zeros((dim,), jnp.float32),
            "dom_w1": w((num_domains, dom_hidden)), "dom_b1": jnp.zeros((dom_hidden,), jnp.float32),
            "dom_w2": w((dom_hidden, dim)), "dom_b2": jnp.zeros((dim,), jnp.float32),
            "ln2_g": jnp.ones((dim,), jnp.float32), "ln2_b": jnp.zeros((dim,), jnp.float32),
            "fc1_w": w((dim, hidden)), "fc1_b": jnp.zeros((hidden,), jnp.float32),
            "fc2_w": w((hidden, dim)), "fc2_b": jnp.zeros((dim,), jnp.float32),
        })
    return params


# --------------------------------------------------------------------------
# pure-JAX reference (mirrors the PyTorch forward) for a self-check
# --------------------------------------------------------------------------

def _ref_dwconv(img, w, b):
    # img: (B, H, W, Cg); w: (k, k, Cg); b: (Cg,)  -- depthwise SAME cross-correlation
    out = jax.lax.conv_general_dilated(
        img, w[:, :, None, :], window_strides=(1, 1), padding="SAME",
        dimension_numbers=("NHWC", "HWIO", "NHWC"),
        feature_group_count=img.shape[-1])
    return out + b


def mhsa_stage_ref(x, H, W, domain_label, params, *, num_heads, use_erf):
    B, N, C = x.shape
    Ch = C // num_heads
    scale = Ch ** (-0.5)

    def ln(v, g, b):
        mu = v.mean(-1, keepdims=True)
        d = v - mu
        return d * jax.lax.rsqrt((d * d).mean(-1, keepdims=True) + 1e-5) * g + b

    def gelu(v):
        if use_erf:
            return 0.5 * v * (1.0 + jax.lax.erf(v * 0.7071067811865476))
        return 0.5 * v * (1.0 + jnp.tanh(0.7978845608028654 * (v + 0.044715 * v ** 3)))

    for lp in params["layers"]:
        img = x.reshape(B, H, W, C)
        img = _ref_dwconv(img, params["cpe_w"], params["cpe_b"]) + img
        x = img.reshape(B, N, C)

        cur = ln(x, lp["ln1_g"], lp["ln1_b"])
        qkv = cur @ lp["qkv_w"] + lp["qkv_b"]
        qkv = qkv.reshape(B, N, 3, num_heads, Ch).transpose(2, 0, 3, 1, 4)
        q, k, v = qkv[0], qkv[1], qkv[2]                       # (B, h, N, Ch)
        k_sm = jax.nn.softmax(k, axis=2)
        ktv = jnp.einsum('bhnk,bhnv->bhkv', k_sm, v)
        fa = jnp.einsum('bhnk,bhkv->bhnv', q, ktv)

        v_img = v.transpose(0, 2, 1, 3).reshape(B, H, W, C)
        outs, c0 = [], 0
        for p in params["crpe"]:
            cg = p["w"].shape[2]
            outs.append(_ref_dwconv(v_img[..., c0:c0 + cg], p["w"], p["b"]))
            c0 += cg
        conv_v = jnp.concatenate(outs, -1).reshape(B, N, num_heads, Ch).transpose(0, 2, 1, 3)
        crpe = q * conv_v

        att = scale * fa + crpe
        d = jnp.maximum(domain_label @ lp["dom_w1"] + lp["dom_b1"], 0.0)
        d = d @ lp["dom_w2"] + lp["dom_b2"]
        d = jax.nn.softmax(d.reshape(B, num_heads, Ch), axis=1)
        att = d[:, :, None, :] * att
        att = att.transpose(0, 2, 1, 3).reshape(B, N, C)
        x = x + (att @ lp["proj_w"] + lp["proj_b"])

        cur = ln(x, lp["ln2_g"], lp["ln2_b"])
        h1 = gelu(cur @ lp["fc1_w"] + lp["fc1_b"])
        x = x + (h1 @ lp["fc2_w"] + lp["fc2_b"])
    return x


# --------------------------------------------------------------------------

if __name__ == "__main__":
    B, H, W = 2, 8, 8
    dim, num_heads, num_layers, mlp_ratio, num_domains = 32, 8, 2, 4.0, 4
    N = H * W
    crpe_window = {3: 2, 5: 3, 7: 3}   # head splits 2+3+3 == num_heads

    key = jax.random.PRNGKey(0)
    kx, kp = jax.random.split(key)
    x = jax.random.normal(kx, (B, N, dim), dtype=jnp.float32)
    domain_label = jax.nn.one_hot(jnp.array([0, 2]), num_domains, dtype=jnp.float32)

    params = init_params(kp, dim, num_heads, num_layers, mlp_ratio, num_domains, crpe_window)

    use_erf = _erf_lowers_in_pallas()   # prime the probe before jit tracing

    fwd = jax.jit(
        functools.partial(mhsa_stage_adapt, num_heads=num_heads),
        static_argnums=(1, 2),
    )
    out = fwd(x, H, W, domain_label, params)
    jax.block_until_ready(out)

    assert out.shape == (B, N, dim), out.shape
    assert out.dtype == jnp.float32, out.dtype
    assert bool(jnp.all(jnp.isfinite(out)))

    ref = mhsa_stage_ref(x, H, W, domain_label, params,
                         num_heads=num_heads, use_erf=use_erf)
    assert bool(jnp.allclose(out, ref, rtol=2e-2, atol=2e-2))

    print("KERNEL_OK")
</pallas_src>

<mosaic_0001>
module attributes {stable_mosaic.version = 11 : i64} {
  func.func @_k(%arg0: memref<8x128xf32, #tpu.memory_space<vmem>>, %arg1: memref<8x128xf32, #tpu.memory_space<vmem>>) attributes {dimension_semantics = [], scalar_prefetch = 0 : i64, scratch_operands = 0 : i64, tpu.core_type = #tpu.core_type<tc>} {
    %c0 = arith.constant 0 : index
    %c0_0 = arith.constant 0 : index
    %0 = vector.load %arg0[%c0, %c0_0] : memref<8x128xf32, #tpu.memory_space<vmem>>, vector<8x128xf32>
    %1 = math.erf %0 : vector<8x128xf32>
    %c0_1 = arith.constant 0 : index
    %c0_2 = arith.constant 0 : index
    %2 = vector.load %arg1[%c0_1, %c0_2] : memref<8x128xf32, #tpu.memory_space<vmem>>, vector<8x128xf32>
    tpu.vector_store %arg1[%c0_1, %c0_2], %1 {strides = array<i32>} : memref<8x128xf32, #tpu.memory_space<vmem>>, vector<8x128xf32>,
    return
  }
}

module attributes {stable_mosaic.version = 11 : i64} {
  func.func @_serial_stage_kernel(%arg0: i32, %arg1: i32, %arg2: memref<1x64x32xf32, #tpu.memory_space<vmem>>, %arg3: memref<1x1x1x32xf32, #tpu.memory_space<vmem>>, %arg4: memref<32x32xf32, #tpu.memory_space<vmem>>, %arg5: memref<9x32xf32, #tpu.memory_space<vmem>>, %arg6: memref<1x32xf32, #tpu.memory_space<vmem>>, %arg7: memref<49x32xf32, #tpu.memory_space<vmem>>, %arg8: memref<1x32xf32, #tpu.memory_space<vmem>>, %arg9: memref<1x1x32xf32, #tpu.memory_space<vmem>>, %arg10: memref<1x1x32xf32, #tpu.memory_space<vmem>>, %arg11: memref<1x32x32xbf16, #tpu.memory_space<vmem>>, %arg12: memref<1x32x32xbf16, #tpu.memory_space<vmem>>, %arg13: memref<1x32x32xbf16, #tpu.memory_space<vmem>>, %arg14: memref<1x1x32xf32, #tpu.memory_space<vmem>>, %arg15: memref<1x1x32xf32, #tpu.memory_space<vmem>>, %arg16: memref<1x1x32xf32, #tpu.memory_space<vmem>>, %arg17: memref<1x32x32xbf16, #tpu.memory_space<vmem>>, %arg18: memref<1x1x32xf32, #tpu.memory_space<vmem>>, %arg19: memref<1x1x32xf32, #tpu.memory_space<vmem>>, %arg20: memref<1x1x32xf32, #tpu.memory_space<vmem>>, %arg21: memref<1x32x128xbf16, #tpu.memory_space<vmem>>, %arg22: memref<1x1x128xf32, #tpu.memory_space<vmem>>, %arg23: memref<1x128x32xbf16, #tpu.memory_space<vmem>>, %arg24: memref<1x1x32xf32, #tpu.memory_space<vmem>>, %arg25: memref<1x64x32xf32, #tpu.memory_space<vmem>>, %arg26: memref<336x32xf32, #tpu.memory_space<vmem>>, %arg27: memref<64x32xf32, #tpu.memory_space<vmem>>) attributes {dimension_semantics = [#tpu.dimension_semantics<parallel>, #tpu.dimension_semantics<arbitrary>], iteration_bounds = array<i64: 2, 2>, scalar_prefetch = 0 : i64, scratch_operands = 2 : i64, tpu.core_type = #tpu.core_type<tc>, window_params = [{transform_indices = @transform_0, window_bounds = array<i64: 1, 64, 32>}, {transform_indices = @transform_1, window_bounds = array<i64: 1, 1, 1, 32>}, {pipeline_mode = #tpu.pipeline_mode<synchronous>, transform_indices = @transform_2, window_bounds = array<i64: 32, 32>}, {pipeline_mode = #tpu.pipeline_mode<synchronous>, transform_indices = @transform_3, window_bounds = array<i64: 9, 32>}, {pipeline_mode = #tpu.pipeline_mode<synchronous>, transform_indices = @transform_4, window_bounds = array<i64: 1, 32>}, {pipeline_mode = #tpu.pipeline_mode<synchronous>, transform_indices = @transform_5, window_bounds = array<i64: 49, 32>}, {pipeline_mode = #tpu.pipeline_mode<synchronous>, transform_indices = @transform_6, window_bounds = array<i64: 1, 32>}, {transform_indices = @transform_7, window_bounds = array<i64: 1, 1, 32>}, {transform_indices = @transform_8, window_bounds = array<i64: 1, 1, 32>}, {transform_indices = @transform_9, window_bounds = array<i64: 1, 32, 32>}, {transform_indices = @transform_10, window_bounds = array<i64: 1, 32, 32>}, {transform_indices = @transform_11, window_bounds = array<i64: 1, 32, 32>}, {transform_indices = @transform_12, window_bounds = array<i64: 1, 1, 32>}, {transform_indices = @transform_13, window_bounds = array<i64: 1, 1, 32>}, {transform_indices = @transform_14, window_bounds = array<i64: 1, 1, 32>}, {transform_indices = @transform_15, window_bounds = array<i64: 1, 32, 32>}, {transform_indices = @transform_16, window_bounds = array<i64: 1, 1, 32>}, {transform_indices = @transform_17, window_bounds = array<i64: 1, 1, 32>}, {transform_indices = @transform_18, window_bounds = array<i64: 1, 1, 32>}, {transform_indices = @transform_19, window_bounds = array<i64: 1, 32, 128>}, {transform_indices = @transform_20, window_bounds = array<i64: 1, 1, 128>}, {transform_indices = @transform_21, window_bounds = array<i64: 1, 128, 32>}, {transform_indices = @transform_22, window_bounds = array<i64: 1, 1, 32>}, {transform_indices = @transform_23, window_bounds = array<i64: 1, 64, 32>}]} {
    %c0_i32 = arith.constant 0 : i32
    %0 = arith.cmpi eq, %arg1, %c0_i32 : i32
    %1 = arith.extui %0 : i1 to i32
    %c0_i32_0 = arith.constant 0 : i32
    %2 = arith.cmpi ne, %1, %c0_i32_0 : i32
    scf.if %2 {
      %c0_222 = arith.constant 0 : index
      %c0_223 = arith.constant 0 : index
      %c0_224 = arith.constant 0 : index
      %541 = vector.load %arg2[%c0_222, %c0_223, %c0_224] : memref<1x64x32xf32, #tpu.memory_space<vmem>>, vector<1x64x32xf32>
      %c0_225 = arith.constant 0 : index
      %c0_226 = arith.constant 0 : index
      %c0_227 = arith.constant 0 : index
      %542 = vector.load %arg25[%c0_225, %c0_226, %c0_227] : memref<1x64x32xf32, #tpu.memory_space<vmem>>, vector<1x64x32xf32>
      tpu.vector_store %arg25[%c0_225, %c0_226, %c0_227], %541 {strides = array<i32>} : memref<1x64x32xf32, #tpu.memory_space<vmem>>, vector<1x64x32xf32>,
      %cst_228 = arith.constant 0.000000e+00 : f32
      %543 = vector.broadcast %cst_228 : f32 to vector<336x32xf32>
      %c0_229 = arith.constant 0 : index
      %c0_230 = arith.constant 0 : index
      %544 = vector.load %arg26[%c0_229, %c0_230] : memref<336x32xf32, #tpu.memory_space<vmem>>, vector<336x32xf32>
      tpu.vector_store %arg26[%c0_229, %c0_230], %543 {strides = array<i32>} : memref<336x32xf32, #tpu.memory_space<vmem>>, vector<336x32xf32>,
    } else {
    }
    %c0 = arith.constant 0 : index
    %c0_1 = arith.constant 0 : index
    %c0_2 = arith.constant 0 : index
    %3 = vector.load %arg25[%c0, %c0_1, %c0_2] : memref<1x64x32xf32, #tpu.memory_space<vmem>>, vector<1x64x32xf32>
    %4 = vector.shape_cast %3 : vector<1x64x32xf32> to vector<64x32xf32>
    %c0_3 = arith.constant 0 : index
    %c0_4 = arith.constant 0 : index
    %c0_5 = arith.constant 0 : index
    %c0_6 = arith.constant 0 : index
    %5 = vector.load %arg3[%c0_3, %c0_4, %c0_5, %c0_6] : memref<1x1x1x32xf32, #tpu.memory_space<vmem>>, vector<1x1x1x32xf32>
    %6 = vector.shape_cast %5 : vector<1x1x1x32xf32> to vector<1x32xf32>
    %c0_7 = arith.constant 0 : index
    %c0_8 = arith.constant 0 : index
    %7 = vector.load %arg5[%c0_7, %c0_8] : memref<9x32xf32, #tpu.memory_space<vmem>>, vector<9x32xf32>
    %c0_9 = arith.constant 0 : index
    %c0_10 = arith.constant 0 : index
    %8 = vector.load %arg6[%c0_9, %c0_10] : memref<1x32xf32, #tpu.memory_space<vmem>>, vector<1x32xf32>
    %9 = vector.extract_strided_slice %4 {offsets = [0, 0], sizes = [8, 32], strides = [1, 1]} : vector<64x32xf32> to vector<8x32xf32>
    %c80 = arith.constant 80 : index
    %c0_11 = arith.constant 0 : index
    %10 = vector.load %arg26[%c80, %c0_11] : memref<336x32xf32, #tpu.memory_space<vmem>>, vector<8x32xf32>
    tpu.vector_store %arg26[%c80, %c0_11], %9 {strides = array<i32>} : memref<336x32xf32, #tpu.memory_space<vmem>>, vector<8x32xf32>,
    %11 = vector.extract_strided_slice %4 {offsets = [8, 0], sizes = [8, 32], strides = [1, 1]} : vector<64x32xf32> to vector<8x32xf32>
    %c104 = arith.constant 104 : index
    %c0_12 = arith.constant 0 : index
    %12 = vector.load %arg26[%c104, %c0_12] : memref<336x32xf32, #tpu.memory_space<vmem>>, vector<8x32xf32>
    tpu.vector_store %arg26[%c104, %c0_12], %11 {strides = array<i32>} : memref<336x32xf32, #tpu.memory_space<vmem>>, vector<8x32xf32>,
    %13 = vector.extract_strided_slice %4 {offsets = [16, 0], sizes = [8, 32], strides = [1, 1]} : vector<64x32xf32> to vector<8x32xf32>
    %c128 = arith.constant 128 : index
    %c0_13 = arith.constant 0 : index
    %14 = vector.load %arg26[%c128, %c0_13] : memref<336x32xf32, #tpu.memory_space<vmem>>, vector<8x32xf32>
    tpu.vector_store %arg26[%c128, %c0_13], %13 {strides = array<i32>} : memref<336x32xf32, #tpu.memory_space<vmem>>, vector<8x32xf32>,
    %15 = vector.extract_strided_slice %4 {offsets = [24, 0], sizes = [8, 32], strides = [1, 1]} : vector<64x32xf32> to vector<8x32xf32>
    %c152 = arith.constant 152 : index
    %c0_14 = arith.constant 0 : index
    %16 = vector.load %arg26[%c152, %c0_14] : memref<336x32xf32, #tpu.memory_space<vmem>>, vector<8x32xf32>
    tpu.vector_store %arg26[%c152, %c0_14], %15 {strides = array<i32>} : memref<336x32xf32, #tpu.memory_space<vmem>>, vector<8x32xf32>,
    %17 = vector.extract_strided_slice %4 {offsets = [32, 0], sizes = [8, 32], strides = [1, 1]} : vector<64x32xf32> to vector<8x32xf32>
    %c176 = arith.constant 176 : index
    %c0_15 = arith.constant 0 : index
    %18 = vector.load %arg26[%c176, %c0_15] : memref<336x32xf32, #tpu.memory_space<vmem>>, vector<8x32xf32>
    tpu.vector_store %arg26[%c176, %c0_15], %17 {strides = array<i32>} : memref<336x32xf32, #tpu.memory_space<vmem>>, vector<8x32xf32>,
    %19 = vector.extract_strided_slice %4 {offsets = [40, 0], sizes = [8, 32], strides = [1, 1]} : vector<64x32xf32> to vector<8x32xf32>
    %c200 = arith.constant 200 : index
    %c0_16 = arith.constant 0 : index
    %20 = vector.load %arg26[%c200, %c0_16] : memref<336x32xf32, #tpu.memory_space<vmem>>, vector<8x32xf32>
    tpu.vector_store %arg26[%c200, %c0_16], %19 {strides = array<i32>} : memref<336x32xf32, #tpu.memory_space<vmem>>, vector<8x32xf32>,
    %21 = vector.extract_strided_slice %4 {offsets = [48, 0], sizes = [8, 32], strides = [1, 1]} : vector<64x32xf32> to vector<8x32xf32>
    %c224 = arith.constant 224 : index
    %c0_17 = arith.constant 0 : index
    %22 = vector.load %arg26[%c224, %c0_17] : memref<336x32xf32, #tpu.memory_space<vmem>>, vector<8x32xf32>
    tpu.vector_store %arg26[%c224, %c0_17], %21 {strides = array<i32>} : memref<336x32xf32, #tpu.memory_space<vmem>>, vector<8x32xf32>,
    %23 = vector.extract_strided_slice %4 {offsets = [56, 0], sizes = [8, 32], strides = [1, 1]} : vector<64x32xf32> to vector<8x32xf32>
    %c248 = arith.constant 248 : index
    %c0_18 = arith.constant 0 : index
    %24 = vector.load %arg26[%c248, %c0_18] : memref<336x32xf32, #tpu.memory_space<vmem>>, vector<8x32xf32>
    tpu.vector_store %arg26[%c248, %c0_18], %23 {strides = array<i32>} : memref<336x32xf32, #tpu.memory_space<vmem>>, vector<8x32xf32>,
    %cst = arith.constant 0.000000e+00 : f32
    %25 = vector.broadcast %cst : f32 to vector<176x32xf32>
    %c55 = arith.constant 55 : index
    %c0_19 = arith.constant 0 : index
    %26 = vector.load %arg26[%c55, %c0_19] : memref<336x32xf32, #tpu.memory_space<vmem>>, vector<176x32xf32>
    %27 = vector.extract_strided_slice %7 {offsets = [0, 0], sizes = [1, 32], strides = [1, 1]} : vector<9x32xf32> to vector<1x32xf32>
    %28 = vector.broadcast %27 : vector<1x32xf32> to vector<176x32xf32>
    %29 = arith.mulf %26, %28 : vector<176x32xf32>
    %30 = arith.addf %25, %29 : vector<176x32xf32>
    %c56 = arith.constant 56 : index
    %c0_20 = arith.constant 0 : index
    %31 = vector.load %arg26[%c56, %c0_20] : memref<336x32xf32, #tpu.memory_space<vmem>>, vector<176x32xf32>
    %32 = vector.extract_strided_slice %7 {offsets = [1, 0], sizes = [1, 32], strides = [1, 1]} : vector<9x32xf32> to vector<1x32xf32>
    %33 = vector.broadcast %32 : vector<1x32xf32> to vector<176x32xf32>
    %34 = arith.mulf %31, %33 : vector<176x32xf32>
    %35 = arith.addf %30, %34 : vector<176x32xf32>
    %c57 = arith.constant 57 : index
    %c0_21 = arith.constant 0 : index
    %36 = vector.load %arg26[%c57, %c0_21] : memref<336x32xf32, #tpu.memory_space<vmem>>, vector<176x32xf32>
    %37 = vector.extract_strided_slice %7 {offsets = [2, 0], sizes = [1, 32], strides = [1, 1]} : vector<9x32xf32> to vector<1x32xf32>
    %38 = vector.broadcast %37 : vector<1x32xf32> to vector<176x32xf32>
    %39 = arith.mulf %36, %38 : vector<176x32xf32>
    %40 = arith.addf %35, %39 : vector<176x32xf32>
    %c79 = arith.constant 79 : index
    %c0_22 = arith.constant 0 : index
    %41 = vector.load %arg26[%c79, %c0_22] : memref<336x32xf32, #tpu.memory_space<vmem>>, vector<176x32xf32>
    %42 = vector.extract_strided_slice %7 {offsets = [3, 0], sizes = [1, 32], strides = [1, 1]} : vector<9x32xf32> to vector<1x32xf32>
    %43 = vector.broadcast %42 : vector<1x32xf32> to vector<176x32xf32>
    %44 = arith.mulf %41, %43 : vector<176x32xf32>
    %45 = arith.addf %40, %44 : vector<176x32xf32>
    %c80_23 = arith.constant 80 : index
    %c0_24 = arith.constant 0 : index
    %46 = vector.load %arg26[%c80_23, %c0_24] : memref<336x32xf32, #tpu.memory_space<vmem>>, vector<176x32xf32>
    %47 = vector.extract_strided_slice %7 {offsets = [4, 0], sizes = [1, 32], strides = [1, 1]} : vector<9x32xf32> to vector<1x32xf32>
    %48 = vector.broadcast %47 : vector<1x32xf32> to vector<176x32xf32>
    %49 = arith.mulf %46, %48 : vector<176x32xf32>
    %50 = arith.addf %45, %49 : vector<176x32xf32>
    %c81 = arith.constant 81 : index
    %c0_25 = arith.constant 0 : index
    %51 = vector.load %arg26[%c81, %c0_25] : memref<336x32xf32, #tpu.memory_space<vmem>>, vector<176x32xf32>
    %52 = vector.extract_strided_slice %7 {offsets = [5, 0], sizes = [1, 32], strides = [1, 1]} : vector<9x32xf32> to vector<1x32xf32>
    %53 = vector.broadcast %52 : vector<1x32xf32> to vector<176x32xf32>
    %54 = arith.mulf %51, %53 : vector<176x32xf32>
    %55 = arith.addf %50, %54 : vector<176x32xf32>
    %c103 = arith.constant 103 : index
    %c0_26 = arith.constant 0 : index
    %56 = vector.load %arg26[%c103, %c0_26] : memref<336x32xf32, #tpu.memory_space<vmem>>, vector<176x32xf32>
    %57 = vector.extract_strided_slice %7 {offsets = [6, 0], sizes = [1, 32], strides = [1, 1]} : vector<9x32xf32> to vector<1x32xf32>
    %58 = vector.broadcast %57 : vector<1x32xf32> to vector<176x32xf32>
    %59 = arith.mulf %56, %58 : vector<176x32xf32>
    %60 = arith.addf %55, %59 : vector<176x32xf32>
    %c104_27 = arith.constant 104 : index
    %c0_28 = arith.constant 0 : index
    %61 = vector.load %arg26[%c104_27, %c0_28] : memref<336x32xf32, #tpu.memory_space<vmem>>, vector<176x32xf32>
    %62 = vector.extract_strided_slice %7 {offsets = [7, 0], sizes = [1, 32], strides = [1, 1]} : vector<9x32xf32> to vector<1x32xf32>
    %63 = vector.broadcast %62 : vector<1x32xf32> to vector<176x32xf32>
    %64 = arith.mulf %61, %63 : vector<176x32xf32>
    %65 = arith.addf %60, %64 : vector<176x32xf32>
    %c105 = arith.constant 105 : index
    %c0_29 = arith.constant 0 : index
    %66 = vector.load %arg26[%c105, %c0_29] : memref<336x32xf32, #tpu.memory_space<vmem>>, vector<176x32xf32>
    %67 = vector.extract_strided_slice %7 {offsets = [8, 0], sizes = [1, 32], strides = [1, 1]} : vector<9x32xf32> to vector<1x32xf32>
    %68 = vector.broadcast %67 : vector<1x32xf32> to vector<176x32xf32>
    %69 = arith.mulf %66, %68 : vector<176x32xf32>
    %70 = arith.addf %65, %69 : vector<176x32xf32>
    %71 = vector.extract_strided_slice %70 {offsets = [0, 0], sizes = [8, 32], strides = [1, 1]} : vector<176x32xf32> to vector<8x32xf32>
    %72 = vector.broadcast %8 : vector<1x32xf32> to vector<8x32xf32>
    %73 = arith.addf %71, %72 : vector<8x32xf32>
    %c0_30 = arith.constant 0 : index
    %c0_31 = arith.constant 0 : index
    %74 = vector.load %arg27[%c0_30, %c0_31] : memref<64x32xf32, #tpu.memory_space<vmem>>, vector<8x32xf32>
    tpu.vector_store %arg27[%c0_30, %c0_31], %73 {strides = array<i32>} : memref<64x32xf32, #tpu.memory_space<vmem>>, vector<8x32xf32>,
    %75 = vector.extract_strided_slice %70 {offsets = [24, 0], sizes = [8, 32], strides = [1, 1]} : vector<176x32xf32> to vector<8x32xf32>
    %76 = vector.broadcast %8 : vector<1x32xf32> to vector<8x32xf32>
    %77 = arith.addf %75, %76 : vector<8x32xf32>
    %c8 = arith.constant 8 : index
    %c0_32 = arith.constant 0 : index
    %78 = vector.load %arg27[%c8, %c0_32] : memref<64x32xf32, #tpu.memory_space<vmem>>, vector<8x32xf32>
    tpu.vector_store %arg27[%c8, %c0_32], %77 {strides = array<i32>} : memref<64x32xf32, #tpu.memory_space<vmem>>, vector<8x32xf32>,
    %79 = vector.extract_strided_slice %70 {offsets = [48, 0], sizes = [8, 32], strides = [1, 1]} : vector<176x32xf32> to vector<8x32xf32>
    %80 = vector.broadcast %8 : vector<1x32xf32> to vector<8x32xf32>
    %81 = arith.addf %79, %80 : vector<8x32xf32>
    %c16 = arith.constant 16 : index
    %c0_33 = arith.constant 0 : index
    %82 = vector.load %arg27[%c16, %c0_33] : memref<64x32xf32, #tpu.memory_space<vmem>>, vector<8x32xf32>
    tpu.vector_store %arg27[%c16, %c0_33], %81 {strides = array<i32>} : memref<64x32xf32, #tpu.memory_space<vmem>>, vector<8x32xf32>,
    %83 = vector.extract_strided_slice %70 {offsets = [72, 0], sizes = [8, 32], strides = [1, 1]} : vector<176x32xf32> to vector<8x32xf32>
    %84 = vector.broadcast %8 : vector<1x32xf32> to vector<8x32xf32>
    %85 = arith.addf %83, %84 : vector<8x32xf32>
    %c24 = arith.constant 24 : index
    %c0_34 = arith.constant 0 : index
    %86 = vector.load %arg27[%c24, %c0_34] : memref<64x32xf32, #tpu.memory_space<vmem>>, vector<8x32xf32>
    tpu.vector_store %arg27[%c24, %c0_34], %85 {strides = array<i32>} : memref<64x32xf32, #tpu.memory_space<vmem>>, vector<8x32xf32>,
    %87 = vector.extract_strided_slice %70 {offsets = [96, 0], sizes = [8, 32], strides = [1, 1]} : vector<176x32xf32> to vector<8x32xf32>
    %88 = vector.broadcast %8 : vector<1x32xf32> to vector<8x32xf32>
    %89 = arith.addf %87, %88 : vector<8x32xf32>
    %c32 = arith.constant 32 : index
    %c0_35 = arith.constant 0 : index
    %90 = vector.load %arg27[%c32, %c0_35] : memref<64x32xf32, #tpu.memory_space<vmem>>, vector<8x32xf32>
    tpu.vector_store %arg27[%c32, %c0_35], %89 {strides = array<i32>} : memref<64x32xf32, #tpu.memory_space<vmem>>, vector<8x32xf32>,
    %91 = vector.extract_strided_slice %70 {offsets = [120, 0], sizes = [8, 32], strides = [1, 1]} : vector<176x32xf32> to vector<8x32xf32>
    %92 = vector.broadcast %8 : vector<1x32xf32> to vector<8x32xf32>
    %93 = arith.addf %91, %92 : vector<8x32xf32>
    %c40 = arith.constant 40 : index
    %c0_36 = arith.constant 0 : index
    %94 = vector.load %arg27[%c40, %c0_36] : memref<64x32xf32, #tpu.memory_space<vmem>>, vector<8x32xf32>
    tpu.vector_store %arg27[%c40, %c0_36], %93 {strides = array<i32>} : memref<64x32xf32, #tpu.memory_space<vmem>>, vector<8x32xf32>,
    %95 = vector.extract_strided_slice %70 {offsets = [144, 0], sizes = [8, 32], strides = [1, 1]} : vector<176x32xf32> to vector<8x32xf32>
    %96 = vector.broadcast %8 : vector<1x32xf32> to vector<8x32xf32>
    %97 = arith.addf %95, %96 : vector<8x32xf32>
    %c48 = arith.constant 48 : index
    %c0_37 = arith.constant 0 : index
    %98 = vector.load %arg27[%c48, %c0_37] : memref<64x32xf32, #tpu.memory_space<vmem>>, vector<8x32xf32>
    tpu.vector_store %arg27[%c48, %c0_37], %97 {strides = array<i32>} : memref<64x32xf32, #tpu.memory_space<vmem>>, vector<8x32xf32>,
    %99 = vector.extract_strided_slice %70 {offsets = [168, 0], sizes = [8, 32], strides = [1, 1]} : vector<176x32xf32> to vector<8x32xf32>
    %100 = vector.broadcast %8 : vector<1x32xf32> to vector<8x32xf32>
    %101 = arith.addf %99, %100 : vector<8x32xf32>
    %c56_38 = arith.constant 56 : index
    %c0_39 = arith.constant 0 : index
    %102 = vector.load %arg27[%c56_38, %c0_39] : memref<64x32xf32, #tpu.memory_space<vmem>>, vector<8x32xf32>
    tpu.vector_store %arg27[%c56_38, %c0_39], %101 {strides = array<i32>} : memref<64x32xf32, #tpu.memory_space<vmem>>, vector<8x32xf32>,
    %c0_40 = arith.constant 0 : index
    %c0_41 = arith.constant 0 : index
    %103 = vector.load %arg27[%c0_40, %c0_41] : memref<64x32xf32, #tpu.memory_space<vmem>>, vector<64x32xf32>
    %104 = arith.addf %103, %4 : vector<64x32xf32>
    %c0_42 = arith.constant 0 : index
    %c0_43 = arith.constant 0 : index
    %c0_44 = arith.constant 0 : index
    %105 = vector.load %arg9[%c0_42, %c0_43, %c0_44] : memref<1x1x32xf32, #tpu.memory_space<vmem>>, vector<1x1x32xf32>
    %106 = vector.shape_cast %105 : vector<1x1x32xf32> to vector<1x32xf32>
    %c0_45 = arith.constant 0 : index
    %c0_46 = arith.constant 0 : index
    %c0_47 = arith.constant 0 : index
    %107 = vector.load %arg10[%c0_45, %c0_46, %c0_47] : memref<1x1x32xf32, #tpu.memory_space<vmem>>, vector<1x1x32xf32>
    %108 = vector.shape_cast %107 : vector<1x1x32xf32> to vector<1x32xf32>
    %cst_48 = arith.constant dense<0.000000e+00> : vector<64xf32>
    %109 = vector.multi_reduction <add>, %104, %cst_48 [1] : vector<64x32xf32> to vector<64xf32>
    %110 = vector.shape_cast %109 : vector<64xf32> to vector<64x1xf32>
    %cst_49 = arith.constant 3.200000e+01 : f32
    %111 = vector.broadcast %cst_49 : f32 to vector<64x1xf32>
    %112 = arith.divf %110, %111 : vector<64x1xf32>
    %113 = vector.broadcast %112 : vector<64x1xf32> to vector<64x32xf32>
    %114 = arith.subf %104, %113 : vector<64x32xf32>
    %115 = arith.mulf %114, %114 : vector<64x32xf32>
    %cst_50 = arith.constant dense<0.000000e+00> : vector<64xf32>
    %116 = vector.multi_reduction <add>, %115, %cst_50 [1] : vector<64x32xf32> to vector<64xf32>
    %117 = vector.shape_cast %116 : vector<64xf32> to vector<64x1xf32>
    %cst_51 = arith.constant 3.200000e+01 : f32
    %118 = vector.broadcast %cst_51 : f32 to vector<64x1xf32>
    %119 = arith.divf %117, %118 : vector<64x1xf32>
    %cst_52 = arith.constant 9.99999974E-6 : f32
    %120 = vector.broadcast %cst_52 : f32 to vector<64x1xf32>
    %121 = arith.addf %119, %120 : vector<64x1xf32>
    %122 = math.rsqrt %121 : vector<64x1xf32>
    %123 = vector.broadcast %122 : vector<64x1xf32> to vector<64x32xf32>
    %124 = arith.mulf %114, %123 : vector<64x32xf32>
    %125 = vector.broadcast %106 : vector<1x32xf32> to vector<64x32xf32>
    %126 = arith.mulf %124, %125 : vector<64x32xf32>
    %127 = vector.broadcast %108 : vector<1x32xf32> to vector<64x32xf32>
    %128 = arith.addf %126, %127 : vector<64x32xf32>
    %c0_53 = arith.constant 0 : index
    %c0_54 = arith.constant 0 : index
    %c0_55 = arith.constant 0 : index
    %129 = vector.load %arg11[%c0_53, %c0_54, %c0_55] : memref<1x32x32xbf16, #tpu.memory_space<vmem>>, vector<1x32x32xbf16>
    %130 = vector.shape_cast %129 : vector<1x32x32xbf16> to vector<32x32xbf16>
    %131 = arith.truncf %128 : vector<64x32xf32> to vector<64x32xbf16>
    %cst_56 = arith.constant dense<0.000000e+00> : vector<64x32xf32>
    %132 = tpu.matmul %131, %130, %cst_56 {dimension_numbers = #tpu.dot_dimension_numbers<[1], [0], [0], [1], [0, 0, 1, 1], [], []>} : vector<64x32xbf16>, vector<32x32xbf16>, vector<64x32xf32> -> vector<64x32xf32>
    %c0_57 = arith.constant 0 : index
    %c0_58 = arith.constant 0 : index
    %c0_59 = arith.constant 0 : index
    %133 = vector.load %arg14[%c0_57, %c0_58, %c0_59] : memref<1x1x32xf32, #tpu.memory_space<vmem>>, vector<1x1x32xf32>
    %134 = vector.shape_cast %133 : vector<1x1x32xf32> to vector<1x32xf32>
    %135 = vector.broadcast %134 : vector<1x32xf32> to vector<64x32xf32>
    %136 = arith.addf %132, %135 : vector<64x32xf32>
    %c0_60 = arith.constant 0 : index
    %c0_61 = arith.constant 0 : index
    %c0_62 = arith.constant 0 : index
    %137 = vector.load %arg12[%c0_60, %c0_61, %c0_62] : memref<1x32x32xbf16, #tpu.memory_space<vmem>>, vector<1x32x32xbf16>
    %138 = vector.shape_cast %137 : vector<1x32x32xbf16> to vector<32x32xbf16>
    %139 = arith.truncf %128 : vector<64x32xf32> to vector<64x32xbf16>
    %cst_63 = arith.constant dense<0.000000e+00> : vector<64x32xf32>
    %140 = tpu.matmul %139, %138, %cst_63 {dimension_numbers = #tpu.dot_dimension_numbers<[1], [0], [0], [1], [0, 0, 1, 1], [], []>} : vector<64x32xbf16>, vector<32x32xbf16>, vector<64x32xf32> -> vector<64x32xf32>
    %c0_64 = arith.constant 0 : index
    %c0_65 = arith.constant 0 : index
    %c0_66 = arith.constant 0 : index
    %141 = vector.load %arg15[%c0_64, %c0_65, %c0_66] : memref<1x1x32xf32, #tpu.memory_space<vmem>>, vector<1x1x32xf32>
    %142 = vector.shape_cast %141 : vector<1x1x32xf32> to vector<1x32xf32>
    %143 = vector.broadcast %142 : vector<1x32xf32> to vector<64x32xf32>
    %144 = arith.addf %140, %143 : vector<64x32xf32>
    %c0_67 = arith.constant 0 : index
    %c0_68 = arith.constant 0 : index
    %c0_69 = arith.constant 0 : index
    %145 = vector.load %arg13[%c0_67, %c0_68, %c0_69] : memref<1x32x32xbf16, #tpu.memory_space<vmem>>, vector<1x32x32xbf16>
    %146 = vector.shape_cast %145 : vector<1x32x32xbf16> to vector<32x32xbf16>
    %147 = arith.truncf %128 : vector<64x32xf32> to vector<64x32xbf16>
    %cst_70 = arith.constant dense<0.000000e+00> : vector<64x32xf32>
    %148 = tpu.matmul %147, %146, %cst_70 {dimension_numbers = #tpu.dot_dimension_numbers<[1], [0], [0], [1], [0, 0, 1, 1], [], []>} : vector<64x32xbf16>, vector<32x32xbf16>, vector<64x32xf32> -> vector<64x32xf32>
    %c0_71 = arith.constant 0 : index
    %c0_72 = arith.constant 0 : index
    %c0_73 = arith.constant 0 : index
    %149 = vector.load %arg16[%c0_71, %c0_72, %c0_73] : memref<1x1x32xf32, #tpu.memory_space<vmem>>, vector<1x1x32xf32>
    %150 = vector.shape_cast %149 : vector<1x1x32xf32> to vector<1x32xf32>
    %151 = vector.broadcast %150 : vector<1x32xf32> to vector<64x32xf32>
    %152 = arith.addf %148, %151 : vector<64x32xf32>
    %cst_74 = arith.constant dense<0xFF800000> : vector<32xf32>
    %153 = vector.multi_reduction <maximumf>, %144, %cst_74 [0] : vector<64x32xf32> to vector<32xf32>
    %154 = vector.shape_cast %153 : vector<32xf32> to vector<1x32xf32>
    %155 = vector.broadcast %154 : vector<1x32xf32> to vector<64x32xf32>
    %156 = arith.subf %144, %155 : vector<64x32xf32>
    %157 = math.exp %156 : vector<64x32xf32>
    %cst_75 = arith.constant dense<0.000000e+00> : vector<32x32xf32>
    %158 = tpu.matmul %157, %152, %cst_75 {dimension_numbers = #tpu.dot_dimension_numbers<[0], [0], [1], [1], [0, 1, 1, 1], [], []>} : vector<64x32xf32>, vector<64x32xf32>, vector<32x32xf32> -> vector<32x32xf32>
    %cst_76 = arith.constant 1.000000e+00 : f32
    %159 = vector.broadcast %cst_76 : f32 to vector<64x1xf32>
    %cst_77 = arith.constant dense<0.000000e+00> : vector<32x1xf32>
    %160 = tpu.matmul %157, %159, %cst_77 {dimension_numbers = #tpu.dot_dimension_numbers<[0], [0], [1], [1], [0, 1, 1, 1], [], []>} : vector<64x32xf32>, vector<64x1xf32>, vector<32x1xf32> -> vector<32x1xf32>
    %c0_78 = arith.constant 0 : index
    %c0_79 = arith.constant 0 : index
    %161 = vector.load %arg4[%c0_78, %c0_79] : memref<32x32xf32, #tpu.memory_space<vmem>>, vector<32x32xf32>
    %162 = tpu.reciprocal %160 {approx = true} : vector<32x1xf32> -> vector<32x1xf32>
    %163 = vector.broadcast %162 : vector<32x1xf32> to vector<32x32xf32>
    %164 = arith.mulf %161, %163 : vector<32x32xf32>
    %cst_80 = arith.constant 5.000000e-01 : f32
    %165 = vector.broadcast %cst_80 : f32 to vector<1x32xf32>
    %166 = arith.mulf %165, %6 : vector<1x32xf32>
    %167 = vector.broadcast %166 : vector<1x32xf32> to vector<32x32xf32>
    %168 = arith.mulf %164, %167 : vector<32x32xf32>
    %169 = arith.mulf %158, %168 : vector<32x32xf32>
    %170 = arith.truncf %136 : vector<64x32xf32> to vector<64x32xbf16>
    %171 = arith.truncf %169 : vector<32x32xf32> to vector<32x32xbf16>
    %cst_81 = arith.constant dense<0.000000e+00> : vector<64x32xf32>
    %172 = tpu.matmul %170, %171, %cst_81 {dimension_numbers = #tpu.dot_dimension_numbers<[1], [0], [0], [1], [0, 0, 1, 1], [], []>} : vector<64x32xbf16>, vector<32x32xbf16>, vector<64x32xf32> -> vector<64x32xf32>
    %c0_82 = arith.constant 0 : index
    %c0_83 = arith.constant 0 : index
    %173 = vector.load %arg7[%c0_82, %c0_83] : memref<49x32xf32, #tpu.memory_space<vmem>>, vector<49x32xf32>
    %174 = vector.broadcast %6 : vector<1x32xf32> to vector<49x32xf32>
    %175 = arith.mulf %173, %174 : vector<49x32xf32>
    %c0_84 = arith.constant 0 : index
    %c0_85 = arith.constant 0 : index
    %176 = vector.load %arg8[%c0_84, %c0_85] : memref<1x32xf32, #tpu.memory_space<vmem>>, vector<1x32xf32>
    %177 = arith.mulf %176, %6 : vector<1x32xf32>
    %178 = vector.extract_strided_slice %152 {offsets = [0, 0], sizes = [8, 32], strides = [1, 1]} : vector<64x32xf32> to vector<8x32xf32>
    %c80_86 = arith.constant 80 : index
    %c0_87 = arith.constant 0 : index
    %179 = vector.load %arg26[%c80_86, %c0_87] : memref<336x32xf32, #tpu.memory_space<vmem>>, vector<8x32xf32>
    tpu.vector_store %arg26[%c80_86, %c0_87], %178 {strides = array<i32>} : memref<336x32xf32, #tpu.memory_space<vmem>>, vector<8x32xf32>,
    %180 = vector.extract_strided_slice %152 {offsets = [8, 0], sizes = [8, 32], strides = [1, 1]} : vector<64x32xf32> to vector<8x32xf32>
    %c104_88 = arith.constant 104 : index
    %c0_89 = arith.constant 0 : index
    %181 = vector.load %arg26[%c104_88, %c0_89] : memref<336x32xf32, #tpu.memory_space<vmem>>, vector<8x32xf32>
    tpu.vector_store %arg26[%c104_88, %c0_89], %180 {strides = array<i32>} : memref<336x32xf32, #tpu.memory_space<vmem>>, vector<8x32xf32>,
    %182 = vector.extract_strided_slice %152 {offsets = [16, 0], sizes = [8, 32], strides = [1, 1]} : vector<64x32xf32> to vector<8x32xf32>
    %c128_90 = arith.constant 128 : index
    %c0_91 = arith.constant 0 : index
    %183 = vector.load %arg26[%c128_90, %c0_91] : memref<336x32xf32, #tpu.memory_space<vmem>>, vector<8x32xf32>
    tpu.vector_store %arg26[%c128_90, %c0_91], %182 {strides = array<i32>} : memref<336x32xf32, #tpu.memory_space<vmem>>, vector<8x32xf32>,
    %184 = vector.extract_strided_slice %152 {offsets = [24, 0], sizes = [8, 32], strides = [1, 1]} : vector<64x32xf32> to vector<8x32xf32>
    %c152_92 = arith.constant 152 : index
    %c0_93 = arith.constant 0 : index
    %185 = vector.load %arg26[%c152_92, %c0_93] : memref<336x32xf32, #tpu.memory_space<vmem>>, vector<8x32xf32>
    tpu.vector_store %arg26[%c152_92, %c0_93], %184 {strides = array<i32>} : memref<336x32xf32, #tpu.memory_space<vmem>>, vector<8x32xf32>,
    %186 = vector.extract_strided_slice %152 {offsets = [32, 0], sizes = [8, 32], strides = [1, 1]} : vector<64x32xf32> to vector<8x32xf32>
    %c176_94 = arith.constant 176 : index
    %c0_95 = arith.constant 0 : index
    %187 = vector.load %arg26[%c176_94, %c0_95] : memref<336x32xf32, #tpu.memory_space<vmem>>, vector<8x32xf32>
    tpu.vector_store %arg26[%c176_94, %c0_95], %186 {strides = array<i32>} : memref<336x32xf32, #tpu.memory_space<vmem>>, vector<8x32xf32>,
    %188 = vector.extract_strided_slice %152 {offsets = [40, 0], sizes = [8, 32], strides = [1, 1]} : vector<64x32xf32> to vector<8x32xf32>
    %c200_96 = arith.constant 200 : index
    %c0_97 = arith.constant 0 : index
    %189 = vector.load %arg26[%c200_96, %c0_97] : memref<336x32xf32, #tpu.memory_space<vmem>>, vector<8x32xf32>
    tpu.vector_store %arg26[%c200_96, %c0_97], %188 {strides = array<i32>} : memref<336x32xf32, #tpu.memory_space<vmem>>, vector<8x32xf32>,
    %190 = vector.extract_strided_slice %152 {offsets = [48, 0], sizes = [8, 32], strides = [1, 1]} : vector<64x32xf32> to vector<8x32xf32>
    %c224_98 = arith.constant 224 : index
    %c0_99 = arith.constant 0 : index
    %191 = vector.load %arg26[%c224_98, %c0_99] : memref<336x32xf32, #tpu.memory_space<vmem>>, vector<8x32xf32>
    tpu.vector_store %arg26[%c224_98, %c0_99], %190 {strides = array<i32>} : memref<336x32xf32, #tpu.memory_space<vmem>>, vector<8x32xf32>,
    %192 = vector.extract_strided_slice %152 {offsets = [56, 0], sizes = [8, 32], strides = [1, 1]} : vector<64x32xf32> to vector<8x32xf32>
    %c248_100 = arith.constant 248 : index
    %c0_101 = arith.constant 0 : index
    %193 = vector.load %arg26[%c248_100, %c0_101] : memref<336x32xf32, #tpu.memory_space<vmem>>, vector<8x32xf32>
    tpu.vector_store %arg26[%c248_100, %c0_101], %192 {strides = array<i32>} : memref<336x32xf32, #tpu.memory_space<vmem>>, vector<8x32xf32>,
    %cst_102 = arith.constant 0.000000e+00 : f32
    %194 = vector.broadcast %cst_102 : f32 to vector<176x32xf32>
    %c5 = arith.constant 5 : index
    %c0_103 = arith.constant 0 : index
    %195 = vector.load %arg26[%c5, %c0_103] : memref<336x32xf32, #tpu.memory_space<vmem>>, vector<176x32xf32>
    %196 = vector.extract_strided_slice %175 {offsets = [0, 0], sizes = [1, 32], strides = [1, 1]} : vector<49x32xf32> to vector<1x32xf32>
    %197 = vector.broadcast %196 : vector<1x32xf32> to vector<176x32xf32>
    %198 = arith.mulf %195, %197 : vector<176x32xf32>
    %199 = arith.addf %194, %198 : vector<176x32xf32>
    %c6 = arith.constant 6 : index
    %c0_104 = arith.constant 0 : index
    %200 = vector.load %arg26[%c6, %c0_104] : memref<336x32xf32, #tpu.memory_space<vmem>>, vector<176x32xf32>
    %201 = vector.extract_strided_slice %175 {offsets = [1, 0], sizes = [1, 32], strides = [1, 1]} : vector<49x32xf32> to vector<1x32xf32>
    %202 = vector.broadcast %201 : vector<1x32xf32> to vector<176x32xf32>
    %203 = arith.mulf %200, %202 : vector<176x32xf32>
    %204 = arith.addf %199, %203 : vector<176x32xf32>
    %c7 = arith.constant 7 : index
    %c0_105 = arith.constant 0 : index
    %205 = vector.load %arg26[%c7, %c0_105] : memref<336x32xf32, #tpu.memory_space<vmem>>, vector<176x32xf32>
    %206 = vector.extract_strided_slice %175 {offsets = [2, 0], sizes = [1, 32], strides = [1, 1]} : vector<49x32xf32> to vector<1x32xf32>
    %207 = vector.broadcast %206 : vector<1x32xf32> to vector<176x32xf32>
    %208 = arith.mulf %205, %207 : vector<176x32xf32>
    %209 = arith.addf %204, %208 : vector<176x32xf32>
    %c8_106 = arith.constant 8 : index
    %c0_107 = arith.constant 0 : index
    %210 = vector.load %arg26[%c8_106, %c0_107] : memref<336x32xf32, #tpu.memory_space<vmem>>, vector<176x32xf32>
    %211 = vector.extract_strided_slice %175 {offsets = [3, 0], sizes = [1, 32], strides = [1, 1]} : vector<49x32xf32> to vector<1x32xf32>
    %212 = vector.broadcast %211 : vector<1x32xf32> to vector<176x32xf32>
    %213 = arith.mulf %210, %212 : vector<176x32xf32>
    %214 = arith.addf %209, %213 : vector<176x32xf32>
    %c9 = arith.constant 9 : index
    %c0_108 = arith.constant 0 : index
    %215 = vector.load %arg26[%c9, %c0_108] : memref<336x32xf32, #tpu.memory_space<vmem>>, vector<176x32xf32>
    %216 = vector.extract_strided_slice %175 {offsets = [4, 0], sizes = [1, 32], strides = [1, 1]} : vector<49x32xf32> to vector<1x32xf32>
    %217 = vector.broadcast %216 : vector<1x32xf32> to vector<176x32xf32>
    %218 = arith.mulf %215, %217 : vector<176x32xf32>
    %219 = arith.addf %214, %218 : vector<176x32xf32>
    %c10 = arith.constant 10 : index
    %c0_109 = arith.constant 0 : index
    %220 = vector.load %arg26[%c10, %c0_109] : memref<336x32xf32, #tpu.memory_space<vmem>>, vector<176x32xf32>
    %221 = vector.extract_strided_slice %175 {offsets = [5, 0], sizes = [1, 32], strides = [1, 1]} : vector<49x32xf32> to vector<1x32xf32>
    %222 = vector.broadcast %221 : vector<1x32xf32> to vector<176x32xf32>
    %223 = arith.mulf %220, %222 : vector<176x32xf32>
    %224 = arith.addf %219, %223 : vector<176x32xf32>
    %c11 = arith.constant 11 : index
    %c0_110 = arith.constant 0 : index
    %225 = vector.load %arg26[%c11, %c0_110] : memref<336x32xf32, #tpu.memory_space<vmem>>, vector<176x32xf32>
    %226 = vector.extract_strided_slice %175 {offsets = [6, 0], sizes = [1, 32], strides = [1, 1]} : vector<49x32xf32> to vector<1x32xf32>
    %227 = vector.broadcast %226 : vector<1x32xf32> to vector<176x32xf32>
    %228 = arith.mulf %225, %227 : vector<176x32xf32>
    %229 = arith.addf %224, %228 : vector<176x32xf32>
    %c29 = arith.constant 29 : index
    %c0_111 = arith.constant 0 : index
    %230 = vector.load %arg26[%c29, %c0_111] : memref<336x32xf32, #tpu.memory_space<vmem>>, vector<176x32xf32>
    %231 = vector.extract_strided_slice %175 {offsets = [7, 0], sizes = [1, 32], strides = [1, 1]} : vector<49x32xf32> to vector<1x32xf32>
    %232 = vector.broadcast %231 : vector<1x32xf32> to vector<176x32xf32>
    %233 = arith.mulf %230, %232 : vector<176x32xf32>
    %234 = arith.addf %229, %233 : vector<176x32xf32>
    %c30 = arith.constant 30 : index
    %c0_112 = arith.constant 0 : index
    %235 = vector.load %arg26[%c30, %c0_112] : memref<336x32xf32, #tpu.memory_space<vmem>>, vector<176x32xf32>
    %236 = vector.extract_strided_slice %175 {offsets = [8, 0], sizes = [1, 32], strides = [1, 1]} : vector<49x32xf32> to vector<1x32xf32>
    %237 = vector.broadcast %236 : vector<1x32xf32> to vector<176x32xf32>
    %238 = arith.mulf %235, %237 : vector<176x32xf32>
    %239 = arith.addf %234, %238 : vector<176x32xf32>
    %c31 = arith.constant 31 : index
    %c0_113 = arith.constant 0 : index
    %240 = vector.load %arg26[%c31, %c0_113] : memref<336x32xf32, #tpu.memory_space<vmem>>, vector<176x32xf32>
    %241 = vector.extract_strided_slice %175 {offsets = [9, 0], sizes = [1, 32], strides = [1, 1]} : vector<49x32xf32> to vector<1x32xf32>
    %242 = vector.broadcast %241 : vector<1x32xf32> to vector<176x32xf32>
    %243 = arith.mulf %240, %242 : vector<176x32xf32>
    %244 = arith.addf %239, %243 : vector<176x32xf32>
    %c32_114 = arith.constant 32 : index
    %c0_115 = arith.constant 0 : index
    %245 = vector.load %arg26[%c32_114, %c0_115] : memref<336x32xf32, #tpu.memory_space<vmem>>, vector<176x32xf32>
    %246 = vector.extract_strided_slice %175 {offsets = [10, 0], sizes = [1, 32], strides = [1, 1]} : vector<49x32xf32> to vector<1x32xf32>
    %247 = vector.broadcast %246 : vector<1x32xf32> to vector<176x32xf32>
    %248 = arith.mulf %245, %247 : vector<176x32xf32>
    %249 = arith.addf %244, %248 : vector<176x32xf32>
    %c33 = arith.constant 33 : index
    %c0_116 = arith.constant 0 : index
    %250 = vector.load %arg26[%c33, %c0_116] : memref<336x32xf32, #tpu.memory_space<vmem>>, vector<176x32xf32>
    %251 = vector.extract_strided_slice %175 {offsets = [11, 0], sizes = [1, 32], strides = [1, 1]} : vector<49x32xf32> to vector<1x32xf32>
    %252 = vector.broadcast %251 : vector<1x32xf32> to vector<176x32xf32>
    %253 = arith.mulf %250, %252 : vector<176x32xf32>
    %254 = arith.addf %249, %253 : vector<176x32xf32>
    %c34 = arith.constant 34 : index
    %c0_117 = arith.constant 0 : index
    %255 = vector.load %arg26[%c34, %c0_117] : memref<336x32xf32, #tpu.memory_space<vmem>>, vector<176x32xf32>
    %256 = vector.extract_strided_slice %175 {offsets = [12, 0], sizes = [1, 32], strides = [1, 1]} : vector<49x32xf32> to vector<1x32xf32>
    %257 = vector.broadcast %256 : vector<1x32xf32> to vector<176x32xf32>
    %258 = arith.mulf %255, %257 : vector<176x32xf32>
    %259 = arith.addf %254, %258 : vector<176x32xf32>
    %c35 = arith.constant 35 : index
    %c0_118 = arith.constant 0 : index
    %260 = vector.load %arg26[%c35, %c0_118] : memref<336x32xf32, #tpu.memory_space<vmem>>, vector<176x32xf32>
    %261 = vector.extract_strided_slice %175 {offsets = [13, 0], sizes = [1, 32], strides = [1, 1]} : vector<49x32xf32> to vector<1x32xf32>
    %262 = vector.broadcast %261 : vector<1x32xf32> to vector<176x32xf32>
    %263 = arith.mulf %260, %262 : vector<176x32xf32>
    %264 = arith.addf %259, %263 : vector<176x32xf32>
    %c53 = arith.constant 53 : index
    %c0_119 = arith.constant 0 : index
    %265 = vector.load %arg26[%c53, %c0_119] : memref<336x32xf32, #tpu.memory_space<vmem>>, vector<176x32xf32>
    %266 = vector.extract_strided_slice %175 {offsets = [14, 0], sizes = [1, 32], strides = [1, 1]} : vector<49x32xf32> to vector<1x32xf32>
    %267 = vector.broadcast %266 : vector<1x32xf32> to vector<176x32xf32>
    %268 = arith.mulf %265, %267 : vector<176x32xf32>
    %269 = arith.addf %264, %268 : vector<176x32xf32>
    %c54 = arith.constant 54 : index
    %c0_120 = arith.constant 0 : index
    %270 = vector.load %arg26[%c54, %c0_120] : memref<336x32xf32, #tpu.memory_space<vmem>>, vector<176x32xf32>
    %271 = vector.extract_strided_slice %175 {offsets = [15, 0], sizes = [1, 32], strides = [1, 1]} : vector<49x32xf32> to vector<1x32xf32>
    %272 = vector.broadcast %271 : vector<1x32xf32> to vector<176x32xf32>
    %273 = arith.mulf %270, %272 : vector<176x32xf32>
    %274 = arith.addf %269, %273 : vector<176x32xf32>
    %c55_121 = arith.constant 55 : index
    %c0_122 = arith.constant 0 : index
    %275 = vector.load %arg26[%c55_121, %c0_122] : memref<336x32xf32, #tpu.memory_space<vmem>>, vector<176x32xf32>
    %276 = vector.extract_strided_slice %175 {offsets = [16, 0], sizes = [1, 32], strides = [1, 1]} : vector<49x32xf32> to vector<1x32xf32>
    %277 = vector.broadcast %276 : vector<1x32xf32> to vector<176x32xf32>
    %278 = arith.mulf %275, %277 : vector<176x32xf32>
    %279 = arith.addf %274, %278 : vector<176x32xf32>
    %c56_123 = arith.constant 56 : index
    %c0_124 = arith.constant 0 : index
    %280 = vector.load %arg26[%c56_123, %c0_124] : memref<336x32xf32, #tpu.memory_space<vmem>>, vector<176x32xf32>
    %281 = vector.extract_strided_slice %175 {offsets = [17, 0], sizes = [1, 32], strides = [1, 1]} : vector<49x32xf32> to vector<1x32xf32>
    %282 = vector.broadcast %281 : vector<1x32xf32> to vector<176x32xf32>
    %283 = arith.mulf %280, %282 : vector<176x32xf32>
    %284 = arith.addf %279, %283 : vector<176x32xf32>
    %c57_125 = arith.constant 57 : index
    %c0_126 = arith.constant 0 : index
    %285 = vector.load %arg26[%c57_125, %c0_126] : memref<336x32xf32, #tpu.memory_space<vmem>>, vector<176x32xf32>
    %286 = vector.extract_strided_slice %175 {offsets = [18, 0], sizes = [1, 32], strides = [1, 1]} : vector<49x32xf32> to vector<1x32xf32>
    %287 = vector.broadcast %286 : vector<1x32xf32> to vector<176x32xf32>
    %288 = arith.mulf %285, %287 : vector<176x32xf32>
    %289 = arith.addf %284, %288 : vector<176x32xf32>
    %c58 = arith.constant 58 : index
    %c0_127 = arith.constant 0 : index
    %290 = vector.load %arg26[%c58, %c0_127] : memref<336x32xf32, #tpu.memory_space<vmem>>, vector<176x32xf32>
    %291 = vector.extract_strided_slice %175 {offsets = [19, 0], sizes = [1, 32], strides = [1, 1]} : vector<49x32xf32> to vector<1x32xf32>
    %292 = vector.broadcast %291 : vector<1x32xf32> to vector<176x32xf32>
    %293 = arith.mulf %290, %292 : vector<176x32xf32>
    %294 = arith.addf %289, %293 : vector<176x32xf32>
    %c59 = arith.constant 59 : index
    %c0_128 = arith.constant 0 : index
    %295 = vector.load %arg26[%c59, %c0_128] : memref<336x32xf32, #tpu.memory_space<vmem>>, vector<176x32xf32>
    %296 = vector.extract_strided_slice %175 {offsets = [20, 0], sizes = [1, 32], strides = [1, 1]} : vector<49x32xf32> to vector<1x32xf32>
    %297 = vector.broadcast %296 : vector<1x32xf32> to vector<176x32xf32>
    %298 = arith.mulf %295, %297 : vector<176x32xf32>
    %299 = arith.addf %294, %298 : vector<176x32xf32>
    %c77 = arith.constant 77 : index
    %c0_129 = arith.constant 0 : index
    %300 = vector.load %arg26[%c77, %c0_129] : memref<336x32xf32, #tpu.memory_space<vmem>>, vector<176x32xf32>
    %301 = vector.extract_strided_slice %175 {offsets = [21, 0], sizes = [1, 32], strides = [1, 1]} : vector<49x32xf32> to vector<1x32xf32>
    %302 = vector.broadcast %301 : vector<1x32xf32> to vector<176x32xf32>
    %303 = arith.mulf %300, %302 : vector<176x32xf32>
    %304 = arith.addf %299, %303 : vector<176x32xf32>
    %c78 = arith.constant 78 : index
    %c0_130 = arith.constant 0 : index
    %305 = vector.load %arg26[%c78, %c0_130] : memref<336x32xf32, #tpu.memory_space<vmem>>, vector<176x32xf32>
    %306 = vector.extract_strided_slice %175 {offsets = [22, 0], sizes = [1, 32], strides = [1, 1]} : vector<49x32xf32> to vector<1x32xf32>
    %307 = vector.broadcast %306 : vector<1x32xf32> to vector<176x32xf32>
    %308 = arith.mulf %305, %307 : vector<176x32xf32>
    %309 = arith.addf %304, %308 : vector<176x32xf32>
    %c79_131 = arith.constant 79 : index
    %c0_132 = arith.constant 0 : index
    %310 = vector.load %arg26[%c79_131, %c0_132] : memref<336x32xf32, #tpu.memory_space<vmem>>, vector<176x32xf32>
    %311 = vector.extract_strided_slice %175 {offsets = [23, 0], sizes = [1, 32], strides = [1, 1]} : vector<49x32xf32> to vector<1x32xf32>
    %312 = vector.broadcast %311 : vector<1x32xf32> to vector<176x32xf32>
    %313 = arith.mulf %310, %312 : vector<176x32xf32>
    %314 = arith.addf %309, %313 : vector<176x32xf32>
    %c80_133 = arith.constant 80 : index
    %c0_134 = arith.constant 0 : index
    %315 = vector.load %arg26[%c80_133, %c0_134] : memref<336x32xf32, #tpu.memory_space<vmem>>, vector<176x32xf32>
    %316 = vector.extract_strided_slice %175 {offsets = [24, 0], sizes = [1, 32], strides = [1, 1]} : vector<49x32xf32> to vector<1x32xf32>
    %317 = vector.broadcast %316 : vector<1x32xf32> to vector<176x32xf32>
    %318 = arith.mulf %315, %317 : vector<176x32xf32>
    %319 = arith.addf %314, %318 : vector<176x32xf32>
    %c81_135 = arith.constant 81 : index
    %c0_136 = arith.constant 0 : index
    %320 = vector.load %arg26[%c81_135, %c0_136] : memref<336x32xf32, #tpu.memory_space<vmem>>, vector<176x32xf32>
    %321 = vector.extract_strided_slice %175 {offsets = [25, 0], sizes = [1, 32], strides = [1, 1]} : vector<49x32xf32> to vector<1x32xf32>
    %322 = vector.broadcast %321 : vector<1x32xf32> to vector<176x32xf32>
    %323 = arith.mulf %320, %322 : vector<176x32xf32>
    %324 = arith.addf %319, %323 : vector<176x32xf32>
    %c82 = arith.constant 82 : index
    %c0_137 = arith.constant 0 : index
    %325 = vector.load %arg26[%c82, %c0_137] : memref<336x32xf32, #tpu.memory_space<vmem>>, vector<176x32xf32>
    %326 = vector.extract_strided_slice %175 {offsets = [26, 0], sizes = [1, 32], strides = [1, 1]} : vector<49x32xf32> to vector<1x32xf32>
    %327 = vector.broadcast %326 : vector<1x32xf32> to vector<176x32xf32>
    %328 = arith.mulf %325, %327 : vector<176x32xf32>
    %329 = arith.addf %324, %328 : vector<176x32xf32>
    %c83 = arith.constant 83 : index
    %c0_138 = arith.constant 0 : index
    %330 = vector.load %arg26[%c83, %c0_138] : memref<336x32xf32, #tpu.memory_space<vmem>>, vector<176x32xf32>
    %331 = vector.extract_strided_slice %175 {offsets = [27, 0], sizes = [1, 32], strides = [1, 1]} : vector<49x32xf32> to vector<1x32xf32>
    %332 = vector.broadcast %331 : vector<1x32xf32> to vector<176x32xf32>
    %333 = arith.mulf %330, %332 : vector<176x32xf32>
    %334 = arith.addf %329, %333 : vector<176x32xf32>
    %c101 = arith.constant 101 : index
    %c0_139 = arith.constant 0 : index
    %335 = vector.load %arg26[%c101, %c0_139] : memref<336x32xf32, #tpu.memory_space<vmem>>, vector<176x32xf32>
    %336 = vector.extract_strided_slice %175 {offsets = [28, 0], sizes = [1, 32], strides = [1, 1]} : vector<49x32xf32> to vector<1x32xf32>
    %337 = vector.broadcast %336 : vector<1x32xf32> to vector<176x32xf32>
    %338 = arith.mulf %335, %337 : vector<176x32xf32>
    %339 = arith.addf %334, %338 : vector<176x32xf32>
    %c102 = arith.constant 102 : index
    %c0_140 = arith.constant 0 : index
    %340 = vector.load %arg26[%c102, %c0_140] : memref<336x32xf32, #tpu.memory_space<vmem>>, vector<176x32xf32>
    %341 = vector.extract_strided_slice %175 {offsets = [29, 0], sizes = [1, 32], strides = [1, 1]} : vector<49x32xf32> to vector<1x32xf32>
    %342 = vector.broadcast %341 : vector<1x32xf32> to vector<176x32xf32>
    %343 = arith.mulf %340, %342 : vector<176x32xf32>
    %344 = arith.addf %339, %343 : vector<176x32xf32>
    %c103_141 = arith.constant 103 : index
    %c0_142 = arith.constant 0 : index
    %345 = vector.load %arg26[%c103_141, %c0_142] : memref<336x32xf32, #tpu.memory_space<vmem>>, vector<176x32xf32>
    %346 = vector.extract_strided_slice %175 {offsets = [30, 0], sizes = [1, 32], strides = [1, 1]} : vector<49x32xf32> to vector<1x32xf32>
    %347 = vector.broadcast %346 : vector<1x32xf32> to vector<176x32xf32>
    %348 = arith.mulf %345, %347 : vector<176x32xf32>
    %349 = arith.addf %344, %348 : vector<176x32xf32>
    %c104_143 = arith.constant 104 : index
    %c0_144 = arith.constant 0 : index
    %350 = vector.load %arg26[%c104_143, %c0_144] : memref<336x32xf32, #tpu.memory_space<vmem>>, vector<176x32xf32>
    %351 = vector.extract_strided_slice %175 {offsets = [31, 0], sizes = [1, 32], strides = [1, 1]} : vector<49x32xf32> to vector<1x32xf32>
    %352 = vector.broadcast %351 : vector<1x32xf32> to vector<176x32xf32>
    %353 = arith.mulf %350, %352 : vector<176x32xf32>
    %354 = arith.addf %349, %353 : vector<176x32xf32>
    %c105_145 = arith.constant 105 : index
    %c0_146 = arith.constant 0 : index
    %355 = vector.load %arg26[%c105_145, %c0_146] : memref<336x32xf32, #tpu.memory_space<vmem>>, vector<176x32xf32>
    %356 = vector.extract_strided_slice %175 {offsets = [32, 0], sizes = [1, 32], strides = [1, 1]} : vector<49x32xf32> to vector<1x32xf32>
    %357 = vector.broadcast %356 : vector<1x32xf32> to vector<176x32xf32>
    %358 = arith.mulf %355, %357 : vector<176x32xf32>
    %359 = arith.addf %354, %358 : vector<176x32xf32>
    %c106 = arith.constant 106 : index
    %c0_147 = arith.constant 0 : index
    %360 = vector.load %arg26[%c106, %c0_147] : memref<336x32xf32, #tpu.memory_space<vmem>>, vector<176x32xf32>
    %361 = vector.extract_strided_slice %175 {offsets = [33, 0], sizes = [1, 32], strides = [1, 1]} : vector<49x32xf32> to vector<1x32xf32>
    %362 = vector.broadcast %361 : vector<1x32xf32> to vector<176x32xf32>
    %363 = arith.mulf %360, %362 : vector<176x32xf32>
    %364 = arith.addf %359, %363 : vector<176x32xf32>
    %c107 = arith.constant 107 : index
    %c0_148 = arith.constant 0 : index
    %365 = vector.load %arg26[%c107, %c0_148] : memref<336x32xf32, #tpu.memory_space<vmem>>, vector<176x32xf32>
    %366 = vector.extract_strided_slice %175 {offsets = [34, 0], sizes = [1, 32], strides = [1, 1]} : vector<49x32xf32> to vector<1x32xf32>
    %367 = vector.broadcast %366 : vector<1x32xf32> to vector<176x32xf32>
    %368 = arith.mulf %365, %367 : vector<176x32xf32>
    %369 = arith.addf %364, %368 : vector<176x32xf32>
    %c125 = arith.constant 125 : index
    %c0_149 = arith.constant 0 : index
    %370 = vector.load %arg26[%c125, %c0_149] : memref<336x32xf32, #tpu.memory_space<vmem>>, vector<176x32xf32>
    %371 = vector.extract_strided_slice %175 {offsets = [35, 0], sizes = [1, 32], strides = [1, 1]} : vector<49x32xf32> to vector<1x32xf32>
    %372 = vector.broadcast %371 : vector<1x32xf32> to vector<176x32xf32>
    %373 = arith.mulf %370, %372 : vector<176x32xf32>
    %374 = arith.addf %369, %373 : vector<176x32xf32>
    %c126 = arith.constant 126 : index
    %c0_150 = arith.constant 0 : index
    %375 = vector.load %arg26[%c126, %c0_150] : memref<336x32xf32, #tpu.memory_space<vmem>>, vector<176x32xf32>
    %376 = vector.extract_strided_slice %175 {offsets = [36, 0], sizes = [1, 32], strides = [1, 1]} : vector<49x32xf32> to vector<1x32xf32>
    %377 = vector.broadcast %376 : vector<1x32xf32> to vector<176x32xf32>
    %378 = arith.mulf %375, %377 : vector<176x32xf32>
    %379 = arith.addf %374, %378 : vector<176x32xf32>
    %c127 = arith.constant 127 : index
    %c0_151 = arith.constant 0 : index
    %380 = vector.load %arg26[%c127, %c0_151] : memref<336x32xf32, #tpu.memory_space<vmem>>, vector<176x32xf32>
    %381 = vector.extract_strided_slice %175 {offsets = [37, 0], sizes = [1, 32], strides = [1, 1]} : vector<49x32xf32> to vector<1x32xf32>
    %382 = vector.broadcast %381 : vector<1x32xf32> to vector<176x32xf32>
    %383 = arith.mulf %380, %382 : vector<176x32xf32>
    %384 = arith.addf %379, %383 : vector<176x32xf32>
    %c128_152 = arith.constant 128 : index
    %c0_153 = arith.constant 0 : index
    %385 = vector.load %arg26[%c128_152, %c0_153] : memref<336x32xf32, #tpu.memory_space<vmem>>, vector<176x32xf32>
    %386 = vector.extract_strided_slice %175 {offsets = [38, 0], sizes = [1, 32], strides = [1, 1]} : vector<49x32xf32> to vector<1x32xf32>
    %387 = vector.broadcast %386 : vector<1x32xf32> to vector<176x32xf32>
    %388 = arith.mulf %385, %387 : vector<176x32xf32>
    %389 = arith.addf %384, %388 : vector<176x32xf32>
    %c129 = arith.constant 129 : index
    %c0_154 = arith.constant 0 : index
    %390 = vector.load %arg26[%c129, %c0_154] : memref<336x32xf32, #tpu.memory_space<vmem>>, vector<176x32xf32>
    %391 = vector.extract_strided_slice %175 {offsets = [39, 0], sizes = [1, 32], strides = [1, 1]} : vector<49x32xf32> to vector<1x32xf32>
    %392 = vector.broadcast %391 : vector<1x32xf32> to vector<176x32xf32>
    %393 = arith.mulf %390, %392 : vector<176x32xf32>
    %394 = arith.addf %389, %393 : vector<176x32xf32>
    %c130 = arith.constant 130 : index
    %c0_155 = arith.constant 0 : index
    %395 = vector.load %arg26[%c130, %c0_155] : memref<336x32xf32, #tpu.memory_space<vmem>>, vector<176x32xf32>
    %396 = vector.extract_strided_slice %175 {offsets = [40, 0], sizes = [1, 32], strides = [1, 1]} : vector<49x32xf32> to vector<1x32xf32>
    %397 = vector.broadcast %396 : vector<1x32xf32> to vector<176x32xf32>
    %398 = arith.mulf %395, %397 : vector<176x32xf32>
    %399 = arith.addf %394, %398 : vector<176x32xf32>
    %c131 = arith.constant 131 : index
    %c0_156 = arith.constant 0 : index
    %400 = vector.load %arg26[%c131, %c0_156] : memref<336x32xf32, #tpu.memory_space<vmem>>, vector<176x32xf32>
    %401 = vector.extract_strided_slice %175 {offsets = [41, 0], sizes = [1, 32], strides = [1, 1]} : vector<49x32xf32> to vector<1x32xf32>
    %402 = vector.broadcast %401 : vector<1x32xf32> to vector<176x32xf32>
    %403 = arith.mulf %400, %402 : vector<176x32xf32>
    %404 = arith.addf %399, %403 : vector<176x32xf32>
    %c149 = arith.constant 149 : index
    %c0_157 = arith.constant 0 : index
    %405 = vector.load %arg26[%c149, %c0_157] : memref<336x32xf32, #tpu.memory_space<vmem>>, vector<176x32xf32>
    %406 = vector.extract_strided_slice %175 {offsets = [42, 0], sizes = [1, 32], strides = [1, 1]} : vector<49x32xf32> to vector<1x32xf32>
    %407 = vector.broadcast %406 : vector<1x32xf32> to vector<176x32xf32>
    %408 = arith.mulf %405, %407 : vector<176x32xf32>
    %409 = arith.addf %404, %408 : vector<176x32xf32>
    %c150 = arith.constant 150 : index
    %c0_158 = arith.constant 0 : index
    %410 = vector.load %arg26[%c150, %c0_158] : memref<336x32xf32, #tpu.memory_space<vmem>>, vector<176x32xf32>
    %411 = vector.extract_strided_slice %175 {offsets = [43, 0], sizes = [1, 32], strides = [1, 1]} : vector<49x32xf32> to vector<1x32xf32>
    %412 = vector.broadcast %411 : vector<1x32xf32> to vector<176x32xf32>
    %413 = arith.mulf %410, %412 : vector<176x32xf32>
    %414 = arith.addf %409, %413 : vector<176x32xf32>
    %c151 = arith.constant 151 : index
    %c0_159 = arith.constant 0 : index
    %415 = vector.load %arg26[%c151, %c0_159] : memref<336x32xf32, #tpu.memory_space<vmem>>, vector<176x32xf32>
    %416 = vector.extract_strided_slice %175 {offsets = [44, 0], sizes = [1, 32], strides = [1, 1]} : vector<49x32xf32> to vector<1x32xf32>
    %417 = vector.broadcast %416 : vector<1x32xf32> to vector<176x32xf32>
    %418 = arith.mulf %415, %417 : vector<176x32xf32>
    %419 = arith.addf %414, %418 : vector<176x32xf32>
    %c152_160 = arith.constant 152 : index
    %c0_161 = arith.constant 0 : index
    %420 = vector.load %arg26[%c152_160, %c0_161] : memref<336x32xf32, #tpu.memory_space<vmem>>, vector<176x32xf32>
    %421 = vector.extract_strided_slice %175 {offsets = [45, 0], sizes = [1, 32], strides = [1, 1]} : vector<49x32xf32> to vector<1x32xf32>
    %422 = vector.broadcast %421 : vector<1x32xf32> to vector<176x32xf32>
    %423 = arith.mulf %420, %422 : vector<176x32xf32>
    %424 = arith.addf %419, %423 : vector<176x32xf32>
    %c153 = arith.constant 153 : index
    %c0_162 = arith.constant 0 : index
    %425 = vector.load %arg26[%c153, %c0_162] : memref<336x32xf32, #tpu.memory_space<vmem>>, vector<176x32xf32>
    %426 = vector.extract_strided_slice %175 {offsets = [46, 0], sizes = [1, 32], strides = [1, 1]} : vector<49x32xf32> to vector<1x32xf32>
    %427 = vector.broadcast %426 : vector<1x32xf32> to vector<176x32xf32>
    %428 = arith.mulf %425, %427 : vector<176x32xf32>
    %429 = arith.addf %424, %428 : vector<176x32xf32>
    %c154 = arith.constant 154 : index
    %c0_163 = arith.constant 0 : index
    %430 = vector.load %arg26[%c154, %c0_163] : memref<336x32xf32, #tpu.memory_space<vmem>>, vector<176x32xf32>
    %431 = vector.extract_strided_slice %175 {offsets = [47, 0], sizes = [1, 32], strides = [1, 1]} : vector<49x32xf32> to vector<1x32xf32>
    %432 = vector.broadcast %431 : vector<1x32xf32> to vector<176x32xf32>
    %433 = arith.mulf %430, %432 : vector<176x32xf32>
    %434 = arith.addf %429, %433 : vector<176x32xf32>
    %c155 = arith.constant 155 : index
    %c0_164 = arith.constant 0 : index
    %435 = vector.load %arg26[%c155, %c0_164] : memref<336x32xf32, #tpu.memory_space<vmem>>, vector<176x32xf32>
    %436 = vector.extract_strided_slice %175 {offsets = [48, 0], sizes = [1, 32], strides = [1, 1]} : vector<49x32xf32> to vector<1x32xf32>
    %437 = vector.broadcast %436 : vector<1x32xf32> to vector<176x32xf32>
    %438 = arith.mulf %435, %437 : vector<176x32xf32>
    %439 = arith.addf %434, %438 : vector<176x32xf32>
    %440 = vector.extract_strided_slice %439 {offsets = [0, 0], sizes = [8, 32], strides = [1, 1]} : vector<176x32xf32> to vector<8x32xf32>
    %441 = vector.broadcast %177 : vector<1x32xf32> to vector<8x32xf32>
    %442 = arith.addf %440, %441 : vector<8x32xf32>
    %c0_165 = arith.constant 0 : index
    %c0_166 = arith.constant 0 : index
    %443 = vector.load %arg27[%c0_165, %c0_166] : memref<64x32xf32, #tpu.memory_space<vmem>>, vector<8x32xf32>
    tpu.vector_store %arg27[%c0_165, %c0_166], %442 {strides = array<i32>} : memref<64x32xf32, #tpu.memory_space<vmem>>, vector<8x32xf32>,
    %444 = vector.extract_strided_slice %439 {offsets = [24, 0], sizes = [8, 32], strides = [1, 1]} : vector<176x32xf32> to vector<8x32xf32>
    %445 = vector.broadcast %177 : vector<1x32xf32> to vector<8x32xf32>
    %446 = arith.addf %444, %445 : vector<8x32xf32>
    %c8_167 = arith.constant 8 : index
    %c0_168 = arith.constant 0 : index
    %447 = vector.load %arg27[%c8_167, %c0_168] : memref<64x32xf32, #tpu.memory_space<vmem>>, vector<8x32xf32>
    tpu.vector_store %arg27[%c8_167, %c0_168], %446 {strides = array<i32>} : memref<64x32xf32, #tpu.memory_space<vmem>>, vector<8x32xf32>,
    %448 = vector.extract_strided_slice %439 {offsets = [48, 0], sizes = [8, 32], strides = [1, 1]} : vector<176x32xf32> to vector<8x32xf32>
    %449 = vector.broadcast %177 : vector<1x32xf32> to vector<8x32xf32>
    %450 = arith.addf %448, %449 : vector<8x32xf32>
    %c16_169 = arith.constant 16 : index
    %c0_170 = arith.constant 0 : index
    %451 = vector.load %arg27[%c16_169, %c0_170] : memref<64x32xf32, #tpu.memory_space<vmem>>, vector<8x32xf32>
    tpu.vector_store %arg27[%c16_169, %c0_170], %450 {strides = array<i32>} : memref<64x32xf32, #tpu.memory_space<vmem>>, vector<8x32xf32>,
    %452 = vector.extract_strided_slice %439 {offsets = [72, 0], sizes = [8, 32], strides = [1, 1]} : vector<176x32xf32> to vector<8x32xf32>
    %453 = vector.broadcast %177 : vector<1x32xf32> to vector<8x32xf32>
    %454 = arith.addf %452, %453 : vector<8x32xf32>
    %c24_171 = arith.constant 24 : index
    %c0_172 = arith.constant 0 : index
    %455 = vector.load %arg27[%c24_171, %c0_172] : memref<64x32xf32, #tpu.memory_space<vmem>>, vector<8x32xf32>
    tpu.vector_store %arg27[%c24_171, %c0_172], %454 {strides = array<i32>} : memref<64x32xf32, #tpu.memory_space<vmem>>, vector<8x32xf32>,
    %456 = vector.extract_strided_slice %439 {offsets = [96, 0], sizes = [8, 32], strides = [1, 1]} : vector<176x32xf32> to vector<8x32xf32>
    %457 = vector.broadcast %177 : vector<1x32xf32> to vector<8x32xf32>
    %458 = arith.addf %456, %457 : vector<8x32xf32>
    %c32_173 = arith.constant 32 : index
    %c0_174 = arith.constant 0 : index
    %459 = vector.load %arg27[%c32_173, %c0_174] : memref<64x32xf32, #tpu.memory_space<vmem>>, vector<8x32xf32>
    tpu.vector_store %arg27[%c32_173, %c0_174], %458 {strides = array<i32>} : memref<64x32xf32, #tpu.memory_space<vmem>>, vector<8x32xf32>,
    %460 = vector.extract_strided_slice %439 {offsets = [120, 0], sizes = [8, 32], strides = [1, 1]} : vector<176x32xf32> to vector<8x32xf32>
    %461 = vector.broadcast %177 : vector<1x32xf32> to vector<8x32xf32>
    %462 = arith.addf %460, %461 : vector<8x32xf32>
    %c40_175 = arith.constant 40 : index
    %c0_176 = arith.constant 0 : index
    %463 = vector.load %arg27[%c40_175, %c0_176] : memref<64x32xf32, #tpu.memory_space<vmem>>, vector<8x32xf32>
    tpu.vector_store %arg27[%c40_175, %c0_176], %462 {strides = array<i32>} : memref<64x32xf32, #tpu.memory_space<vmem>>, vector<8x32xf32>,
    %464 = vector.extract_strided_slice %439 {offsets = [144, 0], sizes = [8, 32], strides = [1, 1]} : vector<176x32xf32> to vector<8x32xf32>
    %465 = vector.broadcast %177 : vector<1x32xf32> to vector<8x32xf32>
    %466 = arith.addf %464, %465 : vector<8x32xf32>
    %c48_177 = arith.constant 48 : index
    %c0_178 = arith.constant 0 : index
    %467 = vector.load %arg27[%c48_177, %c0_178] : memref<64x32xf32, #tpu.memory_space<vmem>>, vector<8x32xf32>
    tpu.vector_store %arg27[%c48_177, %c0_178], %466 {strides = array<i32>} : memref<64x32xf32, #tpu.memory_space<vmem>>, vector<8x32xf32>,
    %468 = vector.extract_strided_slice %439 {offsets = [168, 0], sizes = [8, 32], strides = [1, 1]} : vector<176x32xf32> to vector<8x32xf32>
    %469 = vector.broadcast %177 : vector<1x32xf32> to vector<8x32xf32>
    %470 = arith.addf %468, %469 : vector<8x32xf32>
    %c56_179 = arith.constant 56 : index
    %c0_180 = arith.constant 0 : index
    %471 = vector.load %arg27[%c56_179, %c0_180] : memref<64x32xf32, #tpu.memory_space<vmem>>, vector<8x32xf32>
    tpu.vector_store %arg27[%c56_179, %c0_180], %470 {strides = array<i32>} : memref<64x32xf32, #tpu.memory_space<vmem>>, vector<8x32xf32>,
    %c0_181 = arith.constant 0 : index
    %c0_182 = arith.constant 0 : index
    %472 = vector.load %arg27[%c0_181, %c0_182] : memref<64x32xf32, #tpu.memory_space<vmem>>, vector<64x32xf32>
    %473 = arith.mulf %136, %472 : vector<64x32xf32>
    %474 = arith.addf %172, %473 : vector<64x32xf32>
    %c0_183 = arith.constant 0 : index
    %c0_184 = arith.constant 0 : index
    %c0_185 = arith.constant 0 : index
    %475 = vector.load %arg17[%c0_183, %c0_184, %c0_185] : memref<1x32x32xbf16, #tpu.memory_space<vmem>>, vector<1x32x32xbf16>
    %476 = vector.shape_cast %475 : vector<1x32x32xbf16> to vector<32x32xbf16>
    %477 = arith.truncf %474 : vector<64x32xf32> to vector<64x32xbf16>
    %cst_186 = arith.constant dense<0.000000e+00> : vector<64x32xf32>
    %478 = tpu.matmul %477, %476, %cst_186 {dimension_numbers = #tpu.dot_dimension_numbers<[1], [0], [0], [1], [0, 0, 1, 1], [], []>} : vector<64x32xbf16>, vector<32x32xbf16>, vector<64x32xf32> -> vector<64x32xf32>
    %c0_187 = arith.constant 0 : index
    %c0_188 = arith.constant 0 : index
    %c0_189 = arith.constant 0 : index
    %479 = vector.load %arg18[%c0_187, %c0_188, %c0_189] : memref<1x1x32xf32, #tpu.memory_space<vmem>>, vector<1x1x32xf32>
    %480 = vector.shape_cast %479 : vector<1x1x32xf32> to vector<1x32xf32>
    %481 = vector.broadcast %480 : vector<1x32xf32> to vector<64x32xf32>
    %482 = arith.addf %478, %481 : vector<64x32xf32>
    %483 = arith.addf %104, %482 : vector<64x32xf32>
    %c0_190 = arith.constant 0 : index
    %c0_191 = arith.constant 0 : index
    %c0_192 = arith.constant 0 : index
    %484 = vector.load %arg19[%c0_190, %c0_191, %c0_192] : memref<1x1x32xf32, #tpu.memory_space<vmem>>, vector<1x1x32xf32>
    %485 = vector.shape_cast %484 : vector<1x1x32xf32> to vector<1x32xf32>
    %c0_193 = arith.constant 0 : index
    %c0_194 = arith.constant 0 : index
    %c0_195 = arith.constant 0 : index
    %486 = vector.load %arg20[%c0_193, %c0_194, %c0_195] : memref<1x1x32xf32, #tpu.memory_space<vmem>>, vector<1x1x32xf32>
    %487 = vector.shape_cast %486 : vector<1x1x32xf32> to vector<1x32xf32>
    %cst_196 = arith.constant dense<0.000000e+00> : vector<64xf32>
    %488 = vector.multi_reduction <add>, %483, %cst_196 [1] : vector<64x32xf32> to vector<64xf32>
    %489 = vector.shape_cast %488 : vector<64xf32> to vector<64x1xf32>
    %cst_197 = arith.constant 3.200000e+01 : f32
    %490 = vector.broadcast %cst_197 : f32 to vector<64x1xf32>
    %491 = arith.divf %489, %490 : vector<64x1xf32>
    %492 = vector.broadcast %491 : vector<64x1xf32> to vector<64x32xf32>
    %493 = arith.subf %483, %492 : vector<64x32xf32>
    %494 = arith.mulf %493, %493 : vector<64x32xf32>
    %cst_198 = arith.constant dense<0.000000e+00> : vector<64xf32>
    %495 = vector.multi_reduction <add>, %494, %cst_198 [1] : vector<64x32xf32> to vector<64xf32>
    %496 = vector.shape_cast %495 : vector<64xf32> to vector<64x1xf32>
    %cst_199 = arith.constant 3.200000e+01 : f32
    %497 = vector.broadcast %cst_199 : f32 to vector<64x1xf32>
    %498 = arith.divf %496, %497 : vector<64x1xf32>
    %cst_200 = arith.constant 9.99999974E-6 : f32
    %499 = vector.broadcast %cst_200 : f32 to vector<64x1xf32>
    %500 = arith.addf %498, %499 : vector<64x1xf32>
    %501 = math.rsqrt %500 : vector<64x1xf32>
    %502 = vector.broadcast %501 : vector<64x1xf32> to vector<64x32xf32>
    %503 = arith.mulf %493, %502 : vector<64x32xf32>
    %504 = vector.broadcast %485 : vector<1x32xf32> to vector<64x32xf32>
    %505 = arith.mulf %503, %504 : vector<64x32xf32>
    %506 = vector.broadcast %487 : vector<1x32xf32> to vector<64x32xf32>
    %507 = arith.addf %505, %506 : vector<64x32xf32>
    %c0_201 = arith.constant 0 : index
    %c0_202 = arith.constant 0 : index
    %c0_203 = arith.constant 0 : index
    %508 = vector.load %arg21[%c0_201, %c0_202, %c0_203] : memref<1x32x128xbf16, #tpu.memory_space<vmem>>, vector<1x32x128xbf16>
    %509 = vector.shape_cast %508 : vector<1x32x128xbf16> to vector<32x128xbf16>
    %510 = arith.truncf %507 : vector<64x32xf32> to vector<64x32xbf16>
    %cst_204 = arith.constant dense<0.000000e+00> : vector<64x128xf32>
    %511 = tpu.matmul %510, %509, %cst_204 {dimension_numbers = #tpu.dot_dimension_numbers<[1], [0], [0], [1], [0, 0, 1, 1], [], []>} : vector<64x32xbf16>, vector<32x128xbf16>, vector<64x128xf32> -> vector<64x128xf32>
    %c0_205 = arith.constant 0 : index
    %c0_206 = arith.constant 0 : index
    %c0_207 = arith.constant 0 : index
    %512 = vector.load %arg22[%c0_205, %c0_206, %c0_207] : memref<1x1x128xf32, #tpu.memory_space<vmem>>, vector<1x1x128xf32>
    %513 = vector.shape_cast %512 : vector<1x1x128xf32> to vector<1x128xf32>
    %514 = vector.broadcast %513 : vector<1x128xf32> to vector<64x128xf32>
    %515 = arith.addf %511, %514 : vector<64x128xf32>
    %cst_208 = arith.constant 5.000000e-01 : f32
    %516 = vector.broadcast %cst_208 : f32 to vector<64x128xf32>
    %517 = arith.mulf %516, %515 : vector<64x128xf32>
    %cst_209 = arith.constant 4.471500e-02 : f32
    %518 = vector.broadcast %cst_209 : f32 to vector<64x128xf32>
    %519 = arith.mulf %518, %515 : vector<64x128xf32>
    %520 = arith.mulf %519, %515 : vector<64x128xf32>
    %521 = arith.mulf %520, %515 : vector<64x128xf32>
    %522 = arith.addf %515, %521 : vector<64x128xf32>
    %cst_210 = arith.constant 0.797884583 : f32
    %523 = vector.broadcast %cst_210 : f32 to vector<64x128xf32>
    %524 = arith.mulf %523, %522 : vector<64x128xf32>
    %525 = math.tanh %524 : vector<64x128xf32>
    %cst_211 = arith.constant 1.000000e+00 : f32
    %526 = vector.broadcast %cst_211 : f32 to vector<64x128xf32>
    %527 = arith.addf %526, %525 : vector<64x128xf32>
    %528 = arith.mulf %517, %527 : vector<64x128xf32>
    %c0_212 = arith.constant 0 : index
    %c0_213 = arith.constant 0 : index
    %c0_214 = arith.constant 0 : index
    %529 = vector.load %arg23[%c0_212, %c0_213, %c0_214] : memref<1x128x32xbf16, #tpu.memory_space<vmem>>, vector<1x128x32xbf16>
    %530 = vector.shape_cast %529 : vector<1x128x32xbf16> to vector<128x32xbf16>
    %531 = arith.truncf %528 : vector<64x128xf32> to vector<64x128xbf16>
    %cst_215 = arith.constant dense<0.000000e+00> : vector<64x32xf32>
    %532 = tpu.matmul %531, %530, %cst_215 {dimension_numbers = #tpu.dot_dimension_numbers<[1], [0], [0], [1], [0, 0, 1, 1], [], []>} : vector<64x128xbf16>, vector<128x32xbf16>, vector<64x32xf32> -> vector<64x32xf32>
    %c0_216 = arith.constant 0 : index
    %c0_217 = arith.constant 0 : index
    %c0_218 = arith.constant 0 : index
    %533 = vector.load %arg24[%c0_216, %c0_217, %c0_218] : memref<1x1x32xf32, #tpu.memory_space<vmem>>, vector<1x1x32xf32>
    %534 = vector.shape_cast %533 : vector<1x1x32xf32> to vector<1x32xf32>
    %535 = vector.broadcast %534 : vector<1x32xf32> to vector<64x32xf32>
    %536 = arith.addf %532, %535 : vector<64x32xf32>
    %537 = arith.addf %483, %536 : vector<64x32xf32>
    %c0_219 = arith.constant 0 : index
    %c0_220 = arith.constant 0 : index
    %c0_221 = arith.constant 0 : index
    %538 = vector.load %arg25[%c0_219, %c0_220, %c0_221] : memref<1x64x32xf32, #tpu.memory_space<vmem>>, vector<1x64x32xf32>
    %539 = vector.shape_cast %538 : vector<1x64x32xf32> to vector<64x32xf32>
    %540 = vector.shape_cast %537 : vector<64x32xf32> to vector<1x64x32xf32>
    tpu.vector_store %arg25[%c0_219, %c0_220, %c0_221], %540 {strides = array<i32>} : memref<1x64x32xf32, #tpu.memory_space<vmem>>, vector<1x64x32xf32>,
    return
  }
  func.func @transform_0(%arg0: i32, %arg1: i32) -> (i32, i32, i32) {
    %c0_i32 = arith.constant 0 : i32
    %c0_i32_0 = arith.constant 0 : i32
    %c0_i32_1 = arith.constant 0 : i32
    return %arg0, %c0_i32, %c0_i32_0 : i32, i32, i32
  }
  func.func @transform_1(%arg0: i32, %arg1: i32) -> (i32, i32, i32, i32) {
    %c0_i32 = arith.constant 0 : i32
    %c0_i32_0 = arith.constant 0 : i32
    %c0_i32_1 = arith.constant 0 : i32
    return %arg1, %arg0, %c0_i32, %c0_i32_0 : i32, i32, i32, i32
  }
  func.func @transform_2(%arg0: i32, %arg1: i32) -> (i32, i32) {
    %c0_i32 = arith.constant 0 : i32
    %c0_i32_0 = arith.constant 0 : i32
    %c0_i32_1 = arith.constant 0 : i32
    return %c0_i32, %c0_i32_0 : i32, i32
  }
  func.func @transform_3(%arg0: i32, %arg1: i32) -> (i32, i32) {
    %c0_i32 = arith.constant 0 : i32
    %c0_i32_0 = arith.constant 0 : i32
    %c0_i32_1 = arith.constant 0 : i32
    return %c0_i32, %c0_i32_0 : i32, i32
  }
  func.func @transform_4(%arg0: i32, %arg1: i32) -> (i32, i32) {
    %c0_i32 = arith.constant 0 : i32
    %c0_i32_0 = arith.constant 0 : i32
    %c0_i32_1 = arith.constant 0 : i32
    return %c0_i32, %c0_i32_0 : i32, i32
  }
  func.func @transform_5(%arg0: i32, %arg1: i32) -> (i32, i32) {
    %c0_i32 = arith.constant 0 : i32
    %c0_i32_0 = arith.constant 0 : i32
    %c0_i32_1 = arith.constant 0 : i32
    return %c0_i32, %c0_i32_0 : i32, i32
  }
  func.func @transform_6(%arg0: i32, %arg1: i32) -> (i32, i32) {
    %c0_i32 = arith.constant 0 : i32
    %c0_i32_0 = arith.constant 0 : i32
    %c0_i32_1 = arith.constant 0 : i32
    return %c0_i32, %c0_i32_0 : i32, i32
  }
  func.func @transform_7(%arg0: i32, %arg1: i32) -> (i32, i32, i32) {
    %c0_i32 = arith.constant 0 : i32
    %c0_i32_0 = arith.constant 0 : i32
    %c0_i32_1 = arith.constant 0 : i32
    return %arg1, %c0_i32, %c0_i32_0 : i32, i32, i32
  }
  func.func @transform_8(%arg0: i32, %arg1: i32) -> (i32, i32, i32) {
    %c0_i32 = arith.constant 0 : i32
    %c0_i32_0 = arith.constant 0 : i32
    %c0_i32_1 = arith.constant 0 : i32
    return %arg1, %c0_i32, %c0_i32_0 : i32, i32, i32
  }
  func.func @transform_9(%arg0: i32, %arg1: i32) -> (i32, i32, i32) {
    %c0_i32 = arith.constant 0 : i32
    %c0_i32_0 = arith.constant 0 : i32
    %c0_i32_1 = arith.constant 0 : i32
    return %arg1, %c0_i32, %c0_i32_0 : i32, i32, i32
  }
  func.func @transform_10(%arg0: i32, %arg1: i32) -> (i32, i32, i32) {
    %c0_i32 = arith.constant 0 : i32
    %c0_i32_0 = arith.constant 0 : i32
    %c0_i32_1 = arith.constant 0 : i32
    return %arg1, %c0_i32, %c0_i32_0 : i32, i32, i32
  }
  func.func @transform_11(%arg0: i32, %arg1: i32) -> (i32, i32, i32) {
    %c0_i32 = arith.constant 0 : i32
    %c0_i32_0 = arith.constant 0 : i32
    %c0_i32_1 = arith.constant 0 : i32
    return %arg1, %c0_i32, %c0_i32_0 : i32, i32, i32
  }
  func.func @transform_12(%arg0: i32, %arg1: i32) -> (i32, i32, i32) {
    %c0_i32 = arith.constant 0 : i32
    %c0_i32_0 = arith.constant 0 : i32
    %c0_i32_1 = arith.constant 0 : i32
    return %arg1, %c0_i32, %c0_i32_0 : i32, i32, i32
  }
  func.func @transform_13(%arg0: i32, %arg1: i32) -> (i32, i32, i32) {
    %c0_i32 = arith.constant 0 : i32
    %c0_i32_0 = arith.constant 0 : i32
    %c0_i32_1 = arith.constant 0 : i32
    return %arg1, %c0_i32, %c0_i32_0 : i32, i32, i32
  }
  func.func @transform_14(%arg0: i32, %arg1: i32) -> (i32, i32, i32) {
    %c0_i32 = arith.constant 0 : i32
    %c0_i32_0 = arith.constant 0 : i32
    %c0_i32_1 = arith.constant 0 : i32
    return %arg1, %c0_i32, %c0_i32_0 : i32, i32, i32
  }
  func.func @transform_15(%arg0: i32, %arg1: i32) -> (i32, i32, i32) {
    %c0_i32 = arith.constant 0 : i32
    %c0_i32_0 = arith.constant 0 : i32
    %c0_i32_1 = arith.constant 0 : i32
    return %arg1, %c0_i32, %c0_i32_0 : i32, i32, i32
  }
  func.func @transform_16(%arg0: i32, %arg1: i32) -> (i32, i32, i32) {
    %c0_i32 = arith.constant 0 : i32
    %c0_i32_0 = arith.constant 0 : i32
    %c0_i32_1 = arith.constant 0 : i32
    return %arg1, %c0_i32, %c0_i32_0 : i32, i32, i32
  }
  func.func @transform_17(%arg0: i32, %arg1: i32) -> (i32, i32, i32) {
    %c0_i32 = arith.constant 0 : i32
    %c0_i32_0 = arith.constant 0 : i32
    %c0_i32_1 = arith.constant 0 : i32
    return %arg1, %c0_i32, %c0_i32_0 : i32, i32, i32
  }
  func.func @transform_18(%arg0: i32, %arg1: i32) -> (i32, i32, i32) {
    %c0_i32 = arith.constant 0 : i32
    %c0_i32_0 = arith.constant 0 : i32
    %c0_i32_1 = arith.constant 0 : i32
    return %arg1, %c0_i32, %c0_i32_0 : i32, i32, i32
  }
  func.func @transform_19(%arg0: i32, %arg1: i32) -> (i32, i32, i32) {
    %c0_i32 = arith.constant 0 : i32
    %c0_i32_0 = arith.constant 0 : i32
    %c0_i32_1 = arith.constant 0 : i32
    return %arg1, %c0_i32, %c0_i32_0 : i32, i32, i32
  }
  func.func @transform_20(%arg0: i32, %arg1: i32) -> (i32, i32, i32) {
    %c0_i32 = arith.constant 0 : i32
    %c0_i32_0 = arith.constant 0 : i32
    %c0_i32_1 = arith.constant 0 : i32
    return %arg1, %c0_i32, %c0_i32_0 : i32, i32, i32
  }
  func.func @transform_21(%arg0: i32, %arg1: i32) -> (i32, i32, i32) {
    %c0_i32 = arith.constant 0 : i32
    %c0_i32_0 = arith.constant 0 : i32
    %c0_i32_1 = arith.constant 0 : i32
    return %arg1, %c0_i32, %c0_i32_0 : i32, i32, i32
  }
  func.func @transform_22(%arg0: i32, %arg1: i32) -> (i32, i32, i32) {
    %c0_i32 = arith.constant 0 : i32
    %c0_i32_0 = arith.constant 0 : i32
    %c0_i32_1 = arith.constant 0 : i32
    return %arg1, %c0_i32, %c0_i32_0 : i32, i32, i32
  }
  func.func @transform_23(%arg0: i32, %arg1: i32) -> (i32, i32, i32) {
    %c0_i32 = arith.constant 0 : i32
    %c0_i32_0 = arith.constant 0 : i32
    %c0_i32_1 = arith.constant 0 : i32
    return %arg0, %c0_i32, %c0_i32_0 : i32, i32, i32
  }
}

</mosaic_0001>

<llo_original>
// kernel: tpu_custom_call.1
$region0: #{tpu_custom_call.1}
  #allocation0 [shape = 'u32[]', space=smem, size = 0x4, offset = 0x4, fixed_abs, tag = 'smem constant byte address 0x4 - core index']
  #allocation1 [shape = 'u32[72,128]{1,0:T(1,128)}', space=vmem, size = 0x9000, scoped, tag = 'internal scratch']
  %s0 = inlined_call_operand.hbm [shape: f32[8,128], index: 0, kind: input, shape index: {}]
  %s1 = inlined_call_operand.hbm [shape: f32[8,128], index: 1, kind: output, shape index: {}]
  %s2 = sld [smem:[#allocation0]]
  $region18: #{tpu_custom_call.1} parent=0
    _
  %s4 = ssub.s32 1, %s2
  %s5 = scalar_select 0, %s4, %s2
  $region1: #{tpu_custom_call.1} parent=0
    #allocation2 [shape = 'u8[4096]{0}', space=vmem, size = 0x1000, scoped, tag = 'input window, operand 0, single buffered']
    #allocation3 [shape = 's32[1]{0}', space=sflag, size = 0x4, scoped, tag = 'scoped memory for tpu_custom_call.1']
    #allocation4 [shape = 's32[1]{0}', space=sflag, size = 0x4, scoped, tag = 'scoped memory for tpu_custom_call.1']
    #allocation5 [shape = 'u8[4096]{0}', space=vmem, size = 0x1000, scoped, tag = 'output window, operand 0, single buffered']
    %6 = vsyncpa [#allocation3], 0
    %7 = vsyncpa [#allocation4], 0
    // Predicated region
    $region2: #{tpu_custom_call.1} parent=1 // pred_check
      _
    $region3: #{tpu_custom_call.1} parent=1 // pred_check_branch
      %9 = sbr.rel (0) target = $region5
    $region4: #{tpu_custom_call.1} parent=1 // pred_region
      %11 = vsyncadd [#allocation3], 0
      %s13 = sshll.u32 %s0, 4
      %s14 = int_to_ptr.hbm [resolvable:$true] %s13
      %s15 = sshll.u32 [#allocation2], 4
      %s16 = int_to_ptr.vmem [resolvable:$true] %s15
      %18 = dma.hbm_to_vmem [thread:$0]  %s14, 128, %s16, [#allocation3]
    $region5: #{tpu_custom_call.1} parent=1 // pred_fallthru
      _
    // Predicated region
    $region6: #{tpu_custom_call.1} parent=1 // pred_check
      _
    $region7: #{tpu_custom_call.1} parent=1 // pred_check_branch
      %20 = sbr.rel (0) target = $region9
    $region8: #{tpu_custom_call.1} parent=1 // pred_region
      %22 = dma.done [#allocation3], 128
    $region9: #{tpu_custom_call.1} parent=1 // pred_fallthru
      _
    %v23 = vld [vmem:[#allocation2] sm:$0xff]
    %v24 = vmul.f32 %v23, %v23
    %v25 = vmin.f32 16.0, %v24
    %v26 = vmul.f32 %v25, 2.1237322e-06
    %v27 = vadd.f32 %v26, 0.00028619796
    %v28 = vmul.f32 %v25, %v27
    %v29 = vadd.f32 %v28, 0.0036580483
    %v30 = vmul.f32 %v25, %v29
    %v31 = vadd.f32 %v30, 0.05243302
    %v32 = vmul.f32 %v25, %v31
    %v33 = vadd.f32 %v32, 0.18741608
    %v34 = vmul.f32 %v25, %v33
    %v35 = vadd.f32 %v34, 1.1283791
    %v36 = vmul.f32 %v23, %v35
    %v37 = vmul.f32 %v25, 3.8918573e-05
    %v38 = vadd.f32 %v37, 0.001143296
    %v39 = vmul.f32 %v25, %v38
    %v40 = vadd.f32 %v39, 0.014752088
    %v41 = vmul.f32 %v25, %v40
    %v42 = vadd.f32 %v41, 0.112945676
    %v43 = vmul.f32 %v25, %v42
    %v44 = vadd.f32 %v43, 0.4994258
    %v45 = vmul.f32 %v25, %v44
    %v46 = vadd.f32 %v45, 1.0
    %v47 = vrcp.pop %v46
    %v48 = vmul.f32 %v46, %v47
    %v49 = vsub.f32 1.0, %v48
    %v50 = vmul.f32 %v47, %v49
    %v51 = vadd.f32 %v47, %v50
    %vm52 = vweird.f32 %v46
    %vm53 = vweird.f32 %v47
    %vm54 = vmor %vm52, %vm53
    %v55 = vsel %vm54, %v47, %v51
    %v56 = vand.u32 2147483647, %v46
    %vm57 = vcmp.eq.f32.partialorder %v56, 8.507059e+37
    %v58 = vand.u32 %v46, 2147483648
    %v59 = vor.u32 1.1754944e-38, %v58
    %v60 = vsel %vm57, %v59, %v55
    %v61 = vmul.f32 %v36, %v60
    %v62 = vmin.f32 %v61, 1.0
    %v63 = vmax.f32 %v62, -1.0
    %64 = vst [vmem:[#allocation5] sm:$0xff] %v63
    // Predicated region
    $region10: #{tpu_custom_call.1} parent=1 // pred_check
      _
    $region11: #{tpu_custom_call.1} parent=1 // pred_check_branch
      %66 = sbr.rel (0) target = $region13
    $region12: #{tpu_custom_call.1} parent=1 // pred_region
      %68 = vsyncadd [#allocation4], 0
      %s70 = sshll.u32 [#allocation5], 4
      %s71 = int_to_ptr.vmem [resolvable:$true] %s70
      %s72 = sshll.u32 %s1, 4
      %s73 = int_to_ptr.hbm [resolvable:$true] %s72
      %75 = dma.vmem_to_hbm [thread:$0]  %s71, 128, %s73, [#allocation4]
    $region13: #{tpu_custom_call.1} parent=1 // pred_fallthru
      _
    // Predicated region
    $region14: #{tpu_custom_call.1} parent=1 // pred_check
      _
    $region15: #{tpu_custom_call.1} parent=1 // pred_check_branch
      %77 = sbr.rel (0) target = $region17
    $region16: #{tpu_custom_call.1} parent=1 // pred_region
      %79 = dma.done [#allocation4], 128
    $region17: #{tpu_custom_call.1} parent=1 // pred_fallthru
      _
    %80 = vsyncpa [#allocation3], 1
    %81 = vsyncpa [#allocation4], 1

// kernel: mhsa_stage_adapt.1
$region0: #{mhsa_stage_adapt.1}
  #allocation0 [shape = 'u32[]', space=smem, size = 0x4, offset = 0x4, fixed_abs, tag = 'smem constant byte address 0x4 - core index']
  #allocation1 [shape = 'u32[72,128]{1,0:T(1,128)}', space=vmem, size = 0x9000, scoped, tag = 'internal scratch']
  #allocation2 [shape = 'f32[336,32]{1,0:T(8,128)}', space=vmem, size = 0x2a000, scoped, tag = 'scratch operand']
  #allocation3 [shape = 'f32[64,32]{1,0:T(8,128)}', space=vmem, size = 0x8000, scoped, tag = 'scratch operand']
  %s0 = inlined_call_operand.vmem [shape: f32[2,64,32], index: 0, kind: input, shape index: {}]
  %s1 = inlined_call_operand.vmem [shape: f32[2,2,1,32], index: 1, kind: input, shape index: {}]
  %s2 = inlined_call_operand.vmem [shape: f32[32,32], index: 2, kind: input, shape index: {}]
  %s3 = inlined_call_operand.vmem [shape: f32[9,32], index: 3, kind: input, shape index: {}]
  %s4 = inlined_call_operand.vmem [shape: f32[1,32], index: 4, kind: input, shape index: {}]
  %s5 = inlined_call_operand.vmem [shape: f32[49,32], index: 5, kind: input, shape index: {}]
  %s6 = inlined_call_operand.vmem [shape: f32[1,32], index: 6, kind: input, shape index: {}]
  %s7 = inlined_call_operand.vmem [shape: f32[2,1,32], index: 7, kind: input, shape index: {}]
  %s8 = inlined_call_operand.vmem [shape: f32[2,1,32], index: 8, kind: input, shape index: {}]
  %s9 = inlined_call_operand.vmem [shape: bf16[2,32,32], index: 9, kind: input, shape index: {}]
  %s10 = inlined_call_operand.vmem [shape: bf16[2,32,32], index: 10, kind: input, shape index: {}]
  %s11 = inlined_call_operand.vmem [shape: bf16[2,32,32], index: 11, kind: input, shape index: {}]
  %s12 = inlined_call_operand.vmem [shape: f32[2,1,32], index: 12, kind: input, shape index: {}]
  %s13 = inlined_call_operand.vmem [shape: f32[2,1,32], index: 13, kind: input, shape index: {}]
  %s14 = inlined_call_operand.vmem [shape: f32[2,1,32], index: 14, kind: input, shape index: {}]
  %s15 = inlined_call_operand.vmem [shape: bf16[2,32,32], index: 15, kind: input, shape index: {}]
  %s16 = inlined_call_operand.vmem [shape: f32[2,1,32], index: 16, kind: input, shape index: {}]
  %s17 = inlined_call_operand.vmem [shape: f32[2,1,32], index: 17, kind: input, shape index: {}]
  %s18 = inlined_call_operand.vmem [shape: f32[2,1,32], index: 18, kind: input, shape index: {}]
  %s19 = inlined_call_operand.vmem [shape: bf16[2,32,128], index: 19, kind: input, shape index: {}]
  %s20 = inlined_call_operand.vmem [shape: f32[2,1,128], index: 20, kind: input, shape index: {}]
  %s21 = inlined_call_operand.vmem [shape: bf16[2,128,32], index: 21, kind: input, shape index: {}]
  %s22 = inlined_call_operand.vmem [shape: f32[2,1,32], index: 22, kind: input, shape index: {}]
  %s23 = inlined_call_operand.vmem [shape: f32[2,64,32], index: 23, kind: output, shape index: {}]
  %s24 = sld [smem:[#allocation0]]
  $region129: #{mhsa_stage_adapt.1} parent=0
    _
  %s26 = ssub.s32 1, %s24
  %s27 = scalar_select 0, %s26, %s24
  loop: start=0, step=1, limit=6
  $region2: #{mhsa_stage_adapt.1} parent=0 // loop_pre_header
    _
  $region3: #{mhsa_stage_adapt.1} parent=0 // loop_header
    %s29 = sphi 0, %s33
    %p30 = scmp.ge.s32.totalorder %s29, 6
    %s36 = sphi 0, %s48
    %s37 = sphi 0, %s44
    %s38 = sphi 0, %s36
    %s39 = sphi 0, %s37
    %s40 = sphi 0, %s38
    %s41 = sphi 0, %s39
    %s51 = sphi 0, %s53
    %s54 = sphi 0, %s51
    %s55 = sphi 0, %s54
    %s71 = sphi 0, %s55
    %s79 = sphi 0, %s81
    %s82 = sphi 0, %s79
    %s83 = sphi 0, %s82
    %s99 = sphi 0, %s83
    %s103 = sphi 0, %s103
    %s105 = sphi 0, %s103
    %s106 = sphi 0, %s105
    %s120 = sphi 0, %s106
    %s124 = sphi 0, %s124
    %s126 = sphi 0, %s124
    %s127 = sphi 0, %s126
    %s141 = sphi 0, %s127
    %s145 = sphi 0, %s145
    %s147 = sphi 0, %s145
    %s148 = sphi 0, %s147
    %s162 = sphi 0, %s148
    %s166 = sphi 0, %s166
    %s168 = sphi 0, %s166
    %s169 = sphi 0, %s168
    %s183 = sphi 0, %s169
    %s187 = sphi 0, %s187
    %s189 = sphi 0, %s187
    %s190 = sphi 0, %s189
    %s204 = sphi 0, %s190
    %s210 = sphi 0, %s212
    %s213 = sphi 0, %s210
    %s214 = sphi 0, %s213
    %s230 = sphi 0, %s214
    %s236 = sphi 0, %s238
    %s239 = sphi 0, %s236
    %s240 = sphi 0, %s239
    %s256 = sphi 0, %s240
    %s262 = sphi 0, %s264
    %s265 = sphi 0, %s262
    %s266 = sphi 0, %s265
    %s282 = sphi 0, %s266
    %s288 = sphi 0, %s290
    %s291 = sphi 0, %s288
    %s292 = sphi 0, %s291
    %s308 = sphi 0, %s292
    %s314 = sphi 0, %s316
    %s317 = sphi 0, %s314
    %s318 = sphi 0, %s317
    %s334 = sphi 0, %s318
    %s340 = sphi 0, %s342
    %s343 = sphi 0, %s340
    %s344 = sphi 0, %s343
    %s360 = sphi 0, %s344
    %s366 = sphi 0, %s368
    %s369 = sphi 0, %s366
    %s370 = sphi 0, %s369
    %s386 = sphi 0, %s370
    %s392 = sphi 0, %s394
    %s395 = sphi 0, %s392
    %s396 = sphi 0, %s395
    %s412 = sphi 0, %s396
    %s418 = sphi 0, %s420
    %s421 = sphi 0, %s418
    %s422 = sphi 0, %s421
    %s438 = sphi 0, %s422
    %s444 = sphi 0, %s446
    %s447 = sphi 0, %s444
    %s448 = sphi 0, %s447
    %s464 = sphi 0, %s448
    %s470 = sphi 0, %s472
    %s473 = sphi 0, %s470
    %s474 = sphi 0, %s473
    %s490 = sphi 0, %s474
    %s496 = sphi 0, %s498
    %s499 = sphi 0, %s496
    %s500 = sphi 0, %s499
    %s516 = sphi 0, %s500
    %s522 = sphi 0, %s524
    %s525 = sphi 0, %s522
    %s526 = sphi 0, %s525
    %s542 = sphi 0, %s526
    %s548 = sphi 0, %s550
    %s551 = sphi 0, %s548
    %s552 = sphi 0, %s551
    %s568 = sphi 0, %s552
    %s574 = sphi 0, %s576
    %s577 = sphi 0, %s574
    %s578 = sphi 0, %s577
    %s594 = sphi 0, %s578
    %s600 = sphi 0, %s602
    %s603 = sphi 0, %s600
    %s604 = sphi 0, %s603
    %s620 = sphi 0, %s604
    %s626 = sphi 0, %s628
    %s629 = sphi 0, %s626
    %s630 = sphi 0, %s629
    %s646 = sphi 0, %s630
  $region4: #{mhsa_stage_adapt.1} parent=0 // loop_header_branch
    %32 = sbr.rel (%p30) target = $region8
  $region5: #{mhsa_stage_adapt.1} parent=0 // loop_body
    %s34 = ssub.s32 %s29, 1
    %s35 = ssub.s32 %s29, 2
    %s42 = sadd.s32 1, %s37
    %p43 = scmp.ge.s32.totalorder %s42, 2
    %s44 = scalar_select %p43, 0, %s42
    %s45 = sadd.s32 1, %s36
    %s46 = scalar_select %p43, %s45, %s36
    %p47 = scmp.ge.s32.totalorder %s46, 2
    %s48 = scalar_select %p47, 0, %s46
    %s49 = ssub.s32 %s36, %s48
    %p50 = scmp.eq.s32.totalorder %s49, 0
    %s52 = sadd.s32 %s51, 1
    %s53 = scalar_select %p50, %s51, %s52
    %p56 = pneg %p50
    %p57 = scmp.eq.s32.totalorder %s29, 3
    %p58 = por %p56, %p57
    %p59 = scmp.ne.s32.totalorder %s51, %s54
    %p60 = scmp.eq.s32.totalorder %s29, 0
    %p61 = por %p59, %p60
    %p62 = scmp.ne.s32.totalorder %s51, %s54
    %p63 = scmp.eq.s32.totalorder %s34, 3
    %p64 = por %p62, %p63
    %p65 = scmp.ne.s32.totalorder %s54, %s55
    %p66 = scmp.eq.s32.totalorder %s34, 0
    %p67 = por %p65, %p66
    %p68 = scmp.ne.s32.totalorder %s54, %s55
    %p69 = scmp.eq.s32.totalorder %s35, 3
    %p70 = por %p68, %p69
    %p72 = scmp.ne.s32.totalorder %s55, %s71
    %p73 = scmp.eq.s32.totalorder %s35, 0
    %p74 = por %p72, %p73
    %s75 = ssub.s32 %s37, %s44
    %s76 = ssub.s32 %s36, %s48
    %s77 = sor.u32 %s75, %s76
    %p78 = scmp.eq.s32.totalorder %s77, 0
    %s80 = sadd.s32 %s79, 1
    %s81 = scalar_select %p78, %s79, %s80
    %p84 = pneg %p78
    %p85 = scmp.eq.s32.totalorder %s29, 3
    %p86 = por %p84, %p85
    %p87 = scmp.ne.s32.totalorder %s79, %s82
    %p88 = scmp.eq.s32.totalorder %s29, 0
    %p89 = por %p87, %p88
    %p90 = scmp.ne.s32.totalorder %s79, %s82
    %p91 = scmp.eq.s32.totalorder %s34, 3
    %p92 = por %p90, %p91
    %p93 = scmp.ne.s32.totalorder %s82, %s83
    %p94 = scmp.eq.s32.totalorder %s34, 0
    %p95 = por %p93, %p94
    %p96 = scmp.ne.s32.totalorder %s82, %s83
    %p97 = scmp.eq.s32.totalorder %s35, 3
    %p98 = por %p96, %p97
    %p100 = scmp.ne.s32.totalorder %s83, %s99
    %p101 = scmp.eq.s32.totalorder %s35, 0
    %p102 = por %p100, %p101
    %s104 = sadd.s32 %s103, 1
    %p107 = scmp.eq.s32.totalorder %s29, 3
    %p108 = scmp.ne.s32.totalorder %s103, %s105
    %p109 = scmp.eq.s32.totalorder %s29, 0
    %p110 = por %p108, %p109
    %p111 = scmp.ne.s32.totalorder %s103, %s105
    %p112 = scmp.eq.s32.totalorder %s34, 3
    %p113 = por %p111, %p112
    %p114 = scmp.ne.s32.totalorder %s105, %s106
    %p115 = scmp.eq.s32.totalorder %s34, 0
    %p116 = por %p114, %p115
    %p117 = scmp.ne.s32.totalorder %s105, %s106
    %p118 = scmp.eq.s32.totalorder %s35, 3
    %p119 = por %p117, %p118
    %p121 = scmp.ne.s32.totalorder %s106, %s120
    %p122 = scmp.eq.s32.totalorder %s35, 0
    %p123 = por %p121, %p122
    %s125 = sadd.s32 %s124, 1
    %p128 = scmp.eq.s32.totalorder %s29, 3
    %p129 = scmp.ne.s32.totalorder %s124, %s126
    %p130 = scmp.eq.s32.totalorder %s29, 0
    %p131 = por %p129, %p130
    %p132 = scmp.ne.s32.totalorder %s124, %s126
    %p133 = scmp.eq.s32.totalorder %s34, 3
    %p134 = por %p132, %p133
    %p135 = scmp.ne.s32.totalorder %s126, %s127
    %p136 = scmp.eq.s32.totalorder %s34, 0
    %p137 = por %p135, %p136
    %p138 = scmp.ne.s32.totalorder %s126, %s127
    %p139 = scmp.eq.s32.totalorder %s35, 3
    %p140 = por %p138, %p139
    %p142 = scmp.ne.s32.totalorder %s127, %s141
    %p143 = scmp.eq.s32.totalorder %s35, 0
    %p144 = por %p142, %p143
    %s146 = sadd.s32 %s145, 1
    %p149 = scmp.eq.s32.totalorder %s29, 3
    %p150 = scmp.ne.s32.totalorder %s145, %s147
    %p151 = scmp.eq.s32.totalorder %s29, 0
    %p152 = por %p150, %p151
    %p153 = scmp.ne.s32.totalorder %s145, %s147
    %p154 = scmp.eq.s32.totalorder %s34, 3
    %p155 = por %p153, %p154
    %p156 = scmp.ne.s32.totalorder %s147, %s148
    %p157 = scmp.eq.s32.totalorder %s34, 0
    %p158 = por %p156, %p157
    %p159 = scmp.ne.s32.totalorder %s147, %s148
    %p160 = scmp.eq.s32.totalorder %s35, 3
    %p161 = por %p159, %p160
    %p163 = scmp.ne.s32.totalorder %s148, %s162
    %p164 = scmp.eq.s32.totalorder %s35, 0
    %p165 = por %p163, %p164
    %s167 = sadd.s32 %s166, 1
    %p170 = scmp.eq.s32.totalorder %s29, 3
    %p171 = scmp.ne.s32.totalorder %s166, %s168
    %p172 = scmp.eq.s32.totalorder %s29, 0
    %p173 = por %p171, %p172
    %p174 = scmp.ne.s32.totalorder %s166, %s168
    %p175 = scmp.eq.s32.totalorder %s34, 3
    %p176 = por %p174, %p175
    %p177 = scmp.ne.s32.totalorder %s168, %s169
    %p178 = scmp.eq.s32.totalorder %s34, 0
    %p179 = por %p177, %p178
    %p180 = scmp.ne.s32.totalorder %s168, %s169
    %p181 = scmp.eq.s32.totalorder %s35, 3
    %p182 = por %p180, %p181
    %p184 = scmp.ne.s32.totalorder %s169, %s183
    %p185 = scmp.eq.s32.totalorder %s35, 0
    %p186 = por %p184, %p185
    %s188 = sadd.s32 %s187, 1
    %p191 = scmp.eq.s32.totalorder %s29, 3
    %p192 = scmp.ne.s32.totalorder %s187, %s189
    %p193 = scmp.eq.s32.totalorder %s29, 0
    %p194 = por %p192, %p193
    %p195 = scmp.ne.s32.totalorder %s187, %s189
    %p196 = scmp.eq.s32.totalorder %s34, 3
    %p197 = por %p195, %p196
    %p198 = scmp.ne.s32.totalorder %s189, %s190
    %p199 = scmp.eq.s32.totalorder %s34, 0
    %p200 = por %p198, %p199
    %p201 = scmp.ne.s32.totalorder %s189, %s190
    %p202 = scmp.eq.s32.totalorder %s35, 3
    %p203 = por %p201, %p202
    %p205 = scmp.ne.s32.totalorder %s190, %s204
    %p206 = scmp.eq.s32.totalorder %s35, 0
    %p207 = por %p205, %p206
    %s208 = ssub.s32 %s37, %s44
    %p209 = scmp.eq.s32.totalorder %s208, 0
    %s211 = sadd.s32 %s210, 1
    %s212 = scalar_select %p209, %s210, %s211
    %p215 = pneg %p209
    %p216 = scmp.eq.s32.totalorder %s29, 3
    %p217 = por %p215, %p216
    %p218 = scmp.ne.s32.totalorder %s210, %s213
    %p219 = scmp.eq.s32.totalorder %s29, 0
    %p220 = por %p218, %p219
    %p221 = scmp.ne.s32.totalorder %s210, %s213
    %p222 = scmp.eq.s32.totalorder %s34, 3
    %p223 = por %p221, %p222
    %p224 = scmp.ne.s32.totalorder %s213, %s214
    %p225 = scmp.eq.s32.totalorder %s34, 0
    %p226 = por %p224, %p225
    %p227 = scmp.ne.s32.totalorder %s213, %s214
    %p228 = scmp.eq.s32.totalorder %s35, 3
    %p229 = por %p227, %p228
    %p231 = scmp.ne.s32.totalorder %s214, %s230
    %p232 = scmp.eq.s32.totalorder %s35, 0
    %p233 = por %p231, %p232
    %s234 = ssub.s32 %s37, %s44
    %p235 = scmp.eq.s32.totalorder %s234, 0
    %s237 = sadd.s32 %s236, 1
    %s238 = scalar_select %p235, %s236, %s237
    %p241 = pneg %p235
    %p242 = scmp.eq.s32.totalorder %s29, 3
    %p243 = por %p241, %p242
    %p244 = scmp.ne.s32.totalorder %s236, %s239
    %p245 = scmp.eq.s32.totalorder %s29, 0
    %p246 = por %p244, %p245
    %p247 = scmp.ne.s32.totalorder %s236, %s239
    %p248 = scmp.eq.s32.totalorder %s34, 3
    %p249 = por %p247, %p248
    %p250 = scmp.ne.s32.totalorder %s239, %s240
    %p251 = scmp.eq.s32.totalorder %s34, 0
    %p252 = por %p250, %p251
    %p253 = scmp.ne.s32.totalorder %s239, %s240
    %p254 = scmp.eq.s32.totalorder %s35, 3
    %p255 = por %p253, %p254
    %p257 = scmp.ne.s32.totalorder %s240, %s256
    %p258 = scmp.eq.s32.totalorder %s35, 0
    %p259 = por %p257, %p258
    %s260 = ssub.s32 %s37, %s44
    %p261 = scmp.eq.s32.totalorder %s260, 0
    %s263 = sadd.s32 %s262, 1
    %s264 = scalar_select %p261, %s262, %s263
    %p267 = pneg %p261
    %p268 = scmp.eq.s32.totalorder %s29, 3
    %p269 = por %p267, %p268
    %p270 = scmp.ne.s32.totalorder %s262, %s265
    %p271 = scmp.eq.s32.totalorder %s29, 0
    %p272 = por %p270, %p271
    %p273 = scmp.ne.s32.totalorder %s262, %s265
    %p274 = scmp.eq.s32.totalorder %s34, 3
    %p275 = por %p273, %p274
    %p276 = scmp.ne.s32.totalorder %s265, %s266
    %p277 = scmp.eq.s32.totalorder %s34, 0
    %p278 = por %p276, %p277
    %p279 = scmp.ne.s32.totalorder %s265, %s266
    %p280 = scmp.eq.s32.totalorder %s35, 3
    %p281 = por %p279, %p280
    %p283 = scmp.ne.s32.totalorder %s266, %s282
    %p284 = scmp.eq.s32.totalorder %s35, 0
    %p285 = por %p283, %p284
    %s286 = ssub.s32 %s37, %s44
    %p287 = scmp.eq.s32.totalorder %s286, 0
    %s289 = sadd.s32 %s288, 1
    %s290 = scalar_select %p287, %s288, %s289
    %p293 = pneg %p287
    %p294 = scmp.eq.s32.totalorder %s29, 3
    %p295 = por %p293, %p294
    %p296 = scmp.ne.s32.totalorder %s288, %s291
    %p297 = scmp.eq.s32.totalorder %s29, 0
    %p298 = por %p296, %p297
    %p299 = scmp.ne.s32.totalorder %s288, %s291
    %p300 = scmp.eq.s32.totalorder %s34, 3
    %p301 = por %p299, %p300
    %p302 = scmp.ne.s32.totalorder %s291, %s292
    %p303 = scmp.eq.s32.totalorder %s34, 0
    %p304 = por %p302, %p303
    %p305 = scmp.ne.s32.totalorder %s291, %s292
    %p306 = scmp.eq.s32.totalorder %s35, 3
    %p307 = por %p305, %p306
    %p309 = scmp.ne.s32.totalorder %s292, %s308
    %p310 = scmp.eq.s32.totalorder %s35, 0
    %p311 = por %p309, %p310
    %s312 = ssub.s32 %s37, %s44
    %p313 = scmp.eq.s32.totalorder %s312, 0
    %s315 = sadd.s32 %s314, 1
    %s316 = scalar_select %p313, %s314, %s315
    %p319 = pneg %p313
    %p320 = scmp.eq.s32.totalorder %s29, 3
    %p321 = por %p319, %p320
    %p322 = scmp.ne.s32.totalorder %s314, %s317
    %p323 = scmp.eq.s32.totalorder %s29, 0
    %p324 = por %p322, %p323
    %p325 = scmp.ne.s32.totalorder %s314, %s317
    %p326 = scmp.eq.s32.totalorder %s34, 3
    %p327 = por %p325, %p326
    %p328 = scmp.ne.s32.totalorder %s317, %s318
    %p329 = scmp.eq.s32.totalorder %s34, 0
    %p330 = por %p328, %p329
    %p331 = scmp.ne.s32.totalorder %s317, %s318
    %p332 = scmp.eq.s32.totalorder %s35, 3
    %p333 = por %p331, %p332
    %p335 = scmp.ne.s32.totalorder %s318, %s334
    %p336 = scmp.eq.s32.totalorder %s35, 0
    %p337 = por %p335, %p336
    %s338 = ssub.s32 %s37, %s44
    %p339 = scmp.eq.s32.totalorder %s338, 0
    %s341 = sadd.s32 %s340, 1
    %s342 = scalar_select %p339, %s340, %s341
    %p345 = pneg %p339
    %p346 = scmp.eq.s32.totalorder %s29, 3
    %p347 = por %p345, %p346
    %p348 = scmp.ne.s32.totalorder %s340, %s343
    %p349 = scmp.eq.s32.totalorder %s29, 0
    %p350 = por %p348, %p349
    %p351 = scmp.ne.s32.totalorder %s340, %s343
    %p352 = scmp.eq.s32.totalorder %s34, 3
    %p353 = por %p351, %p352
    %p354 = scmp.ne.s32.totalorder %s343, %s344
    %p355 = scmp.eq.s32.totalorder %s34, 0
    %p356 = por %p354, %p355
    %p357 = scmp.ne.s32.totalorder %s343, %s344
    %p358 = scmp.eq.s32.totalorder %s35, 3
    %p359 = por %p357, %p358
    %p361 = scmp.ne.s32.totalorder %s344, %s360
    %p362 = scmp.eq.s32.totalorder %s35, 0
    %p363 = por %p361, %p362
    %s364 = ssub.s32 %s37, %s44
    %p365 = scmp.eq.s32.totalorder %s364, 0
    %s367 = sadd.s32 %s366, 1
    %s368 = scalar_select %p365, %s366, %s367
    %p371 = pneg %p365
    %p372 = scmp.eq.s32.totalorder %s29, 3
    %p373 = por %p371, %p372
    %p374 = scmp.ne.s32.totalorder %s366, %s369
    %p375 = scmp.eq.s32.totalorder %s29, 0
    %p376 = por %p374, %p375
    %p377 = scmp.ne.s32.totalorder %s366, %s369
    %p378 = scmp.eq.s32.totalorder %s34, 3
    %p379 = por %p377, %p378
    %p380 = scmp.ne.s32.totalorder %s369, %s370
    %p381 = scmp.eq.s32.totalorder %s34, 0
    %p382 = por %p380, %p381
    %p383 = scmp.ne.s32.totalorder %s369, %s370
    %p384 = scmp.eq.s32.totalorder %s35, 3
    %p385 = por %p383, %p384
    %p387 = scmp.ne.s32.totalorder %s370, %s386
    %p388 = scmp.eq.s32.totalorder %s35, 0
    %p389 = por %p387, %p388
    %s390 = ssub.s32 %s37, %s44
    %p391 = scmp.eq.s32.totalorder %s390, 0
    %s393 = sadd.s32 %s392, 1
    %s394 = scalar_select %p391, %s392, %s393
    %p397 = pneg %p391
    %p398 = scmp.eq.s32.totalorder %s29, 3
    %p399 = por %p397, %p398
    %p400 = scmp.ne.s32.totalorder %s392, %s395
    %p401 = scmp.eq.s32.totalorder %s29, 0
    %p402 = por %p400, %p401
    %p403 = scmp.ne.s32.totalorder %s392, %s395
    %p404 = scmp.eq.s32.totalorder %s34, 3
    %p405 = por %p403, %p404
    %p406 = scmp.ne.s32.totalorder %s395, %s396
    %p407 = scmp.eq.s32.totalorder %s34, 0
    %p408 = por %p406, %p407
    %p409 = scmp.ne.s32.totalorder %s395, %s396
    %p410 = scmp.eq.s32.totalorder %s35, 3
    %p411 = por %p409, %p410
    %p413 = scmp.ne.s32.totalorder %s396, %s412
    %p414 = scmp.eq.s32.totalorder %s35, 0
    %p415 = por %p413, %p414
    %s416 = ssub.s32 %s37, %s44
    %p417 = scmp.eq.s32.totalorder %s416, 0
    %s419 = sadd.s32 %s418, 1
    %s420 = scalar_select %p417, %s418, %s419
    %p423 = pneg %p417
    %p424 = scmp.eq.s32.totalorder %s29, 3
    %p425 = por %p423, %p424
    %p426 = scmp.ne.s32.totalorder %s418, %s421
    %p427 = scmp.eq.s32.totalorder %s29, 0
    %p428 = por %p426, %p427
    %p429 = scmp.ne.s32.totalorder %s418, %s421
    %p430 = scmp.eq.s32.totalorder %s34, 3
    %p431 = por %p429, %p430
    %p432 = scmp.ne.s32.totalorder %s421, %s422
    %p433 = scmp.eq.s32.totalorder %s34, 0
    %p434 = por %p432, %p433
    %p435 = scmp.ne.s32.totalorder %s421, %s422
    %p436 = scmp.eq.s32.totalorder %s35, 3
    %p437 = por %p435, %p436
    %p439 = scmp.ne.s32.totalorder %s422, %s438
    %p440 = scmp.eq.s32.totalorder %s35, 0
    %p441 = por %p439, %p440
    %s442 = ssub.s32 %s37, %s44
    %p443 = scmp.eq.s32.totalorder %s442, 0
    %s445 = sadd.s32 %s444, 1
    %s446 = scalar_select %p443, %s444, %s445
    %p449 = pneg %p443
    %p450 = scmp.eq.s32.totalorder %s29, 3
    %p451 = por %p449, %p450
    %p452 = scmp.ne.s32.totalorder %s444, %s447
    %p453 = scmp.eq.s32.totalorder %s29, 0
    %p454 = por %p452, %p453
    %p455 = scmp.ne.s32.totalorder %s444, %s447
    %p456 = scmp.eq.s32.totalorder %s34, 3
    %p457 = por %p455, %p456
    %p458 = scmp.ne.s32.totalorder %s447, %s448
    %p459 = scmp.eq.s32.totalorder %s34, 0
    %p460 = por %p458, %p459
    %p461 = scmp.ne.s32.totalorder %s447, %s448
    %p462 = scmp.eq.s32.totalorder %s35, 3
    %p463 = por %p461, %p462
    %p465 = scmp.ne.s32.totalorder %s448, %s464
    %p466 = scmp.eq.s32.totalorder %s35, 0
    %p467 = por %p465, %p466
    %s468 = ssub.s32 %s37, %s44
    %p469 = scmp.eq.s32.totalorder %s468, 0
    %s471 = sadd.s32 %s470, 1
    %s472 = scalar_select %p469, %s470, %s471
    %p475 = pneg %p469
    %p476 = scmp.eq.s32.totalorder %s29, 3
    %p477 = por %p475, %p476
    %p478 = scmp.ne.s32.totalorder %s470, %s473
    %p479 = scmp.eq.s32.totalorder %s29, 0
    %p480 = por %p478, %p479
    %p481 = scmp.ne.s32.totalorder %s470, %s473
    %p482 = scmp.eq.s32.totalorder %s34, 3
    %p483 = por %p481, %p482
    %p484 = scmp.ne.s32.totalorder %s473, %s474
    %p485 = scmp.eq.s32.totalorder %s34, 0
    %p486 = por %p484, %p485
    %p487 = scmp.ne.s32.totalorder %s473, %s474
    %p488 = scmp.eq.s32.totalorder %s35, 3
    %p489 = por %p487, %p488
    %p491 = scmp.ne.s32.totalorder %s474, %s490
    %p492 = scmp.eq.s32.totalorder %s35, 0
    %p493 = por %p491, %p492
    %s494 = ssub.s32 %s37, %s44
    %p495 = scmp.eq.s32.totalorder %s494, 0
    %s497 = sadd.s32 %s496, 1
    %s498 = scalar_select %p495, %s496, %s497
    %p501 = pneg %p495
    %p502 = scmp.eq.s32.totalorder %s29, 3
    %p503 = por %p501, %p502
    %p504 = scmp.ne.s32.totalorder %s496, %s499
    %p505 = scmp.eq.s32.totalorder %s29, 0
    %p506 = por %p504, %p505
    %p507 = scmp.ne.s32.totalorder %s496, %s499
    %p508 = scmp.eq.s32.totalorder %s34, 3
    %p509 = por %p507, %p508
    %p510 = scmp.ne.s32.totalorder %s499, %s500
    %p511 = scmp.eq.s32.totalorder %s34, 0
    %p512 = por %p510, %p511
    %p513 = scmp.ne.s32.totalorder %s499, %s500
    %p514 = scmp.eq.s32.totalorder %s35, 3
    %p515 = por %p513, %p514
    %p517 = scmp.ne.s32.totalorder %s500, %s516
    %p518 = scmp.eq.s32.totalorder %s35, 0
    %p519 = por %p517, %p518
    %s520 = ssub.s32 %s37, %s44
    %p521 = scmp.eq.s32.totalorder %s520, 0
    %s523 = sadd.s32 %s522, 1
    %s524 = scalar_select %p521, %s522, %s523
    %p527 = pneg %p521
    %p528 = scmp.eq.s32.totalorder %s29, 3
    %p529 = por %p527, %p528
    %p530 = scmp.ne.s32.totalorder %s522, %s525
    %p531 = scmp.eq.s32.totalorder %s29, 0
    %p532 = por %p530, %p531
    %p533 = scmp.ne.s32.totalorder %s522, %s525
    %p534 = scmp.eq.s32.totalorder %s34, 3
    %p535 = por %p533, %p534
    %p536 = scmp.ne.s32.totalorder %s525, %s526
    %p537 = scmp.eq.s32.totalorder %s34, 0
    %p538 = por %p536, %p537
    %p539 = scmp.ne.s32.totalorder %s525, %s526
    %p540 = scmp.eq.s32.totalorder %s35, 3
    %p541 = por %p539, %p540
    %p543 = scmp.ne.s32.totalorder %s526, %s542
    %p544 = scmp.eq.s32.totalorder %s35, 0
    %p545 = por %p543, %p544
    %s546 = ssub.s32 %s37, %s44
    %p547 = scmp.eq.s32.totalorder %s546, 0
    %s549 = sadd.s32 %s548, 1
    %s550 = scalar_select %p547, %s548, %s549
    %p553 = pneg %p547
    %p554 = scmp.eq.s32.totalorder %s29, 3
    %p555 = por %p553, %p554
    %p556 = scmp.ne.s32.totalorder %s548, %s551
    %p557 = scmp.eq.s32.totalorder %s29, 0
    %p558 = por %p556, %p557
    %p559 = scmp.ne.s32.totalorder %s548, %s551
    %p560 = scmp.eq.s32.totalorder %s34, 3
    %p561 = por %p559, %p560
    %p562 = scmp.ne.s32.totalorder %s551, %s552
    %p563 = scmp.eq.s32.totalorder %s34, 0
    %p564 = por %p562, %p563
    %p565 = scmp.ne.s32.totalorder %s551, %s552
    %p566 = scmp.eq.s32.totalorder %s35, 3
    %p567 = por %p565, %p566
    %p569 = scmp.ne.s32.totalorder %s552, %s568
    %p570 = scmp.eq.s32.totalorder %s35, 0
    %p571 = por %p569, %p570
    %s572 = ssub.s32 %s37, %s44
    %p573 = scmp.eq.s32.totalorder %s572, 0
    %s575 = sadd.s32 %s574, 1
    %s576 = scalar_select %p573, %s574, %s575
    %p579 = pneg %p573
    %p580 = scmp.eq.s32.totalorder %s29, 3
    %p581 = por %p579, %p580
    %p582 = scmp.ne.s32.totalorder %s574, %s577
    %p583 = scmp.eq.s32.totalorder %s29, 0
    %p584 = por %p582, %p583
    %p585 = scmp.ne.s32.totalorder %s574, %s577
    %p586 = scmp.eq.s32.totalorder %s34, 3
    %p587 = por %p585, %p586
    %p588 = scmp.ne.s32.totalorder %s577, %s578
    %p589 = scmp.eq.s32.totalorder %s34, 0
    %p590 = por %p588, %p589
    %p591 = scmp.ne.s32.totalorder %s577, %s578
    %p592 = scmp.eq.s32.totalorder %s35, 3
    %p593 = por %p591, %p592
    %p595 = scmp.ne.s32.totalorder %s578, %s594
    %p596 = scmp.eq.s32.totalorder %s35, 0
    %p597 = por %p595, %p596
    %s598 = ssub.s32 %s37, %s44
    %p599 = scmp.eq.s32.totalorder %s598, 0
    %s601 = sadd.s32 %s600, 1
    %s602 = scalar_select %p599, %s600, %s601
    %p605 = pneg %p599
    %p606 = scmp.eq.s32.totalorder %s29, 3
    %p607 = por %p605, %p606
    %p608 = scmp.ne.s32.totalorder %s600, %s603
    %p609 = scmp.eq.s32.totalorder %s29, 0
    %p610 = por %p608, %p609
    %p611 = scmp.ne.s32.totalorder %s600, %s603
    %p612 = scmp.eq.s32.totalorder %s34, 3
    %p613 = por %p611, %p612
    %p614 = scmp.ne.s32.totalorder %s603, %s604
    %p615 = scmp.eq.s32.totalorder %s34, 0
    %p616 = por %p614, %p615
    %p617 = scmp.ne.s32.totalorder %s603, %s604
    %p618 = scmp.eq.s32.totalorder %s35, 3
    %p619 = por %p617, %p618
    %p621 = scmp.ne.s32.totalorder %s604, %s620
    %p622 = scmp.eq.s32.totalorder %s35, 0
    %p623 = por %p621, %p622
    %s624 = ssub.s32 %s36, %s48
    %p625 = scmp.eq.s32.totalorder %s624, 0
    %s627 = sadd.s32 %s626, 1
    %s628 = scalar_select %p625, %s626, %s627
    %p631 = pneg %p625
    %p632 = scmp.eq.s32.totalorder %s29, 3
    %p633 = por %p631, %p632
    %p634 = scmp.ne.s32.totalorder %s626, %s629
    %p635 = scmp.eq.s32.totalorder %s29, 0
    %p636 = por %p634, %p635
    %p637 = scmp.ne.s32.totalorder %s626, %s629
    %p638 = scmp.eq.s32.totalorder %s34, 3
    %p639 = por %p637, %p638
    %p640 = scmp.ne.s32.totalorder %s629, %s630
    %p641 = scmp.eq.s32.totalorder %s34, 0
    %p642 = por %p640, %p641
    %p643 = scmp.ne.s32.totalorder %s629, %s630
    %p644 = scmp.eq.s32.totalorder %s35, 3
    %p645 = por %p643, %p644
    %p647 = scmp.ne.s32.totalorder %s630, %s646
    %p648 = scmp.eq.s32.totalorder %s35, 0
    %p649 = por %p647, %p648
    %p650 = scmp.le.s32.totalorder 1, %s29
    %p651 = scmp.lt.s32.totalorder %s29, 5
    %p652 = pnand %p650, %p651
    %p653 = pneg %p652
    // Predicated region
    $region9: #{mhsa_stage_adapt.1} parent=5 // pred_check
      _
    $region10: #{mhsa_stage_adapt.1} parent=5 // pred_check_branch
      %655 = sbr.rel (%p652) target = $region12
    $region11: #{mhsa_stage_adapt.1} parent=5 // pred_region
      %s656 = ssub.s32 %s29, 1
      // Predicated region
      $region13: #{mhsa_stage_adapt.1} parent=11 // pred_check
        %p657 = pneg %p116
      $region14: #{mhsa_stage_adapt.1} parent=11 // pred_check_branch
        %659 = sbr.rel (%p657) target = $region16
      $region15: #{mhsa_stage_adapt.1} parent=11 // pred_region
        _
      $region16: #{mhsa_stage_adapt.1} parent=11 // pred_fallthru
        _
      // Predicated region
      $region17: #{mhsa_stage_adapt.1} parent=11 // pred_check
        %p660 = pneg %p137
      $region18: #{mhsa_stage_adapt.1} parent=11 // pred_check_branch
        %662 = sbr.rel (%p660) target = $region20
      $region19: #{mhsa_stage_adapt.1} parent=11 // pred_region
        _
      $region20: #{mhsa_stage_adapt.1} parent=11 // pred_fallthru
        _
      // Predicated region
      $region21: #{mhsa_stage_adapt.1} parent=11 // pred_check
        %p663 = pneg %p158
      $region22: #{mhsa_stage_adapt.1} parent=11 // pred_check_branch
        %665 = sbr.rel (%p663) target = $region24
      $region23: #{mhsa_stage_adapt.1} parent=11 // pred_region
        _
      $region24: #{mhsa_stage_adapt.1} parent=11 // pred_fallthru
        _
      // Predicated region
      $region25: #{mhsa_stage_adapt.1} parent=11 // pred_check
        %p666 = pneg %p179
      $region26: #{mhsa_stage_adapt.1} parent=11 // pred_check_branch
        %668 = sbr.rel (%p666) target = $region28
      $region27: #{mhsa_stage_adapt.1} parent=11 // pred_region
        _
      $region28: #{mhsa_stage_adapt.1} parent=11 // pred_fallthru
        _
      // Predicated region
      $region29: #{mhsa_stage_adapt.1} parent=11 // pred_check
        %p669 = pneg %p200
      $region30: #{mhsa_stage_adapt.1} parent=11 // pred_check_branch
        %671 = sbr.rel (%p669) target = $region32
      $region31: #{mhsa_stage_adapt.1} parent=11 // pred_region
        _
      $region32: #{mhsa_stage_adapt.1} parent=11 // pred_fallthru
        _
    $region12: #{mhsa_stage_adapt.1} parent=5 // pred_fallthru
      _
    %p672 = scmp.lt.s32.totalorder %s29, 4
    // Predicated region
    $region33: #{mhsa_stage_adapt.1} parent=5 // pred_check
      %p673 = pneg %p672
    $region34: #{mhsa_stage_adapt.1} parent=5 // pred_check_branch
      %675 = sbr.rel (%p673) target = $region36
    $region35: #{mhsa_stage_adapt.1} parent=5 // pred_region
      // Predicated region
      $region37: #{mhsa_stage_adapt.1} parent=35 // pred_check
        %p676 = pneg %p61
      $region38: #{mhsa_stage_adapt.1} parent=35 // pred_check_branch
        %678 = sbr.rel (%p676) target = $region40
      $region39: #{mhsa_stage_adapt.1} parent=35 // pred_region
        %p679 = scmp.lt.s32.totalorder %s36, 1
        %s680 = scalar_select %p679, %s36, 1
        %s681 = smul.addr %s680, 8
        %s682 = smul.addr %s681, 8
        %s683 = scalar_lea.vmem %s0, %s682
      $region40: #{mhsa_stage_adapt.1} parent=35 // pred_fallthru
        _
      // Predicated region
      $region41: #{mhsa_stage_adapt.1} parent=35 // pred_check
        %p684 = pneg %p89
      $region42: #{mhsa_stage_adapt.1} parent=35 // pred_check_branch
        %686 = sbr.rel (%p684) target = $region44
      $region43: #{mhsa_stage_adapt.1} parent=35 // pred_region
        %p687 = scmp.lt.s32.totalorder %s37, 1
        %s688 = scalar_select %p687, %s37, 1
        %p689 = scmp.lt.s32.totalorder %s36, 1
        %s690 = scalar_select %p689, %s36, 1
        %s691 = smul.addr %s688, 2
        %s692 = sadd.s32 %s690, %s691
        %s693 = scalar_lea.vmem %s1, %s692
      $region44: #{mhsa_stage_adapt.1} parent=35 // pred_fallthru
        _
      // Predicated region
      $region45: #{mhsa_stage_adapt.1} parent=35 // pred_check
        %p694 = pneg %p220
      $region46: #{mhsa_stage_adapt.1} parent=35 // pred_check_branch
        %696 = sbr.rel (%p694) target = $region48
      $region47: #{mhsa_stage_adapt.1} parent=35 // pred_region
        %p697 = scmp.lt.s32.totalorder %s37, 1
        %s698 = scalar_select %p697, %s37, 1
        %s699 = scalar_lea.vmem %s7, %s698
      $region48: #{mhsa_stage_adapt.1} parent=35 // pred_fallthru
        _
      // Predicated region
      $region49: #{mhsa_stage_adapt.1} parent=35 // pred_check
        %p700 = pneg %p246
      $region50: #{mhsa_stage_adapt.1} parent=35 // pred_check_branch
        %702 = sbr.rel (%p700) target = $region52
      $region51: #{mhsa_stage_adapt.1} parent=35 // pred_region
        %p703 = scmp.lt.s32.totalorder %s37, 1
        %s704 = scalar_select %p703, %s37, 1
        %s705 = scalar_lea.vmem %s8, %s704
      $region52: #{mhsa_stage_adapt.1} parent=35 // pred_fallthru
        _
      // Predicated region
      $region53: #{mhsa_stage_adapt.1} parent=35 // pred_check
        %p706 = pneg %p272
      $region54: #{mhsa_stage_adapt.1} parent=35 // pred_check_branch
        %708 = sbr.rel (%p706) target = $region56
      $region55: #{mhsa_stage_adapt.1} parent=35 // pred_region
        %p709 = scmp.lt.s32.totalorder %s37, 1
        %s710 = scalar_select %p709, %s37, 1
        %s711 = smul.addr %s710, 4
        %s712 = smul.addr %s711, 4
        %s713 = scalar_lea.vmem %s9, %s712
      $region56: #{mhsa_stage_adapt.1} parent=35 // pred_fallthru
        _
      // Predicated region
      $region57: #{mhsa_stage_adapt.1} parent=35 // pred_check
        %p714 = pneg %p298
      $region58: #{mhsa_stage_adapt.1} parent=35 // pred_check_branch
        %716 = sbr.rel (%p714) target = $region60
      $region59: #{mhsa_stage_adapt.1} parent=35 // pred_region
        %p717 = scmp.lt.s32.totalorder %s37, 1
        %s718 = scalar_select %p717, %s37, 1
        %s719 = smul.addr %s718, 4
        %s720 = smul.addr %s719, 4
        %s721 = scalar_lea.vmem %s10, %s720
      $region60: #{mhsa_stage_adapt.1} parent=35 // pred_fallthru
        _
      // Predicated region
      $region61: #{mhsa_stage_adapt.1} parent=35 // pred_check
        %p722 = pneg %p324
      $region62: #{mhsa_stage_adapt.1} parent=35 // pred_check_branch
        %724 = sbr.rel (%p722) target = $region64
      $region63: #{mhsa_stage_adapt.1} parent=35 // pred_region
        %p725 = scmp.lt.s32.totalorder %s37, 1
        %s726 = scalar_select %p725, %s37, 1
        %s727 = smul.addr %s726, 4
        %s728 = smul.addr %s727, 4
        %s729 = scalar_lea.vmem %s11, %s728
      $region64: #{mhsa_stage_adapt.1} parent=35 // pred_fallthru
        _
      // Predicated region
      $region65: #{mhsa_stage_adapt.1} parent=35 // pred_check
        %p730 = pneg %p350
      $region66: #{mhsa_stage_adapt.1} parent=35 // pred_check_branch
        %732 = sbr.rel (%p730) target = $region68
      $region67: #{mhsa_stage_adapt.1} parent=35 // pred_region
        %p733 = scmp.lt.s32.totalorder %s37, 1
        %s734 = scalar_select %p733, %s37, 1
        %s735 = scalar_lea.vmem %s12, %s734
      $region68: #{mhsa_stage_adapt.1} parent=35 // pred_fallthru
        _
      // Predicated region
      $region69: #{mhsa_stage_adapt.1} parent=35 // pred_check
        %p736 = pneg %p376
      $region70: #{mhsa_stage_adapt.1} parent=35 // pred_check_branch
        %738 = sbr.rel (%p736) target = $region72
      $region71: #{mhsa_stage_adapt.1} parent=35 // pred_region
        %p739 = scmp.lt.s32.totalorder %s37, 1
        %s740 = scalar_select %p739, %s37, 1
        %s741 = scalar_lea.vmem %s13, %s740
      $region72: #{mhsa_stage_adapt.1} parent=35 // pred_fallthru
        _
      // Predicated region
      $region73: #{mhsa_stage_adapt.1} parent=35 // pred_check
        %p742 = pneg %p402
      $region74: #{mhsa_stage_adapt.1} parent=35 // pred_check_branch
        %744 = sbr.rel (%p742) target = $region76
      $region75: #{mhsa_stage_adapt.1} parent=35 // pred_region
        %p745 = scmp.lt.s32.totalorder %s37, 1
        %s746 = scalar_select %p745, %s37, 1
        %s747 = scalar_lea.vmem %s14, %s746
      $region76: #{mhsa_stage_adapt.1} parent=35 // pred_fallthru
        _
      // Predicated region
      $region77: #{mhsa_stage_adapt.1} parent=35 // pred_check
        %p748 = pneg %p428
      $region78: #{mhsa_stage_adapt.1} parent=35 // pred_check_branch
        %750 = sbr.rel (%p748) target = $region80
      $region79: #{mhsa_stage_adapt.1} parent=35 // pred_region
        %p751 = scmp.lt.s32.totalorder %s37, 1
        %s752 = scalar_select %p751, %s37, 1
        %s753 = smul.addr %s752, 4
        %s754 = smul.addr %s753, 4
        %s755 = scalar_lea.vmem %s15, %s754
      $region80: #{mhsa_stage_adapt.1} parent=35 // pred_fallthru
        _
      // Predicated region
      $region81: #{mhsa_stage_adapt.1} parent=35 // pred_check
        %p756 = pneg %p454
      $region82: #{mhsa_stage_adapt.1} parent=35 // pred_check_branch
        %758 = sbr.rel (%p756) target = $region84
      $region83: #{mhsa_stage_adapt.1} parent=35 // pred_region
        %p759 = scmp.lt.s32.totalorder %s37, 1
        %s760 = scalar_select %p759, %s37, 1
        %s761 = scalar_lea.vmem %s16, %s760
      $region84: #{mhsa_stage_adapt.1} parent=35 // pred_fallthru
        _
      // Predicated region
      $region85: #{mhsa_stage_adapt.1} parent=35 // pred_check
        %p762 = pneg %p480
      $region86: #{mhsa_stage_adapt.1} parent=35 // pred_check_branch
        %764 = sbr.rel (%p762) target = $region88
      $region87: #{mhsa_stage_adapt.1} parent=35 // pred_region
        %p765 = scmp.lt.s32.totalorder %s37, 1
        %s766 = scalar_select %p765, %s37, 1
        %s767 = scalar_lea.vmem %s17, %s766
      $region88: #{mhsa_stage_adapt.1} parent=35 // pred_fallthru
        _
      // Predicated region
      $region89: #{mhsa_stage_adapt.1} parent=35 // pred_check
        %p768 = pneg %p506
      $region90: #{mhsa_stage_adapt.1} parent=35 // pred_check_branch
        %770 = sbr.rel (%p768) target = $region92
      $region91: #{mhsa_stage_adapt.1} parent=35 // pred_region
        %p771 = scmp.lt.s32.totalorder %s37, 1
        %s772 = scalar_select %p771, %s37, 1
        %s773 = scalar_lea.vmem %s18, %s772
      $region92: #{mhsa_stage_adapt.1} parent=35 // pred_fallthru
        _
      // Predicated region
      $region93: #{mhsa_stage_adapt.1} parent=35 // pred_check
        %p774 = pneg %p532
      $region94: #{mhsa_stage_adapt.1} parent=35 // pred_check_branch
        %776 = sbr.rel (%p774) target = $region96
      $region95: #{mhsa_stage_adapt.1} parent=35 // pred_region
        %p777 = scmp.lt.s32.totalorder %s37, 1
        %s778 = scalar_select %p777, %s37, 1
        %s779 = smul.addr %s778, 4
        %s780 = smul.addr %s779, 4
        %s781 = scalar_lea.vmem %s19, %s780
      $region96: #{mhsa_stage_adapt.1} parent=35 // pred_fallthru
        _
      // Predicated region
      $region97: #{mhsa_stage_adapt.1} parent=35 // pred_check
        %p782 = pneg %p558
      $region98: #{mhsa_stage_adapt.1} parent=35 // pred_check_branch
        %784 = sbr.rel (%p782) target = $region100
      $region99: #{mhsa_stage_adapt.1} parent=35 // pred_region
        %p785 = scmp.lt.s32.totalorder %s37, 1
        %s786 = scalar_select %p785, %s37, 1
        %s787 = scalar_lea.vmem %s20, %s786
      $region100: #{mhsa_stage_adapt.1} parent=35 // pred_fallthru
        _
      // Predicated region
      $region101: #{mhsa_stage_adapt.1} parent=35 // pred_check
        %p788 = pneg %p584
      $region102: #{mhsa_stage_adapt.1} parent=35 // pred_check_branch
        %790 = sbr.rel (%p788) target = $region104
      $region103: #{mhsa_stage_adapt.1} parent=35 // pred_region
        %p791 = scmp.lt.s32.totalorder %s37, 1
        %s792 = scalar_select %p791, %s37, 1
        %s793 = smul.addr %s792, 16
        %s794 = smul.addr %s793, 4
        %s795 = scalar_lea.vmem %s21, %s794
      $region104: #{mhsa_stage_adapt.1} parent=35 // pred_fallthru
        _
      // Predicated region
      $region105: #{mhsa_stage_adapt.1} parent=35 // pred_check
        %p796 = pneg %p610
      $region106: #{mhsa_stage_adapt.1} parent=35 // pred_check_branch
        %798 = sbr.rel (%p796) target = $region108
      $region107: #{mhsa_stage_adapt.1} parent=35 // pred_region
        %p799 = scmp.lt.s32.totalorder %s37, 1
        %s800 = scalar_select %p799, %s37, 1
        %s801 = scalar_lea.vmem %s22, %s800
      $region108: #{mhsa_stage_adapt.1} parent=35 // pred_fallthru
        _
    $region36: #{mhsa_stage_adapt.1} parent=5 // pred_fallthru
      _
    %p802 = scmp.le.s32.totalorder 1, %s29
    %p803 = scmp.lt.s32.totalorder %s29, 5
    %p804 = pnand %p802, %p803
    %p805 = pneg %p804
    // Predicated region
    $region109: #{mhsa_stage_adapt.1} parent=5 // pred_check
      _
    $region110: #{mhsa_stage_adapt.1} parent=5 // pred_check_branch
      %807 = sbr.rel (%p804) target = $region112
    $region111: #{mhsa_stage_adapt.1} parent=5 // pred_region
      %s808 = ssub.s32 %s29, 1
      %p809 = scmp.lt.s32.totalorder %s38, 1
      %s810 = scalar_select %p809, %s38, 1
      %s811 = smul.addr %s810, 8
      %s812 = smul.addr %s811, 8
      %s813 = scalar_lea.vmem %s0, %s812
      %p814 = pneg %p67
      %p815 = pneg %p64
      %p816 = scmp.lt.s32.totalorder %s39, 1
      %s817 = scalar_select %p816, %s39, 1
      %p818 = scmp.lt.s32.totalorder %s38, 1
      %s819 = scalar_select %p818, %s38, 1
      %s820 = smul.addr %s817, 2
      %s821 = sadd.s32 %s819, %s820
      %s822 = scalar_lea.vmem %s1, %s821
      %p823 = pneg %p95
      %p824 = pneg %p92
      %p825 = pneg %p116
      %p826 = pneg %p113
      %p827 = pneg %p137
      %p828 = pneg %p134
      %p829 = pneg %p158
      %p830 = pneg %p155
      %p831 = pneg %p179
      %p832 = pneg %p176
      %p833 = pneg %p200
      %p834 = pneg %p197
      %p835 = scmp.lt.s32.totalorder %s39, 1
      %s836 = scalar_select %p835, %s39, 1
      %s837 = scalar_lea.vmem %s7, %s836
      %p838 = pneg %p226
      %p839 = pneg %p223
      %p840 = scmp.lt.s32.totalorder %s39, 1
      %s841 = scalar_select %p840, %s39, 1
      %s842 = scalar_lea.vmem %s8, %s841
      %p843 = pneg %p252
      %p844 = pneg %p249
      %p845 = scmp.lt.s32.totalorder %s39, 1
      %s846 = scalar_select %p845, %s39, 1
      %s847 = smul.addr %s846, 4
      %s848 = smul.addr %s847, 4
      %s849 = scalar_lea.vmem %s9, %s848
      %p850 = pneg %p278
      %p851 = pneg %p275
      %p852 = scmp.lt.s32.totalorder %s39, 1
      %s853 = scalar_select %p852, %s39, 1
      %s854 = smul.addr %s853, 4
      %s855 = smul.addr %s854, 4
      %s856 = scalar_lea.vmem %s10, %s855
      %p857 = pneg %p304
      %p858 = pneg %p301
      %p859 = scmp.lt.s32.totalorder %s39, 1
      %s860 = scalar_select %p859, %s39, 1
      %s861 = smul.addr %s860, 4
      %s862 = smul.addr %s861, 4
      %s863 = scalar_lea.vmem %s11, %s862
      %p864 = pneg %p330
      %p865 = pneg %p327
      %p866 = scmp.lt.s32.totalorder %s39, 1
      %s867 = scalar_select %p866, %s39, 1
      %s868 = scalar_lea.vmem %s12, %s867
      %p869 = pneg %p356
      %p870 = pneg %p353
      %p871 = scmp.lt.s32.totalorder %s39, 1
      %s872 = scalar_select %p871, %s39, 1
      %s873 = scalar_lea.vmem %s13, %s872
      %p874 = pneg %p382
      %p875 = pneg %p379
      %p876 = scmp.lt.s32.totalorder %s39, 1
      %s877 = scalar_select %p876, %s39, 1
      %s878 = scalar_lea.vmem %s14, %s877
      %p879 = pneg %p408
      %p880 = pneg %p405
      %p881 = scmp.lt.s32.totalorder %s39, 1
      %s882 = scalar_select %p881, %s39, 1
      %s883 = smul.addr %s882, 4
      %s884 = smul.addr %s883, 4
      %s885 = scalar_lea.vmem %s15, %s884
      %p886 = pneg %p434
      %p887 = pneg %p431
      %p888 = scmp.lt.s32.totalorder %s39, 1
      %s889 = scalar_select %p888, %s39, 1
      %s890 = scalar_lea.vmem %s16, %s889
      %p891 = pneg %p460
      %p892 = pneg %p457
      %p893 = scmp.lt.s32.totalorder %s39, 1
      %s894 = scalar_select %p893, %s39, 1
      %s895 = scalar_lea.vmem %s17, %s894
      %p896 = pneg %p486
      %p897 = pneg %p483
      %p898 = scmp.lt.s32.totalorder %s39, 1
      %s899 = scalar_select %p898, %s39, 1
      %s900 = scalar_lea.vmem %s18, %s899
      %p901 = pneg %p512
      %p902 = pneg %p509
      %p903 = scmp.lt.s32.totalorder %s39, 1
      %s904 = scalar_select %p903, %s39, 1
      %s905 = smul.addr %s904, 4
      %s906 = smul.addr %s905, 4
      %s907 = scalar_lea.vmem %s19, %s906
      %p908 = pneg %p538
      %p909 = pneg %p535
      %p910 = scmp.lt.s32.totalorder %s39, 1
      %s911 = scalar_select %p910, %s39, 1
      %s912 = scalar_lea.vmem %s20, %s911
      %p913 = pneg %p564
      %p914 = pneg %p561
      %p915 = scmp.lt.s32.totalorder %s39, 1
      %s916 = scalar_select %p915, %s39, 1
      %s917 = smul.addr %s916, 16
      %s918 = smul.addr %s917, 4
      %s919 = scalar_lea.vmem %s21, %s918
      %p920 = pneg %p590
      %p921 = pneg %p587
      %p922 = scmp.lt.s32.totalorder %s39, 1
      %s923 = scalar_select %p922, %s39, 1
      %s924 = scalar_lea.vmem %s22, %s923
      %p925 = pneg %p616
      %p926 = pneg %p613
      %p927 = pneg %p642
      %p928 = pneg %p639
      %p929 = scmp.lt.s32.totalorder %s38, 1
      %s930 = scalar_select %p929, %s38, 1
      %s931 = smul.addr %s930, 8
      %s932 = smul.addr %s931, 8
      %s933 = scalar_lea.vmem %s23, %s932
      %p934 = scmp.lt.s32.totalorder %s38, 1
      %s935 = scalar_select %p934, %s38, 1
      %s936 = smul.addr %s935, 8
      %s937 = smul.addr %s936, 8
      %s938 = scalar_lea.vmem %s0, %s937
      %p939 = scmp.lt.s32.totalorder %s39, 1
      %s940 = scalar_select %p939, %s39, 1
      %p941 = scmp.lt.s32.totalorder %s38, 1
      %s942 = scalar_select %p941, %s38, 1
      %s943 = smul.addr %s940, 2
      %s944 = sadd.s32 %s942, %s943
      %s945 = scalar_lea.vmem %s1, %s944
      %p946 = scmp.lt.s32.totalorder %s39, 1
      %s947 = scalar_select %p946, %s39, 1
      %s948 = scalar_lea.vmem %s7, %s947
      %p949 = scmp.lt.s32.totalorder %s39, 1
      %s950 = scalar_select %p949, %s39, 1
      %s951 = scalar_lea.vmem %s8, %s950
      %p952 = scmp.lt.s32.totalorder %s39, 1
      %s953 = scalar_select %p952, %s39, 1
      %s954 = smul.addr %s953, 4
      %s955 = smul.addr %s954, 4
      %s956 = scalar_lea.vmem %s9, %s955
      %p957 = scmp.lt.s32.totalorder %s39, 1
      %s958 = scalar_select %p957, %s39, 1
      %s959 = smul.addr %s958, 4
      %s960 = smul.addr %s959, 4
      %s961 = scalar_lea.vmem %s10, %s960
      %p962 = scmp.lt.s32.totalorder %s39, 1
      %s963 = scalar_select %p962, %s39, 1
      %s964 = smul.addr %s963, 4
      %s965 = smul.addr %s964, 4
      %s966 = scalar_lea.vmem %s11, %s965
      %p967 = scmp.lt.s32.totalorder %s39, 1
      %s968 = scalar_select %p967, %s39, 1
      %s969 = scalar_lea.vmem %s12, %s968
      %p970 = scmp.lt.s32.totalorder %s39, 1
      %s971 = scalar_select %p970, %s39, 1
      %s972 = scalar_lea.vmem %s13, %s971
      %p973 = scmp.lt.s32.totalorder %s39, 1
      %s974 = scalar_select %p973, %s39, 1
      %s975 = scalar_lea.vmem %s14, %s974
      %p976 = scmp.lt.s32.totalorder %s39, 1
      %s977 = scalar_select %p976, %s39, 1
      %s978 = smul.addr %s977, 4
      %s979 = smul.addr %s978, 4
      %s980 = scalar_lea.vmem %s15, %s979
      %p981 = scmp.lt.s32.totalorder %s39, 1
      %s982 = scalar_select %p981, %s39, 1
      %s983 = scalar_lea.vmem %s16, %s982
      %p984 = scmp.lt.s32.totalorder %s39, 1
      %s985 = scalar_select %p984, %s39, 1
      %s986 = scalar_lea.vmem %s17, %s985
      %p987 = scmp.lt.s32.totalorder %s39, 1
      %s988 = scalar_select %p987, %s39, 1
      %s989 = scalar_lea.vmem %s18, %s988
      %p990 = scmp.lt.s32.totalorder %s39, 1
      %s991 = scalar_select %p990, %s39, 1
      %s992 = smul.addr %s991, 4
      %s993 = smul.addr %s992, 4
      %s994 = scalar_lea.vmem %s19, %s993
      %p995 = scmp.lt.s32.totalorder %s39, 1
      %s996 = scalar_select %p995, %s39, 1
      %s997 = scalar_lea.vmem %s20, %s996
      %p998 = scmp.lt.s32.totalorder %s39, 1
      %s999 = scalar_select %p998, %s39, 1
      %s1000 = smul.addr %s999, 16
      %s1001 = smul.addr %s1000, 4
      %s1002 = scalar_lea.vmem %s21, %s1001
      %p1003 = scmp.lt.s32.totalorder %s39, 1
      %s1004 = scalar_select %p1003, %s39, 1
      %s1005 = scalar_lea.vmem %s22, %s1004
      %p1006 = scmp.lt.s32.totalorder %s38, 1
      %s1007 = scalar_select %p1006, %s38, 1
      %s1008 = smul.addr %s1007, 8
      %s1009 = smul.addr %s1008, 8
      %s1010 = scalar_lea.vmem %s23, %s1009
      %p1012 = scmp.eq.s32.totalorder %s39, 0
      // Predicated region
      $region113: #{mhsa_stage_adapt.1} parent=111 // pred_check
        %p1013 = pneg %p1012
      $region114: #{mhsa_stage_adapt.1} parent=111 // pred_check_branch
        %1015 = sbr.rel (%p1013) target = $region116
      $region115: #{mhsa_stage_adapt.1} parent=111 // pred_region
        %v1016 = vld [vmem:[%s938] sm:$0xff]
        %v1017 = vld [vmem:[%s938 + $0x8] sm:$0xff]
        %v1018 = vld [vmem:[%s938 + $0x10] sm:$0xff]
        %v1019 = vld [vmem:[%s938 + $0x18] sm:$0xff]
        %v1020 = vld [vmem:[%s938 + $0x20] sm:$0xff]
        %v1021 = vld [vmem:[%s938 + $0x28] sm:$0xff]
        %v1022 = vld [vmem:[%s938 + $0x30] sm:$0xff]
        %v1023 = vld [vmem:[%s938 + $0x38] sm:$0xff]
        %vm1024 = vcmask 261120
        %1025 = vst.msk [vmem:[%s1010] sm:$0xff] %vm1024, %v1016
        %1026 = vst.msk [vmem:[%s1010 + $0x8] sm:$0xff] %vm1024, %v1017
        %1027 = vst.msk [vmem:[%s1010 + $0x10] sm:$0xff] %vm1024, %v1018
        %1028 = vst.msk [vmem:[%s1010 + $0x18] sm:$0xff] %vm1024, %v1019
        %1029 = vst.msk [vmem:[%s1010 + $0x20] sm:$0xff] %vm1024, %v1020
        %1030 = vst.msk [vmem:[%s1010 + $0x28] sm:$0xff] %vm1024, %v1021
        %1031 = vst.msk [vmem:[%s1010 + $0x30] sm:$0xff] %vm1024, %v1022
        %1032 = vst.msk [vmem:[%s1010 + $0x38] sm:$0xff] %vm1024, %v1023
        %1033 = vst.msk [vmem:[#allocation2] sm:$0xff] %vm1024, 0.0
        %1034 = vst.msk [vmem:[#allocation2 + $0x8] sm:$0xff] %vm1024, 0.0
        %1035 = vst.msk [vmem:[#allocation2 + $0x10] sm:$0xff] %vm1024, 0.0
        %1036 = vst.msk [vmem:[#allocation2 + $0x18] sm:$0xff] %vm1024, 0.0
        %1037 = vst.msk [vmem:[#allocation2 + $0x20] sm:$0xff] %vm1024, 0.0
        %1038 = vst.msk [vmem:[#allocation2 + $0x28] sm:$0xff] %vm1024, 0.0
        %1039 = vst.msk [vmem:[#allocation2 + $0x30] sm:$0xff] %vm1024, 0.0
        %1040 = vst.msk [vmem:[#allocation2 + $0x38] sm:$0xff] %vm1024, 0.0
        %1041 = vst.msk [vmem:[#allocation2 + $0x40] sm:$0xff] %vm1024, 0.0
        %1042 = vst.msk [vmem:[#allocation2 + $0x48] sm:$0xff] %vm1024, 0.0
        %1043 = vst.msk [vmem:[#allocation2 + $0x50] sm:$0xff] %vm1024, 0.0
        %1044 = vst.msk [vmem:[#allocation2 + $0x58] sm:$0xff] %vm1024, 0.0
        %1045 = vst.msk [vmem:[#allocation2 + $0x60] sm:$0xff] %vm1024, 0.0
        %1046 = vst.msk [vmem:[#allocation2 + $0x68] sm:$0xff] %vm1024, 0.0
        %1047 = vst.msk [vmem:[#allocation2 + $0x70] sm:$0xff] %vm1024, 0.0
        %1048 = vst.msk [vmem:[#allocation2 + $0x78] sm:$0xff] %vm1024, 0.0
        %1049 = vst.msk [vmem:[#allocation2 + $0x80] sm:$0xff] %vm1024, 0.0
        %1050 = vst.msk [vmem:[#allocation2 + $0x88] sm:$0xff] %vm1024, 0.0
        %1051 = vst.msk [vmem:[#allocation2 + $0x90] sm:$0xff] %vm1024, 0.0
        %1052 = vst.msk [vmem:[#allocation2 + $0x98] sm:$0xff] %vm1024, 0.0
        %1053 = vst.msk [vmem:[#allocation2 + $0xa0] sm:$0xff] %vm1024, 0.0
        %1054 = vst.msk [vmem:[#allocation2 + $0xa8] sm:$0xff] %vm1024, 0.0
        %1055 = vst.msk [vmem:[#allocation2 + $0xb0] sm:$0xff] %vm1024, 0.0
        %1056 = vst.msk [vmem:[#allocation2 + $0xb8] sm:$0xff] %vm1024, 0.0
        %1057 = vst.msk [vmem:[#allocation2 + $0xc0] sm:$0xff] %vm1024, 0.0
        %1058 = vst.msk [vmem:[#allocation2 + $0xc8] sm:$0xff] %vm1024, 0.0
        %1059 = vst.msk [vmem:[#allocation2 + $0xd0] sm:$0xff] %vm1024, 0.0
        %1060 = vst.msk [vmem:[#allocation2 + $0xd8] sm:$0xff] %vm1024, 0.0
        %1061 = vst.msk [vmem:[#allocation2 + $0xe0] sm:$0xff] %vm1024, 0.0
        %1062 = vst.msk [vmem:[#allocation2 + $0xe8] sm:$0xff] %vm1024, 0.0
        %1063 = vst.msk [vmem:[#allocation2 + $0xf0] sm:$0xff] %vm1024, 0.0
        %1064 = vst.msk [vmem:[#allocation2 + $0xf8] sm:$0xff] %vm1024, 0.0
        %1065 = vst.msk [vmem:[#allocation2 + $0x100] sm:$0xff] %vm1024, 0.0
        %1066 = vst.msk [vmem:[#allocation2 + $0x108] sm:$0xff] %vm1024, 0.0
        %1067 = vst.msk [vmem:[#allocation2 + $0x110] sm:$0xff] %vm1024, 0.0
        %1068 = vst.msk [vmem:[#allocation2 + $0x118] sm:$0xff] %vm1024, 0.0
        %1069 = vst.msk [vmem:[#allocation2 + $0x120] sm:$0xff] %vm1024, 0.0
        %1070 = vst.msk [vmem:[#allocation2 + $0x128] sm:$0xff] %vm1024, 0.0
        %1071 = vst.msk [vmem:[#allocation2 + $0x130] sm:$0xff] %vm1024, 0.0
        %1072 = vst.msk [vmem:[#allocation2 + $0x138] sm:$0xff] %vm1024, 0.0
        %1073 = vst.msk [vmem:[#allocation2 + $0x140] sm:$0xff] %vm1024, 0.0
        %1074 = vst.msk [vmem:[#allocation2 + $0x148] sm:$0xff] %vm1024, 0.0
      $region116: #{mhsa_stage_adapt.1} parent=111 // pred_fallthru
        _
      %v1075 = vld [vmem:[%s1010] sm:$0xff]
      %v1076 = vld [vmem:[%s1010 + $0x8] sm:$0xff]
      %v1077 = vld [vmem:[%s1010 + $0x10] sm:$0xff]
      %v1078 = vld [vmem:[%s1010 + $0x18] sm:$0xff]
      %v1079 = vld [vmem:[%s1010 + $0x20] sm:$0xff]
      %v1080 = vld [vmem:[%s1010 + $0x28] sm:$0xff]
      %v1081 = vld [vmem:[%s1010 + $0x30] sm:$0xff]
      %v1082 = vld [vmem:[%s1010 + $0x38] sm:$0xff]
      %v1083 = vld [vmem:[%s945] sm:$0x1]
      %v1084 = vld [vmem:[%s3] sm:$0xff]
      %v1085 = vld [vmem:[%s3 + $0x8] sm:$0x1]
      %v1086 = vld [vmem:[%s4] sm:$0x1]
      %vm1087 = vcmask 261120
      %1088 = vst.msk [vmem:[#allocation2 + $0x50] sm:$0xff] %vm1087, %v1075
      %1089 = vst.msk [vmem:[#allocation2 + $0x68] sm:$0xff] %vm1087, %v1076
      %1090 = vst.msk [vmem:[#allocation2 + $0x80] sm:$0xff] %vm1087, %v1077
      %1091 = vst.msk [vmem:[#allocation2 + $0x98] sm:$0xff] %vm1087, %v1078
      %1092 = vst.msk [vmem:[#allocation2 + $0xb0] sm:$0xff] %vm1087, %v1079
      %1093 = vst.msk [vmem:[#allocation2 + $0xc8] sm:$0xff] %vm1087, %v1080
      %1094 = vst.msk [vmem:[#allocation2 + $0xe0] sm:$0xff] %vm1087, %v1081
      %1095 = vst.msk [vmem:[#allocation2 + $0xf8] sm:$0xff] %vm1087, %v1082
      %v1096 = vld [vmem:[#allocation2 + $0x37] sm:$0xff]
      %v1097 = vld [vmem:[#allocation2 + $0x4f] sm:$0xff]
      %v1098 = vld [vmem:[#allocation2 + $0x67] sm:$0xff]
      %v1099 = vld [vmem:[#allocation2 + $0x7f] sm:$0xff]
      %v1100 = vld [vmem:[#allocation2 + $0x97] sm:$0xff]
      %v1101 = vld [vmem:[#allocation2 + $0xaf] sm:$0xff]
      %v1102 = vld [vmem:[#allocation2 + $0xc7] sm:$0xff]
      %v1103 = vld [vmem:[#allocation2 + $0xdf] sm:$0xff]
      %v1104 = vperm.slane %v1084, 0
      %v1105 = vmul.f32 %v1096, %v1104
      %v1106 = vmul.f32 %v1097, %v1104
      %v1107 = vmul.f32 %v1098, %v1104
      %v1108 = vmul.f32 %v1099, %v1104
      %v1109 = vmul.f32 %v1100, %v1104
      %v1110 = vmul.f32 %v1101, %v1104
      %v1111 = vmul.f32 %v1102, %v1104
      %v1112 = vmul.f32 %v1103, %v1104
      %v1113 = vadd.f32 %v1105, 0.0
      %v1114 = vadd.f32 %v1106, 0.0
      %v1115 = vadd.f32 %v1107, 0.0
      %v1116 = vadd.f32 %v1108, 0.0
      %v1117 = vadd.f32 %v1109, 0.0
      %v1118 = vadd.f32 %v1110, 0.0
      %v1119 = vadd.f32 %v1111, 0.0
      %v1120 = vadd.f32 %v1112, 0.0
      %v1121 = vld [vmem:[#allocation2 + $0x38] sm:$0xff]
      %v1122 = vld [vmem:[#allocation2 + $0x50] sm:$0xff]
      %v1123 = vld [vmem:[#allocation2 + $0x68] sm:$0xff]
      %v1124 = vld [vmem:[#allocation2 + $0x80] sm:$0xff]
      %v1125 = vld [vmem:[#allocation2 + $0x98] sm:$0xff]
      %v1126 = vld [vmem:[#allocation2 + $0xb0] sm:$0xff]
      %v1127 = vld [vmem:[#allocation2 + $0xc8] sm:$0xff]
      %v1128 = vld [vmem:[#allocation2 + $0xe0] sm:$0xff]
      %v1129 = vperm.slane %v1084, 1
      %v1130 = vmul.f32 %v1121, %v1129
      %v1131 = vmul.f32 %v1122, %v1129
      %v1132 = vmul.f32 %v1123, %v1129
      %v1133 = vmul.f32 %v1124, %v1129
      %v1134 = vmul.f32 %v1125, %v1129
      %v1135 = vmul.f32 %v1126, %v1129
      %v1136 = vmul.f32 %v1127, %v1129
      %v1137 = vmul.f32 %v1128, %v1129
      %v1138 = vadd.f32 %v1113, %v1130
      %v1139 = vadd.f32 %v1114, %v1131
      %v1140 = vadd.f32 %v1115, %v1132
      %v1141 = vadd.f32 %v1116, %v1133
      %v1142 = vadd.f32 %v1117, %v1134
      %v1143 = vadd.f32 %v1118, %v1135
      %v1144 = vadd.f32 %v1119, %v1136
      %v1145 = vadd.f32 %v1120, %v1137
      %v1146 = vld [vmem:[#allocation2 + $0x39] sm:$0xff]
      %v1147 = vld [vmem:[#allocation2 + $0x51] sm:$0xff]
      %v1148 = vld [vmem:[#allocation2 + $0x69] sm:$0xff]
      %v1149 = vld [vmem:[#allocation2 + $0x81] sm:$0xff]
      %v1150 = vld [vmem:[#allocation2 + $0x99] sm:$0xff]
      %v1151 = vld [vmem:[#allocation2 + $0xb1] sm:$0xff]
      %v1152 = vld [vmem:[#allocation2 + $0xc9] sm:$0xff]
      %v1153 = vld [vmem:[#allocation2 + $0xe1] sm:$0xff]
      %v1154 = vperm.slane %v1084, 2
      %v1155 = vmul.f32 %v1146, %v1154
      %v1156 = vmul.f32 %v1147, %v1154
      %v1157 = vmul.f32 %v1148, %v1154
      %v1158 = vmul.f32 %v1149, %v1154
      %v1159 = vmul.f32 %v1150, %v1154
      %v1160 = vmul.f32 %v1151, %v1154
      %v1161 = vmul.f32 %v1152, %v1154
      %v1162 = vmul.f32 %v1153, %v1154
      %v1163 = vadd.f32 %v1138, %v1155
      %v1164 = vadd.f32 %v1139, %v1156
      %v1165 = vadd.f32 %v1140, %v1157
      %v1166 = vadd.f32 %v1141, %v1158
      %v1167 = vadd.f32 %v1142, %v1159
      %v1168 = vadd.f32 %v1143, %v1160
      %v1169 = vadd.f32 %v1144, %v1161
      %v1170 = vadd.f32 %v1145, %v1162
      %v1171 = vld [vmem:[#allocation2 + $0xf7] sm:$0xff]
      %v1172 = vperm.slane %v1084, 3
      %v1173 = vmul.f32 %v1097, %v1172
      %v1174 = vmul.f32 %v1098, %v1172
      %v1175 = vmul.f32 %v1099, %v1172
      %v1176 = vmul.f32 %v1100, %v1172
      %v1177 = vmul.f32 %v1101, %v1172
      %v1178 = vmul.f32 %v1102, %v1172
      %v1179 = vmul.f32 %v1103, %v1172
      %v1180 = vmul.f32 %v1171, %v1172
      %v1181 = vadd.f32 %v1163, %v1173
      %v1182 = vadd.f32 %v1164, %v1174
      %v1183 = vadd.f32 %v1165, %v1175
      %v1184 = vadd.f32 %v1166, %v1176
      %v1185 = vadd.f32 %v1167, %v1177
      %v1186 = vadd.f32 %v1168, %v1178
      %v1187 = vadd.f32 %v1169, %v1179
      %v1188 = vadd.f32 %v1170, %v1180
      %v1189 = vld [vmem:[#allocation2 + $0xf8] sm:$0xff]
      %v1190 = vperm.slane %v1084, 4
      %v1191 = vmul.f32 %v1122, %v1190
      %v1192 = vmul.f32 %v1123, %v1190
      %v1193 = vmul.f32 %v1124, %v1190
      %v1194 = vmul.f32 %v1125, %v1190
      %v1195 = vmul.f32 %v1126, %v1190
      %v1196 = vmul.f32 %v1127, %v1190
      %v1197 = vmul.f32 %v1128, %v1190
      %v1198 = vmul.f32 %v1189, %v1190
      %v1199 = vadd.f32 %v1181, %v1191
      %v1200 = vadd.f32 %v1182, %v1192
      %v1201 = vadd.f32 %v1183, %v1193
      %v1202 = vadd.f32 %v1184, %v1194
      %v1203 = vadd.f32 %v1185, %v1195
      %v1204 = vadd.f32 %v1186, %v1196
      %v1205 = vadd.f32 %v1187, %v1197
      %v1206 = vadd.f32 %v1188, %v1198
      %v1207 = vld [vmem:[#allocation2 + $0xf9] sm:$0xff]
      %v1208 = vperm.slane %v1084, 5
      %v1209 = vmul.f32 %v1147, %v1208
      %v1210 = vmul.f32 %v1148, %v1208
      %v1211 = vmul.f32 %v1149, %v1208
      %v1212 = vmul.f32 %v1150, %v1208
      %v1213 = vmul.f32 %v1151, %v1208
      %v1214 = vmul.f32 %v1152, %v1208
      %v1215 = vmul.f32 %v1153, %v1208
      %v1216 = vmul.f32 %v1207, %v1208
      %v1217 = vadd.f32 %v1199, %v1209
      %v1218 = vadd.f32 %v1200, %v1210
      %v1219 = vadd.f32 %v1201, %v1211
      %v1220 = vadd.f32 %v1202, %v1212
      %v1221 = vadd.f32 %v1203, %v1213
      %v1222 = vadd.f32 %v1204, %v1214
      %v1223 = vadd.f32 %v1205, %v1215
      %v1224 = vadd.f32 %v1206, %v1216
      %v1225 = vld [vmem:[#allocation2 + $0x10f] sm:$0xff]
      %v1226 = vperm.slane %v1084, 6
      %v1227 = vmul.f32 %v1098, %v1226
      %v1228 = vmul.f32 %v1099, %v1226
      %v1229 = vmul.f32 %v1100, %v1226
      %v1230 = vmul.f32 %v1101, %v1226
      %v1231 = vmul.f32 %v1102, %v1226
      %v1232 = vmul.f32 %v1103, %v1226
      %v1233 = vmul.f32 %v1171, %v1226
      %v1234 = vmul.f32 %v1225, %v1226
      %v1235 = vadd.f32 %v1217, %v1227
      %v1236 = vadd.f32 %v1218, %v1228
      %v1237 = vadd.f32 %v1219, %v1229
      %v1238 = vadd.f32 %v1220, %v1230
      %v1239 = vadd.f32 %v1221, %v1231
      %v1240 = vadd.f32 %v1222, %v1232
      %v1241 = vadd.f32 %v1223, %v1233
      %v1242 = vadd.f32 %v1224, %v1234
      %v1243 = vld [vmem:[#allocation2 + $0x110] sm:$0xff]
      %v1244 = vperm.slane %v1084, 7
      %v1245 = vmul.f32 %v1123, %v1244
      %v1246 = vmul.f32 %v1124, %v1244
      %v1247 = vmul.f32 %v1125, %v1244
      %v1248 = vmul.f32 %v1126, %v1244
      %v1249 = vmul.f32 %v1127, %v1244
      %v1250 = vmul.f32 %v1128, %v1244
      %v1251 = vmul.f32 %v1189, %v1244
      %v1252 = vmul.f32 %v1243, %v1244
      %v1253 = vadd.f32 %v1235, %v1245
      %v1254 = vadd.f32 %v1236, %v1246
      %v1255 = vadd.f32 %v1237, %v1247
      %v1256 = vadd.f32 %v1238, %v1248
      %v1257 = vadd.f32 %v1239, %v1249
      %v1258 = vadd.f32 %v1240, %v1250
      %v1259 = vadd.f32 %v1241, %v1251
      %v1260 = vadd.f32 %v1242, %v1252
      %v1261 = vld [vmem:[#allocation2 + $0x111] sm:$0xff]
      %v1262 = vperm.slane %v1085, 0
      %v1263 = vmul.f32 %v1148, %v1262
      %v1264 = vmul.f32 %v1149, %v1262
      %v1265 = vmul.f32 %v1150, %v1262
      %v1266 = vmul.f32 %v1151, %v1262
      %v1267 = vmul.f32 %v1152, %v1262
      %v1268 = vmul.f32 %v1153, %v1262
      %v1269 = vmul.f32 %v1207, %v1262
      %v1270 = vmul.f32 %v1261, %v1262
      %v1271 = vadd.f32 %v1253, %v1263
      %v1272 = vadd.f32 %v1254, %v1264
      %v1273 = vadd.f32 %v1255, %v1265
      %v1274 = vadd.f32 %v1256, %v1266
      %v1275 = vadd.f32 %v1257, %v1267
      %v1276 = vadd.f32 %v1258, %v1268
      %v1277 = vadd.f32 %v1259, %v1269
      %v1278 = vadd.f32 %v1260, %v1270
      %v1280 = vperm.slane %v1086, 0
      %v1282 = vadd.f32 %v1271, %v1280
      %1283 = vst.msk [vmem:[#allocation3] sm:$0xff] %vm1087, %v1282
      %v1284 = vadd.f32 %v1272, %v1280
      %1285 = vst.msk [vmem:[#allocation3 + $0x8] sm:$0xff] %vm1087, %v1284
      %v1286 = vadd.f32 %v1273, %v1280
      %1287 = vst.msk [vmem:[#allocation3 + $0x10] sm:$0xff] %vm1087, %v1286
      %v1288 = vadd.f32 %v1274, %v1280
      %1289 = vst.msk [vmem:[#allocation3 + $0x18] sm:$0xff] %vm1087, %v1288
      %v1290 = vadd.f32 %v1275, %v1280
      %1291 = vst.msk [vmem:[#allocation3 + $0x20] sm:$0xff] %vm1087, %v1290
      %v1292 = vadd.f32 %v1276, %v1280
      %1293 = vst.msk [vmem:[#allocation3 + $0x28] sm:$0xff] %vm1087, %v1292
      %v1294 = vadd.f32 %v1277, %v1280
      %1295 = vst.msk [vmem:[#allocation3 + $0x30] sm:$0xff] %vm1087, %v1294
      %v1296 = vadd.f32 %v1278, %v1280
      %1297 = vst.msk [vmem:[#allocation3 + $0x38] sm:$0xff] %vm1087, %v1296
      %v1298 = vld [vmem:[#allocation3] sm:$0xff]
      %v1299 = vld [vmem:[#allocation3 + $0x8] sm:$0xff]
      %v1300 = vld [vmem:[#allocation3 + $0x10] sm:$0xff]
      %v1301 = vld [vmem:[#allocation3 + $0x18] sm:$0xff]
      %v1302 = vld [vmem:[#allocation3 + $0x20] sm:$0xff]
      %v1303 = vld [vmem:[#allocation3 + $0x28] sm:$0xff]
      %v1304 = vld [vmem:[#allocation3 + $0x30] sm:$0xff]
      %v1305 = vld [vmem:[#allocation3 + $0x38] sm:$0xff]
      %v1306 = vadd.f32 %v1298, %v1075
      %v1307 = vadd.f32 %v1299, %v1076
      %v1308 = vadd.f32 %v1300, %v1077
      %v1309 = vadd.f32 %v1301, %v1078
      %v1310 = vadd.f32 %v1302, %v1079
      %v1311 = vadd.f32 %v1303, %v1080
      %v1312 = vadd.f32 %v1304, %v1081
      %v1313 = vadd.f32 %v1305, %v1082
      %v1314 = vld [vmem:[%s948] sm:$0x1]
      %v1315 = vld [vmem:[%s951] sm:$0x1]
      %v1316 = vsel %vm1087, %v1306, 0.0
      %1317 = vadd.xlane.f32.xlu0 %v1316
      %v1318 = vpop.xlane.xlu0 %1317
      %v1319 = vsel %vm1087, %v1307, 0.0
      %1320 = vadd.xlane.f32.xlu0 %v1319
      %v1321 = vpop.xlane.xlu0 %1320
      %v1322 = vsel %vm1087, %v1308, 0.0
      %1323 = vadd.xlane.f32.xlu0 %v1322
      %v1324 = vpop.xlane.xlu0 %1323
      %v1325 = vsel %vm1087, %v1309, 0.0
      %1326 = vadd.xlane.f32.xlu0 %v1325
      %v1327 = vpop.xlane.xlu0 %1326
      %v1328 = vsel %vm1087, %v1310, 0.0
      %1329 = vadd.xlane.f32.xlu0 %v1328
      %v1330 = vpop.xlane.xlu0 %1329
      %v1331 = vsel %vm1087, %v1311, 0.0
      %1332 = vadd.xlane.f32.xlu0 %v1331
      %v1333 = vpop.xlane.xlu0 %1332
      %v1334 = vsel %vm1087, %v1312, 0.0
      %1335 = vadd.xlane.f32.xlu0 %v1334
      %v1336 = vpop.xlane.xlu0 %1335
      %v1337 = vsel %vm1087, %v1313, 0.0
      %1338 = vadd.xlane.f32.xlu0 %v1337
      %v1339 = vpop.xlane.xlu0 %1338
      %v1340 = vrcp.pop 32.0
      %v1341 = vmul.f32 32.0, %v1340
      %v1342 = vsub.f32 1.0, %v1341
      %v1343 = vmul.f32 %v1340, %v1342
      %v1344 = vadd.f32 %v1340, %v1343
      %vm1345 = vweird.f32 %v1340
      %v1346 = vsel %vm1345, %v1340, %v1344
      %v1347 = vmul.f32 %v1318, %v1346
      %v1348 = vmul.f32 %v1321, %v1346
      %v1349 = vmul.f32 %v1324, %v1346
      %v1350 = vmul.f32 %v1327, %v1346
      %v1351 = vmul.f32 %v1330, %v1346
      %v1352 = vmul.f32 %v1333, %v1346
      %v1353 = vmul.f32 %v1336, %v1346
      %v1354 = vmul.f32 %v1339, %v1346
      %v1355 = vsub.f32 %v1306, %v1347
      %v1356 = vsub.f32 %v1307, %v1348
      %v1357 = vsub.f32 %v1308, %v1349
      %v1358 = vsub.f32 %v1309, %v1350
      %v1359 = vsub.f32 %v1310, %v1351
      %v1360 = vsub.f32 %v1311, %v1352
      %v1361 = vsub.f32 %v1312, %v1353
      %v1362 = vsub.f32 %v1313, %v1354
      %v1363 = vmul.f32 %v1355, %v1355
      %v1364 = vmul.f32 %v1356, %v1356
      %v1365 = vmul.f32 %v1357, %v1357
      %v1366 = vmul.f32 %v1358, %v1358
      %v1367 = vmul.f32 %v1359, %v1359
      %v1368 = vmul.f32 %v1360, %v1360
      %v1369 = vmul.f32 %v1361, %v1361
      %v1370 = vmul.f32 %v1362, %v1362
      %v1371 = vsel %vm1087, %v1363, 0.0
      %1372 = vadd.xlane.f32.xlu0 %v1371
      %v1373 = vpop.xlane.xlu0 %1372
      %v1374 = vsel %vm1087, %v1364, 0.0
      %1375 = vadd.xlane.f32.xlu0 %v1374
      %v1376 = vpop.xlane.xlu0 %1375
      %v1377 = vsel %vm1087, %v1365, 0.0
      %1378 = vadd.xlane.f32.xlu0 %v1377
      %v1379 = vpop.xlane.xlu0 %1378
      %v1380 = vsel %vm1087, %v1366, 0.0
      %1381 = vadd.xlane.f32.xlu0 %v1380
      %v1382 = vpop.xlane.xlu0 %1381
      %v1383 = vsel %vm1087, %v1367, 0.0
      %1384 = vadd.xlane.f32.xlu0 %v1383
      %v1385 = vpop.xlane.xlu0 %1384
      %v1386 = vsel %vm1087, %v1368, 0.0
      %1387 = vadd.xlane.f32.xlu0 %v1386
      %v1388 = vpop.xlane.xlu0 %1387
      %v1389 = vsel %vm1087, %v1369, 0.0
      %1390 = vadd.xlane.f32.xlu0 %v1389
      %v1391 = vpop.xlane.xlu0 %1390
      %v1392 = vsel %vm1087, %v1370, 0.0
      %1393 = vadd.xlane.f32.xlu0 %v1392
      %v1394 = vpop.xlane.xlu0 %1393
      %v1395 = vmul.f32 %v1373, %v1346
      %v1396 = vmul.f32 %v1376, %v1346
      %v1397 = vmul.f32 %v1379, %v1346
      %v1398 = vmul.f32 %v1382, %v1346
      %v1399 = vmul.f32 %v1385, %v1346
      %v1400 = vmul.f32 %v1388, %v1346
      %v1401 = vmul.f32 %v1391, %v1346
      %v1402 = vmul.f32 %v1394, %v1346
      %v1403 = vadd.f32 %v1395, 1e-05
      %v1404 = vadd.f32 %v1396, 1e-05
      %v1405 = vadd.f32 %v1397, 1e-05
      %v1406 = vadd.f32 %v1398, 1e-05
      %v1407 = vadd.f32 %v1399, 1e-05
      %v1408 = vadd.f32 %v1400, 1e-05
      %v1409 = vadd.f32 %v1401, 1e-05
      %v1410 = vadd.f32 %v1402, 1e-05
      %v1411 = vrsqrt.pop %v1403
      %v1412 = vmul.f32 %v1411, %v1403
      %v1413 = vmul.f32 %v1412, %v1411
      %v1414 = vmul.f32 0.5, %v1413
      %v1415 = vsub.f32 1.5, %v1414
      %v1416 = vmul.f32 %v1411, %v1415
      %vm1417 = vweird.f32 %v1403
      %vm1418 = vweird.f32 %v1411
      %vm1419 = vmor %vm1417, %vm1418
      %v1420 = vsel %vm1419, %v1411, %v1416
      %v1421 = vrsqrt.pop %v1404
      %v1422 = vmul.f32 %v1421, %v1404
      %v1423 = vmul.f32 %v1422, %v1421
      %v1424 = vmul.f32 0.5, %v1423
      %v1425 = vsub.f32 1.5, %v1424
      %v1426 = vmul.f32 %v1421, %v1425
      %vm1427 = vweird.f32 %v1404
      %vm1428 = vweird.f32 %v1421
      %vm1429 = vmor %vm1427, %vm1428
      %v1430 = vsel %vm1429, %v1421, %v1426
      %v1431 = vrsqrt.pop %v1405
      %v1432 = vmul.f32 %v1431, %v1405
      %v1433 = vmul.f32 %v1432, %v1431
      %v1434 = vmul.f32 0.5, %v1433
      %v1435 = vsub.f32 1.5, %v1434
      %v1436 = vmul.f32 %v1431, %v1435
      %vm1437 = vweird.f32 %v1405
      %vm1438 = vweird.f32 %v1431
      %vm1439 = vmor %vm1437, %vm1438
      %v1440 = vsel %vm1439, %v1431, %v1436
      %v1441 = vrsqrt.pop %v1406
      %v1442 = vmul.f32 %v1441, %v1406
      %v1443 = vmul.f32 %v1442, %v1441
      %v1444 = vmul.f32 0.5, %v1443
      %v1445 = vsub.f32 1.5, %v1444
      %v1446 = vmul.f32 %v1441, %v1445
      %vm1447 = vweird.f32 %v1406
      %vm1448 = vweird.f32 %v1441
      %vm1449 = vmor %vm1447, %vm1448
      %v1450 = vsel %vm1449, %v1441, %v1446
      %v1451 = vrsqrt.pop %v1407
      %v1452 = vmul.f32 %v1451, %v1407
      %v1453 = vmul.f32 %v1452, %v1451
      %v1454 = vmul.f32 0.5, %v1453
      %v1455 = vsub.f32 1.5, %v1454
      %v1456 = vmul.f32 %v1451, %v1455
      %vm1457 = vweird.f32 %v1407
      %vm1458 = vweird.f32 %v1451
      %vm1459 = vmor %vm1457, %vm1458
      %v1460 = vsel %vm1459, %v1451, %v1456
      %v1461 = vrsqrt.pop %v1408
      %v1462 = vmul.f32 %v1461, %v1408
      %v1463 = vmul.f32 %v1462, %v1461
      %v1464 = vmul.f32 0.5, %v1463
      %v1465 = vsub.f32 1.5, %v1464
      %v1466 = vmul.f32 %v1461, %v1465
      %vm1467 = vweird.f32 %v1408
      %vm1468 = vweird.f32 %v1461
      %vm1469 = vmor %vm1467, %vm1468
      %v1470 = vsel %vm1469, %v1461, %v1466
      %v1471 = vrsqrt.pop %v1409
      %v1472 = vmul.f32 %v1471, %v1409
      %v1473 = vmul.f32 %v1472, %v1471
      %v1474 = vmul.f32 0.5, %v1473
      %v1475 = vsub.f32 1.5, %v1474
      %v1476 = vmul.f32 %v1471, %v1475
      %vm1477 = vweird.f32 %v1409
      %vm1478 = vweird.f32 %v1471
      %vm1479 = vmor %vm1477, %vm1478
      %v1480 = vsel %vm1479, %v1471, %v1476
      %v1481 = vrsqrt.pop %v1410
      %v1482 = vmul.f32 %v1481, %v1410
      %v1483 = vmul.f32 %v1482, %v1481
      %v1484 = vmul.f32 0.5, %v1483
      %v1485 = vsub.f32 1.5, %v1484
      %v1486 = vmul.f32 %v1481, %v1485
      %vm1487 = vweird.f32 %v1410
      %vm1488 = vweird.f32 %v1481
      %vm1489 = vmor %vm1487, %vm1488
      %v1490 = vsel %vm1489, %v1481, %v1486
      %v1491 = vmul.f32 %v1355, %v1420
      %v1492 = vmul.f32 %v1356, %v1430
      %v1493 = vmul.f32 %v1357, %v1440
      %v1494 = vmul.f32 %v1358, %v1450
      %v1495 = vmul.f32 %v1359, %v1460
      %v1496 = vmul.f32 %v1360, %v1470
      %v1497 = vmul.f32 %v1361, %v1480
      %v1498 = vmul.f32 %v1362, %v1490
      %v1500 = vperm.slane %v1314, 0
      %v1502 = vmul.f32 %v1491, %v1500
      %v1503 = vmul.f32 %v1492, %v1500
      %v1504 = vmul.f32 %v1493, %v1500
      %v1505 = vmul.f32 %v1494, %v1500
      %v1506 = vmul.f32 %v1495, %v1500
      %v1507 = vmul.f32 %v1496, %v1500
      %v1508 = vmul.f32 %v1497, %v1500
      %v1509 = vmul.f32 %v1498, %v1500
      %v1511 = vperm.slane %v1315, 0
      %v1513 = vadd.f32 %v1502, %v1511
      %v1514 = vadd.f32 %v1503, %v1511
      %v1515 = vadd.f32 %v1504, %v1511
      %v1516 = vadd.f32 %v1505, %v1511
      %v1517 = vadd.f32 %v1506, %v1511
      %v1518 = vadd.f32 %v1507, %v1511
      %v1519 = vadd.f32 %v1508, %v1511
      %v1520 = vadd.f32 %v1509, %v1511
      %v1521 = vld [vmem:[%s956] sm:$0xf]
      %v1522 = vld [vmem:[%s956 + $0x4] sm:$0xf]
      %v1523 = vld [vmem:[%s956 + $0x8] sm:$0xf]
      %v1524 = vld [vmem:[%s956 + $0xc] sm:$0xf]
      %v1525 = vpack.c.bf16 %v1514, %v1513
      %v1526 = vpack.c.bf16 %v1516, %v1515
      %v1527 = vpack.c.bf16 %v1518, %v1517
      %v1528 = vpack.c.bf16 %v1520, %v1519
      %v1529 = vld [vmem:[%s969] sm:$0x1]
      %v1531 = vperm.slane %v1529, 0
      %v1537 = vunpack.c.l.b16 %v1521
      %v1538 = vunpack.c.l.b16 %v1522
      %v1539 = vunpack.c.l.b16 %v1523
      %v1540 = vunpack.c.l.b16 %v1524
      %v1541 = vpack.c.b16 %v1538, %v1537
      %v1542 = vpack.c.b16 %v1540, %v1539
      %v1546 = vsel %vm1087, %v1525, 0
      %v1549 = vsel %vm1087, %v1526, 0
      %v1552 = vsel %vm1087, %v1527, 0
      %v1555 = vsel %vm1087, %v1528, 0
      %1557 = vmatpush.bf16.msra.mxu0 0
      %1558 = vmatpush.bf16.msra.mxu0 0
      %1559 = vmatpush.bf16.msra.mxu0 0
      %1560 = vmatpush.bf16.msra.mxu0 0
      %1561 = vmatpush.bf16.msra.mxu0 0
      %1562 = vmatpush.bf16.msra.mxu0 0
      %1563 = vmatpush.bf16.msra.mxu0 %v1542
      %1564 = vmatpush.bf16.msra.mxu0 %v1541
      %1565 = vmatmul.bf16.gmra.mxu0 %v1546
      %v1566 = vpop.f32.mrf.mxu0
      %v1567 = vadd.f32 %v1531, %v1566
      %v1568 = vpop.f32.mrf.mxu0
      %v1569 = vadd.f32 %v1531, %v1568
      %1570 = vmatmul.bf16.gmra.mxu0 %v1549
      %v1571 = vpop.f32.mrf.mxu0
      %v1572 = vadd.f32 %v1531, %v1571
      %v1573 = vpop.f32.mrf.mxu0
      %v1574 = vadd.f32 %v1531, %v1573
      %1575 = vmatmul.bf16.gmra.mxu0 %v1552
      %v1576 = vpop.f32.mrf.mxu0
      %v1577 = vadd.f32 %v1531, %v1576
      %v1578 = vpop.f32.mrf.mxu0
      %v1579 = vadd.f32 %v1531, %v1578
      %1580 = vmatmul.bf16.gmra.mxu0 %v1555
      %v1581 = vpop.f32.mrf.mxu0
      %v1582 = vadd.f32 %v1531, %v1581
      %v1583 = vpop.f32.mrf.mxu0
      %v1584 = vadd.f32 %v1531, %v1583
      %1585 = vdwg.mxu0
      %v1586 = vld [vmem:[%s961] sm:$0xf]
      %v1587 = vld [vmem:[%s961 + $0x4] sm:$0xf]
      %v1588 = vld [vmem:[%s961 + $0x8] sm:$0xf]
      %v1589 = vld [vmem:[%s961 + $0xc] sm:$0xf]
      %v1590 = vld [vmem:[%s972] sm:$0x1]
      %v1592 = vperm.slane %v1590, 0
      %v1598 = vunpack.c.l.b16 %v1586
      %v1599 = vunpack.c.l.b16 %v1587
      %v1600 = vunpack.c.l.b16 %v1588
      %v1601 = vunpack.c.l.b16 %v1589
      %v1602 = vpack.c.b16 %v1599, %v1598
      %v1603 = vpack.c.b16 %v1601, %v1600
      %1606 = vmatpush.bf16.msra.mxu0 0
      %1607 = vmatpush.bf16.msra.mxu0 0
      %1608 = vmatpush.bf16.msra.mxu0 0
      %1609 = vmatpush.bf16.msra.mxu0 0
      %1610 = vmatpush.bf16.msra.mxu0 0
      %1611 = vmatpush.bf16.msra.mxu0 0
      %1612 = vmatpush.bf16.msra.mxu0 %v1603
      %1613 = vmatpush.bf16.msra.mxu0 %v1602
      %1614 = vmatmul.bf16.gmra.mxu0 %v1546
      %v1615 = vpop.f32.mrf.mxu0
      %v1616 = vadd.f32 %v1592, %v1615
      %v1617 = vpop.f32.mrf.mxu0
      %v1618 = vadd.f32 %v1592, %v1617
      %1619 = vmatmul.bf16.gmra.mxu0 %v1549
      %v1620 = vpop.f32.mrf.mxu0
      %v1621 = vadd.f32 %v1592, %v1620
      %v1622 = vpop.f32.mrf.mxu0
      %v1623 = vadd.f32 %v1592, %v1622
      %1624 = vmatmul.bf16.gmra.mxu0 %v1552
      %v1625 = vpop.f32.mrf.mxu0
      %v1626 = vadd.f32 %v1592, %v1625
      %v1627 = vpop.f32.mrf.mxu0
      %v1628 = vadd.f32 %v1592, %v1627
      %1629 = vmatmul.bf16.gmra.mxu0 %v1555
      %v1630 = vpop.f32.mrf.mxu0
      %v1631 = vadd.f32 %v1592, %v1630
      %v1632 = vpop.f32.mrf.mxu0
      %v1633 = vadd.f32 %v1592, %v1632
      %1634 = vdwg.mxu0
      %v1635 = vld [vmem:[%s966] sm:$0xf]
      %v1636 = vld [vmem:[%s966 + $0x4] sm:$0xf]
      %v1637 = vld [vmem:[%s966 + $0x8] sm:$0xf]
      %v1638 = vld [vmem:[%s966 + $0xc] sm:$0xf]
      %v1639 = vld [vmem:[%s975] sm:$0x1]
      %v1641 = vperm.slane %v1639, 0
      %v1647 = vunpack.c.l.b16 %v1635
      %v1648 = vunpack.c.l.b16 %v1636
      %v1649 = vunpack.c.l.b16 %v1637
      %v1650 = vunpack.c.l.b16 %v1638
      %v1651 = vpack.c.b16 %v1648, %v1647
      %v1652 = vpack.c.b16 %v1650, %v1649
      %1655 = vmatpush.bf16.msra.mxu0 0
      %1656 = vmatpush.bf16.msra.mxu0 0
      %1657 = vmatpush.bf16.msra.mxu0 0
      %1658 = vmatpush.bf16.msra.mxu0 0
      %1659 = vmatpush.bf16.msra.mxu0 0
      %1660 = vmatpush.bf16.msra.mxu0 0
      %1661 = vmatpush.bf16.msra.mxu0 %v1652
      %1662 = vmatpush.bf16.msra.mxu0 %v1651
      %1663 = vmatmul.bf16.gmra.mxu0 %v1546
      %v1664 = vpop.f32.mrf.mxu0
      %v1665 = vadd.f32 %v1641, %v1664
      %v1666 = vpop.f32.mrf.mxu0
      %v1667 = vadd.f32 %v1641, %v1666
      %1668 = vmatmul.bf16.gmra.mxu0 %v1549
      %v1669 = vpop.f32.mrf.mxu0
      %v1670 = vadd.f32 %v1641, %v1669
      %v1671 = vpop.f32.mrf.mxu0
      %v1672 = vadd.f32 %v1641, %v1671
      %1673 = vmatmul.bf16.gmra.mxu0 %v1552
      %v1674 = vpop.f32.mrf.mxu0
      %v1675 = vadd.f32 %v1641, %v1674
      %v1676 = vpop.f32.mrf.mxu0
      %v1677 = vadd.f32 %v1641, %v1676
      %1678 = vmatmul.bf16.gmra.mxu0 %v1555
      %v1679 = vpop.f32.mrf.mxu0
      %v1680 = vadd.f32 %v1641, %v1679
      %v1681 = vpop.f32.mrf.mxu0
      %v1682 = vadd.f32 %v1641, %v1681
      %1683 = vdwg.mxu0
      %v1684 = vsel %vm1087, %v1616, -inf
      %v1685 = vsel %vm1087, %v1618, -inf
      %v1686 = vsel %vm1087, %v1621, -inf
      %v1687 = vsel %vm1087, %v1623, -inf
      %v1688 = vsel %vm1087, %v1626, -inf
      %v1689 = vmax.f32 %v1684, %v1688
      %v1690 = vsel %vm1087, %v1628, -inf
      %v1691 = vmax.f32 %v1685, %v1690
      %v1692 = vsel %vm1087, %v1631, -inf
      %v1693 = vmax.f32 %v1686, %v1692
      %v1694 = vsel %vm1087, %v1633, -inf
      %v1695 = vmax.f32 %v1687, %v1694
      %v1696 = vmax.f32 %v1689, %v1691
      %v1697 = vmax.f32 %v1693, %v1695
      %v1698 = vmax.f32 %v1696, %v1697
      %v1699 = vrot.slane %v1698, 4
      %v1700 = vmax.f32 %v1698, %v1699
      %v1701 = vrot.slane %v1700, 2
      %v1702 = vmax.f32 %v1700, %v1701
      %v1703 = vrot.slane %v1702, 1
      %v1704 = vmax.f32 %v1702, %v1703
      %v1705 = vsub.f32 %v1616, %v1704
      %v1706 = vsub.f32 %v1618, %v1704
      %v1707 = vsub.f32 %v1621, %v1704
      %v1708 = vsub.f32 %v1623, %v1704
      %v1709 = vsub.f32 %v1626, %v1704
      %v1710 = vsub.f32 %v1628, %v1704
      %v1711 = vsub.f32 %v1631, %v1704
      %v1712 = vsub.f32 %v1633, %v1704
      %v1713 = vmul.f32 %v1705, 1.442695
      %v1714 = vpow.pop %v1713
      %v1715 = vmul.f32 %v1706, 1.442695
      %v1716 = vpow.pop %v1715
      %v1717 = vmul.f32 %v1707, 1.442695
      %v1718 = vpow.pop %v1717
      %v1719 = vmul.f32 %v1708, 1.442695
      %v1720 = vpow.pop %v1719
      %v1721 = vmul.f32 %v1709, 1.442695
      %v1722 = vpow.pop %v1721
      %v1723 = vmul.f32 %v1710, 1.442695
      %v1724 = vpow.pop %v1723
      %v1725 = vmul.f32 %v1711, 1.442695
      %v1726 = vpow.pop %v1725
      %v1727 = vmul.f32 %v1712, 1.442695
      %v1728 = vpow.pop %v1727
      %1729 = vxpose.xlu0.b32.start [1/16] %v1714, 128
      %1730 = vxpose.xlu0.b32.cont [2/16] %v1716, 128
      %1731 = vxpose.xlu0.b32.cont [3/16] %v1718, 128
      %1732 = vxpose.xlu0.b32.cont [4/16] %v1720, 128
      %1733 = vxpose.xlu0.b32.cont [5/16] %v1722, 128
      %1734 = vxpose.xlu0.b32.cont [6/16] %v1724, 128
      %1735 = vxpose.xlu0.b32.cont [7/16] %v1726, 128
      %1736 = vxpose.xlu0.b32.cont [8/16] %v1728, 128
      %1737 = vxpose.xlu0.b32.cont [9/16] 0.0, 128
      %1738 = vxpose.xlu0.b32.cont [10/16] 0.0, 128
      %1739 = vxpose.xlu0.b32.cont [11/16] 0.0, 128
      %1740 = vxpose.xlu0.b32.cont [12/16] 0.0, 128
      %1741 = vxpose.xlu0.b32.cont [13/16] 0.0, 128
      %1742 = vxpose.xlu0.b32.cont [14/16] 0.0, 128
      %1743 = vxpose.xlu0.b32.cont [15/16] 0.0, 128
      %1744 = vxpose.xlu0.b32.end [16/16] 0.0, 128
      %v1745 = vpop.trf.xlu0
      %v1746 = vpop.trf.xlu0
      %v1747 = vpop.trf.xlu0
      %v1748 = vpop.trf.xlu0
      %v1749 = vpop.trf.xlu0
      %v1750 = vpop.trf.xlu0
      %v1751 = vpop.trf.xlu0
      %v1752 = vpop.trf.xlu0
      %v1753 = vpop.trf.xlu0
      %v1754 = vpop.trf.xlu0
      %v1755 = vpop.trf.xlu0
      %v1756 = vpop.trf.xlu0
      %v1757 = vpop.trf.xlu0
      %v1758 = vpop.trf.xlu0
      %v1759 = vpop.trf.xlu0
      %v1760 = vpop.trf.xlu0
      %vm1761 = vcmask 523264
      %v1763 = vsel %vm1761, %v1745, 0
      %v1766 = vsel %vm1761, %v1746, 0
      %v1769 = vsel %vm1761, %v1747, 0
      %v1772 = vsel %vm1761, %v1748, 0
      %1774 = vmatpush.msra.mxu0 0.0
      %1775 = vmatpush.msra.mxu0 0.0
      %1776 = vmatpush.msra.mxu0 0.0
      %1777 = vmatpush.msra.mxu0 0.0
      %1778 = vmatpush.msra.mxu0 0.0
      %1779 = vmatpush.msra.mxu0 0.0
      %1780 = vmatpush.msra.mxu0 0.0
      %1781 = vmatpush.msra.mxu0 0.0
      %1782 = vmatpush.msra.mxu0 %v1682
      %1783 = vmatpush.msra.mxu0 %v1680
      %1784 = vmatpush.msra.mxu0 %v1677
      %1785 = vmatpush.msra.mxu0 %v1675
      %1786 = vmatpush.msra.mxu0 %v1672
      %1787 = vmatpush.msra.mxu0 %v1670
      %1788 = vmatpush.msra.mxu0 %v1667
      %1789 = vmatpush.msra.mxu0 %v1665
      %1790 = vmatmul.f32.gmra.mxu0 %v1763
      %v1791 = vpop.f32.mrf.mxu0
      %v1792 = vadd.f32 0.0, %v1791
      %1793 = vmatmul.f32.gmra.mxu0 %v1766
      %v1794 = vpop.f32.mrf.mxu0
      %v1795 = vadd.f32 0.0, %v1794
      %1796 = vmatmul.f32.gmra.mxu0 %v1769
      %v1797 = vpop.f32.mrf.mxu0
      %v1798 = vadd.f32 0.0, %v1797
      %1799 = vmatmul.f32.gmra.mxu0 %v1772
      %v1800 = vpop.f32.mrf.mxu0
      %v1801 = vadd.f32 0.0, %v1800
      %1802 = vdwg.mxu0
      %1803 = vmatpush.msra.mxu0 0.0
      %1804 = vmatpush.msra.mxu0 0.0
      %1805 = vmatpush.msra.mxu0 0.0
      %1806 = vmatpush.msra.mxu0 0.0
      %1807 = vmatpush.msra.mxu0 0.0
      %1808 = vmatpush.msra.mxu0 0.0
      %1809 = vmatpush.msra.mxu0 0.0
      %1810 = vmatpush.msra.mxu0 0.0
      %1811 = vmatpush.msra.mxu0 1.0
      %1812 = vmatpush.msra.mxu0 1.0
      %1813 = vmatpush.msra.mxu0 1.0
      %1814 = vmatpush.msra.mxu0 1.0
      %1815 = vmatpush.msra.mxu0 1.0
      %1816 = vmatpush.msra.mxu0 1.0
      %1817 = vmatpush.msra.mxu0 1.0
      %1818 = vmatpush.msra.mxu0 1.0
      %1819 = vmatmul.f32.gmra.mxu0 %v1763
      %v1820 = vpop.f32.mrf.mxu0
      %v1821 = vadd.f32 0.0, %v1820
      %1822 = vmatmul.f32.gmra.mxu0 %v1766
      %v1823 = vpop.f32.mrf.mxu0
      %v1824 = vadd.f32 0.0, %v1823
      %1825 = vmatmul.f32.gmra.mxu0 %v1769
      %v1826 = vpop.f32.mrf.mxu0
      %v1827 = vadd.f32 0.0, %v1826
      %1828 = vmatmul.f32.gmra.mxu0 %v1772
      %v1829 = vpop.f32.mrf.mxu0
      %v1830 = vadd.f32 0.0, %v1829
      %1831 = vdwg.mxu0
      %v1832 = vld [vmem:[%s2] sm:$0xff]
      %v1833 = vld [vmem:[%s2 + $0x8] sm:$0xff]
      %v1834 = vld [vmem:[%s2 + $0x10] sm:$0xff]
      %v1835 = vld [vmem:[%s2 + $0x18] sm:$0xff]
      %v1836 = vrcp.pop %v1821
      %v1837 = vrcp.pop %v1824
      %v1838 = vrcp.pop %v1827
      %v1839 = vrcp.pop %v1830
      %1841 = vset.pattern.permute.xlu0 0
      %1842 = vperm.xlu0 %1841, %v1836
      %v1843 = vpop.permute.xlu0 %1842
      %1846 = vset.pattern.permute.xlu0 0
      %1847 = vperm.xlu0 %1846, %v1837
      %v1848 = vpop.permute.xlu0 %1847
      %1851 = vset.pattern.permute.xlu0 0
      %1852 = vperm.xlu0 %1851, %v1838
      %v1853 = vpop.permute.xlu0 %1852
      %1856 = vset.pattern.permute.xlu0 0
      %1857 = vperm.xlu0 %1856, %v1839
      %v1858 = vpop.permute.xlu0 %1857
      %v1860 = vmul.f32 %v1832, %v1843
      %v1861 = vmul.f32 %v1833, %v1848
      %v1862 = vmul.f32 %v1834, %v1853
      %v1863 = vmul.f32 %v1835, %v1858
      %v1864 = vmul.f32 %v1083, 0.5
      %v1866 = vperm.slane %v1864, 0
      %v1868 = vmul.f32 %v1860, %v1866
      %v1869 = vmul.f32 %v1861, %v1866
      %v1870 = vmul.f32 %v1862, %v1866
      %v1871 = vmul.f32 %v1863, %v1866
      %v1872 = vmul.f32 %v1792, %v1868
      %v1873 = vmul.f32 %v1795, %v1869
      %v1874 = vmul.f32 %v1798, %v1870
      %v1875 = vmul.f32 %v1801, %v1871
      %v1876 = vpack.c.bf16 %v1569, %v1567
      %v1877 = vpack.c.bf16 %v1574, %v1572
      %v1878 = vpack.c.bf16 %v1579, %v1577
      %v1879 = vpack.c.bf16 %v1584, %v1582
      %v1880 = vpack.c.bf16 %v1873, %v1872
      %v1881 = vpack.c.bf16 %v1875, %v1874
      %v1882 = vld [vmem:[%s5] sm:$0xff]
      %v1883 = vld [vmem:[%s5 + $0x8] sm:$0xff]
      %v1884 = vld [vmem:[%s5 + $0x10] sm:$0xff]
      %v1885 = vld [vmem:[%s5 + $0x18] sm:$0xff]
      %v1886 = vld [vmem:[%s5 + $0x20] sm:$0xff]
      %v1887 = vld [vmem:[%s5 + $0x28] sm:$0xff]
      %v1888 = vld [vmem:[%s5 + $0x30] sm:$0x1]
      %v1890 = vperm.slane %v1083, 0
      %v1892 = vmul.f32 %v1882, %v1890
      %v1893 = vmul.f32 %v1883, %v1890
      %v1894 = vmul.f32 %v1884, %v1890
      %v1895 = vmul.f32 %v1885, %v1890
      %v1896 = vmul.f32 %v1886, %v1890
      %v1897 = vmul.f32 %v1887, %v1890
      %v1898 = vmul.f32 %v1888, %v1890
      %v1899 = vld [vmem:[%s6] sm:$0x1]
      %v1900 = vmul.f32 %v1899, %v1083
      %1901 = vst.msk [vmem:[#allocation2 + $0x50] sm:$0xff] %vm1087, %v1665
      %1902 = vst.msk [vmem:[#allocation2 + $0x68] sm:$0xff] %vm1087, %v1667
      %1903 = vst.msk [vmem:[#allocation2 + $0x80] sm:$0xff] %vm1087, %v1670
      %1904 = vst.msk [vmem:[#allocation2 + $0x98] sm:$0xff] %vm1087, %v1672
      %1905 = vst.msk [vmem:[#allocation2 + $0xb0] sm:$0xff] %vm1087, %v1675
      %1906 = vst.msk [vmem:[#allocation2 + $0xc8] sm:$0xff] %vm1087, %v1677
      %1907 = vst.msk [vmem:[#allocation2 + $0xe0] sm:$0xff] %vm1087, %v1680
      %1908 = vst.msk [vmem:[#allocation2 + $0xf8] sm:$0xff] %vm1087, %v1682
      %v1909 = vld [vmem:[#allocation2 + $0x5] sm:$0xff]
      %v1910 = vld [vmem:[#allocation2 + $0x1d] sm:$0xff]
      %v1911 = vld [vmem:[#allocation2 + $0x35] sm:$0xff]
      %v1912 = vld [vmem:[#allocation2 + $0x4d] sm:$0xff]
      %v1913 = vld [vmem:[#allocation2 + $0x65] sm:$0xff]
      %v1914 = vld [vmem:[#allocation2 + $0x7d] sm:$0xff]
      %v1915 = vld [vmem:[#allocation2 + $0x95] sm:$0xff]
      %v1916 = vld [vmem:[#allocation2 + $0xad] sm:$0xff]
      %v1917 = vperm.slane %v1892, 0
      %v1918 = vmul.f32 %v1909, %v1917
      %v1919 = vmul.f32 %v1910, %v1917
      %v1920 = vmul.f32 %v1911, %v1917
      %v1921 = vmul.f32 %v1912, %v1917
      %v1922 = vmul.f32 %v1913, %v1917
      %v1923 = vmul.f32 %v1914, %v1917
      %v1924 = vmul.f32 %v1915, %v1917
      %v1925 = vmul.f32 %v1916, %v1917
      %v1926 = vadd.f32 %v1918, 0.0
      %v1927 = vadd.f32 %v1919, 0.0
      %v1928 = vadd.f32 %v1920, 0.0
      %v1929 = vadd.f32 %v1921, 0.0
      %v1930 = vadd.f32 %v1922, 0.0
      %v1931 = vadd.f32 %v1923, 0.0
      %v1932 = vadd.f32 %v1924, 0.0
      %v1933 = vadd.f32 %v1925, 0.0
      %v1934 = vld [vmem:[#allocation2 + $0x6] sm:$0xff]
      %v1935 = vld [vmem:[#allocation2 + $0x1e] sm:$0xff]
      %v1936 = vld [vmem:[#allocation2 + $0x36] sm:$0xff]
      %v1937 = vld [vmem:[#allocation2 + $0x4e] sm:$0xff]
      %v1938 = vld [vmem:[#allocation2 + $0x66] sm:$0xff]
      %v1939 = vld [vmem:[#allocation2 + $0x7e] sm:$0xff]
      %v1940 = vld [vmem:[#allocation2 + $0x96] sm:$0xff]
      %v1941 = vld [vmem:[#allocation2 + $0xae] sm:$0xff]
      %v1942 = vperm.slane %v1892, 1
      %v1943 = vmul.f32 %v1934, %v1942
      %v1944 = vmul.f32 %v1935, %v1942
      %v1945 = vmul.f32 %v1936, %v1942
      %v1946 = vmul.f32 %v1937, %v1942
      %v1947 = vmul.f32 %v1938, %v1942
      %v1948 = vmul.f32 %v1939, %v1942
      %v1949 = vmul.f32 %v1940, %v1942
      %v1950 = vmul.f32 %v1941, %v1942
      %v1951 = vadd.f32 %v1926, %v1943
      %v1952 = vadd.f32 %v1927, %v1944
      %v1953 = vadd.f32 %v1928, %v1945
      %v1954 = vadd.f32 %v1929, %v1946
      %v1955 = vadd.f32 %v1930, %v1947
      %v1956 = vadd.f32 %v1931, %v1948
      %v1957 = vadd.f32 %v1932, %v1949
      %v1958 = vadd.f32 %v1933, %v1950
      %v1959 = vld [vmem:[#allocation2 + $0x7] sm:$0xff]
      %v1960 = vld [vmem:[#allocation2 + $0x1f] sm:$0xff]
      %v1961 = vld [vmem:[#allocation2 + $0x37] sm:$0xff]
      %v1962 = vld [vmem:[#allocation2 + $0x4f] sm:$0xff]
      %v1963 = vld [vmem:[#allocation2 + $0x67] sm:$0xff]
      %v1964 = vld [vmem:[#allocation2 + $0x7f] sm:$0xff]
      %v1965 = vld [vmem:[#allocation2 + $0x97] sm:$0xff]
      %v1966 = vld [vmem:[#allocation2 + $0xaf] sm:$0xff]
      %v1967 = vperm.slane %v1892, 2
      %v1968 = vmul.f32 %v1959, %v1967
      %v1969 = vmul.f32 %v1960, %v1967
      %v1970 = vmul.f32 %v1961, %v1967
      %v1971 = vmul.f32 %v1962, %v1967
      %v1972 = vmul.f32 %v1963, %v1967
      %v1973 = vmul.f32 %v1964, %v1967
      %v1974 = vmul.f32 %v1965, %v1967
      %v1975 = vmul.f32 %v1966, %v1967
      %v1976 = vadd.f32 %v1951, %v1968
      %v1977 = vadd.f32 %v1952, %v1969
      %v1978 = vadd.f32 %v1953, %v1970
      %v1979 = vadd.f32 %v1954, %v1971
      %v1980 = vadd.f32 %v1955, %v1972
      %v1981 = vadd.f32 %v1956, %v1973
      %v1982 = vadd.f32 %v1957, %v1974
      %v1983 = vadd.f32 %v1958, %v1975
      %v1984 = vld [vmem:[#allocation2 + $0x8] sm:$0xff]
      %v1985 = vld [vmem:[#allocation2 + $0x20] sm:$0xff]
      %v1986 = vld [vmem:[#allocation2 + $0x38] sm:$0xff]
      %v1987 = vld [vmem:[#allocation2 + $0x50] sm:$0xff]
      %v1988 = vld [vmem:[#allocation2 + $0x68] sm:$0xff]
      %v1989 = vld [vmem:[#allocation2 + $0x80] sm:$0xff]
      %v1990 = vld [vmem:[#allocation2 + $0x98] sm:$0xff]
      %v1991 = vld [vmem:[#allocation2 + $0xb0] sm:$0xff]
      %v1992 = vperm.slane %v1892, 3
      %v1993 = vmul.f32 %v1984, %v1992
      %v1994 = vmul.f32 %v1985, %v1992
      %v1995 = vmul.f32 %v1986, %v1992
      %v1996 = vmul.f32 %v1987, %v1992
      %v1997 = vmul.f32 %v1988, %v1992
      %v1998 = vmul.f32 %v1989, %v1992
      %v1999 = vmul.f32 %v1990, %v1992
      %v2000 = vmul.f32 %v1991, %v1992
      %v2001 = vadd.f32 %v1976, %v1993
      %v2002 = vadd.f32 %v1977, %v1994
      %v2003 = vadd.f32 %v1978, %v1995
      %v2004 = vadd.f32 %v1979, %v1996
      %v2005 = vadd.f32 %v1980, %v1997
      %v2006 = vadd.f32 %v1981, %v1998
      %v2007 = vadd.f32 %v1982, %v1999
      %v2008 = vadd.f32 %v1983, %v2000
      %v2009 = vld [vmem:[#allocation2 + $0x9] sm:$0xff]
      %v2010 = vld [vmem:[#allocation2 + $0x21] sm:$0xff]
      %v2011 = vld [vmem:[#allocation2 + $0x39] sm:$0xff]
      %v2012 = vld [vmem:[#allocation2 + $0x51] sm:$0xff]
      %v2013 = vld [vmem:[#allocation2 + $0x69] sm:$0xff]
      %v2014 = vld [vmem:[#allocation2 + $0x81] sm:$0xff]
      %v2015 = vld [vmem:[#allocation2 + $0x99] sm:$0xff]
      %v2016 = vld [vmem:[#allocation2 + $0xb1] sm:$0xff]
      %v2017 = vperm.slane %v1892, 4
      %v2018 = vmul.f32 %v2009, %v2017
      %v2019 = vmul.f32 %v2010, %v2017
      %v2020 = vmul.f32 %v2011, %v2017
      %v2021 = vmul.f32 %v2012, %v2017
      %v2022 = vmul.f32 %v2013, %v2017
      %v2023 = vmul.f32 %v2014, %v2017
      %v2024 = vmul.f32 %v2015, %v2017
      %v2025 = vmul.f32 %v2016, %v2017
      %v2026 = vadd.f32 %v2001, %v2018
      %v2027 = vadd.f32 %v2002, %v2019
      %v2028 = vadd.f32 %v2003, %v2020
      %v2029 = vadd.f32 %v2004, %v2021
      %v2030 = vadd.f32 %v2005, %v2022
      %v2031 = vadd.f32 %v2006, %v2023
      %v2032 = vadd.f32 %v2007, %v2024
      %v2033 = vadd.f32 %v2008, %v2025
      %v2034 = vld [vmem:[#allocation2 + $0xa] sm:$0xff]
      %v2035 = vld [vmem:[#allocation2 + $0x22] sm:$0xff]
      %v2036 = vld [vmem:[#allocation2 + $0x3a] sm:$0xff]
      %v2037 = vld [vmem:[#allocation2 + $0x52] sm:$0xff]
      %v2038 = vld [vmem:[#allocation2 + $0x6a] sm:$0xff]
      %v2039 = vld [vmem:[#allocation2 + $0x82] sm:$0xff]
      %v2040 = vld [vmem:[#allocation2 + $0x9a] sm:$0xff]
      %v2041 = vld [vmem:[#allocation2 + $0xb2] sm:$0xff]
      %v2042 = vperm.slane %v1892, 5
      %v2043 = vmul.f32 %v2034, %v2042
      %v2044 = vmul.f32 %v2035, %v2042
      %v2045 = vmul.f32 %v2036, %v2042
      %v2046 = vmul.f32 %v2037, %v2042
      %v2047 = vmul.f32 %v2038, %v2042
      %v2048 = vmul.f32 %v2039, %v2042
      %v2049 = vmul.f32 %v2040, %v2042
      %v2050 = vmul.f32 %v2041, %v2042
      %v2051 = vadd.f32 %v2026, %v2043
      %v2052 = vadd.f32 %v2027, %v2044
      %v2053 = vadd.f32 %v2028, %v2045
      %v2054 = vadd.f32 %v2029, %v2046
      %v2055 = vadd.f32 %v2030, %v2047
      %v2056 = vadd.f32 %v2031, %v2048
      %v2057 = vadd.f32 %v2032, %v2049
      %v2058 = vadd.f32 %v2033, %v2050
      %v2059 = vld [vmem:[#allocation2 + $0xb] sm:$0xff]
      %v2060 = vld [vmem:[#allocation2 + $0x23] sm:$0xff]
      %v2061 = vld [vmem:[#allocation2 + $0x3b] sm:$0xff]
      %v2062 = vld [vmem:[#allocation2 + $0x53] sm:$0xff]
      %v2063 = vld [vmem:[#allocation2 + $0x6b] sm:$0xff]
      %v2064 = vld [vmem:[#allocation2 + $0x83] sm:$0xff]
      %v2065 = vld [vmem:[#allocation2 + $0x9b] sm:$0xff]
      %v2066 = vld [vmem:[#allocation2 + $0xb3] sm:$0xff]
      %v2067 = vperm.slane %v1892, 6
      %v2068 = vmul.f32 %v2059, %v2067
      %v2069 = vmul.f32 %v2060, %v2067
      %v2070 = vmul.f32 %v2061, %v2067
      %v2071 = vmul.f32 %v2062, %v2067
      %v2072 = vmul.f32 %v2063, %v2067
      %v2073 = vmul.f32 %v2064, %v2067
      %v2074 = vmul.f32 %v2065, %v2067
      %v2075 = vmul.f32 %v2066, %v2067
      %v2076 = vadd.f32 %v2051, %v2068
      %v2077 = vadd.f32 %v2052, %v2069
      %v2078 = vadd.f32 %v2053, %v2070
      %v2079 = vadd.f32 %v2054, %v2071
      %v2080 = vadd.f32 %v2055, %v2072
      %v2081 = vadd.f32 %v2056, %v2073
      %v2082 = vadd.f32 %v2057, %v2074
      %v2083 = vadd.f32 %v2058, %v2075
      %v2084 = vld [vmem:[#allocation2 + $0xc5] sm:$0xff]
      %v2085 = vperm.slane %v1892, 7
      %v2086 = vmul.f32 %v1910, %v2085
      %v2087 = vmul.f32 %v1911, %v2085
      %v2088 = vmul.f32 %v1912, %v2085
      %v2089 = vmul.f32 %v1913, %v2085
      %v2090 = vmul.f32 %v1914, %v2085
      %v2091 = vmul.f32 %v1915, %v2085
      %v2092 = vmul.f32 %v1916, %v2085
      %v2093 = vmul.f32 %v2084, %v2085
      %v2094 = vadd.f32 %v2076, %v2086
      %v2095 = vadd.f32 %v2077, %v2087
      %v2096 = vadd.f32 %v2078, %v2088
      %v2097 = vadd.f32 %v2079, %v2089
      %v2098 = vadd.f32 %v2080, %v2090
      %v2099 = vadd.f32 %v2081, %v2091
      %v2100 = vadd.f32 %v2082, %v2092
      %v2101 = vadd.f32 %v2083, %v2093
      %v2102 = vld [vmem:[#allocation2 + $0xc6] sm:$0xff]
      %v2103 = vperm.slane %v1893, 0
      %v2104 = vmul.f32 %v1935, %v2103
      %v2105 = vmul.f32 %v1936, %v2103
      %v2106 = vmul.f32 %v1937, %v2103
      %v2107 = vmul.f32 %v1938, %v2103
      %v2108 = vmul.f32 %v1939, %v2103
      %v2109 = vmul.f32 %v1940, %v2103
      %v2110 = vmul.f32 %v1941, %v2103
      %v2111 = vmul.f32 %v2102, %v2103
      %v2112 = vadd.f32 %v2094, %v2104
      %v2113 = vadd.f32 %v2095, %v2105
      %v2114 = vadd.f32 %v2096, %v2106
      %v2115 = vadd.f32 %v2097, %v2107
      %v2116 = vadd.f32 %v2098, %v2108
      %v2117 = vadd.f32 %v2099, %v2109
      %v2118 = vadd.f32 %v2100, %v2110
      %v2119 = vadd.f32 %v2101, %v2111
      %v2120 = vld [vmem:[#allocation2 + $0xc7] sm:$0xff]
      %v2121 = vperm.slane %v1893, 1
      %v2122 = vmul.f32 %v1960, %v2121
      %v2123 = vmul.f32 %v1961, %v2121
      %v2124 = vmul.f32 %v1962, %v2121
      %v2125 = vmul.f32 %v1963, %v2121
      %v2126 = vmul.f32 %v1964, %v2121
      %v2127 = vmul.f32 %v1965, %v2121
      %v2128 = vmul.f32 %v1966, %v2121
      %v2129 = vmul.f32 %v2120, %v2121
      %v2130 = vadd.f32 %v2112, %v2122
      %v2131 = vadd.f32 %v2113, %v2123
      %v2132 = vadd.f32 %v2114, %v2124
      %v2133 = vadd.f32 %v2115, %v2125
      %v2134 = vadd.f32 %v2116, %v2126
      %v2135 = vadd.f32 %v2117, %v2127
      %v2136 = vadd.f32 %v2118, %v2128
      %v2137 = vadd.f32 %v2119, %v2129
      %v2138 = vld [vmem:[#allocation2 + $0xc8] sm:$0xff]
      %v2139 = vperm.slane %v1893, 2
      %v2140 = vmul.f32 %v1985, %v2139
      %v2141 = vmul.f32 %v1986, %v2139
      %v2142 = vmul.f32 %v1987, %v2139
      %v2143 = vmul.f32 %v1988, %v2139
      %v2144 = vmul.f32 %v1989, %v2139
      %v2145 = vmul.f32 %v1990, %v2139
      %v2146 = vmul.f32 %v1991, %v2139
      %v2147 = vmul.f32 %v2138, %v2139
      %v2148 = vadd.f32 %v2130, %v2140
      %v2149 = vadd.f32 %v2131, %v2141
      %v2150 = vadd.f32 %v2132, %v2142
      %v2151 = vadd.f32 %v2133, %v2143
      %v2152 = vadd.f32 %v2134, %v2144
      %v2153 = vadd.f32 %v2135, %v2145
      %v2154 = vadd.f32 %v2136, %v2146
      %v2155 = vadd.f32 %v2137, %v2147
      %v2156 = vld [vmem:[#allocation2 + $0xc9] sm:$0xff]
      %v2157 = vperm.slane %v1893, 3
      %v2158 = vmul.f32 %v2010, %v2157
      %v2159 = vmul.f32 %v2011, %v2157
      %v2160 = vmul.f32 %v2012, %v2157
      %v2161 = vmul.f32 %v2013, %v2157
      %v2162 = vmul.f32 %v2014, %v2157
      %v2163 = vmul.f32 %v2015, %v2157
      %v2164 = vmul.f32 %v2016, %v2157
      %v2165 = vmul.f32 %v2156, %v2157
      %v2166 = vadd.f32 %v2148, %v2158
      %v2167 = vadd.f32 %v2149, %v2159
      %v2168 = vadd.f32 %v2150, %v2160
      %v2169 = vadd.f32 %v2151, %v2161
      %v2170 = vadd.f32 %v2152, %v2162
      %v2171 = vadd.f32 %v2153, %v2163
      %v2172 = vadd.f32 %v2154, %v2164
      %v2173 = vadd.f32 %v2155, %v2165
      %v2174 = vld [vmem:[#allocation2 + $0xca] sm:$0xff]
      %v2175 = vperm.slane %v1893, 4
      %v2176 = vmul.f32 %v2035, %v2175
      %v2177 = vmul.f32 %v2036, %v2175
      %v2178 = vmul.f32 %v2037, %v2175
      %v2179 = vmul.f32 %v2038, %v2175
      %v2180 = vmul.f32 %v2039, %v2175
      %v2181 = vmul.f32 %v2040, %v2175
      %v2182 = vmul.f32 %v2041, %v2175
      %v2183 = vmul.f32 %v2174, %v2175
      %v2184 = vadd.f32 %v2166, %v2176
      %v2185 = vadd.f32 %v2167, %v2177
      %v2186 = vadd.f32 %v2168, %v2178
      %v2187 = vadd.f32 %v2169, %v2179
      %v2188 = vadd.f32 %v2170, %v2180
      %v2189 = vadd.f32 %v2171, %v2181
      %v2190 = vadd.f32 %v2172, %v2182
      %v2191 = vadd.f32 %v2173, %v2183
      %v2192 = vld [vmem:[#allocation2 + $0xcb] sm:$0xff]
      %v2193 = vperm.slane %v1893, 5
      %v2194 = vmul.f32 %v2060, %v2193
      %v2195 = vmul.f32 %v2061, %v2193
      %v2196 = vmul.f32 %v2062, %v2193
      %v2197 = vmul.f32 %v2063, %v2193
      %v2198 = vmul.f32 %v2064, %v2193
      %v2199 = vmul.f32 %v2065, %v2193
      %v2200 = vmul.f32 %v2066, %v2193
      %v2201 = vmul.f32 %v2192, %v2193
      %v2202 = vadd.f32 %v2184, %v2194
      %v2203 = vadd.f32 %v2185, %v2195
      %v2204 = vadd.f32 %v2186, %v2196
      %v2205 = vadd.f32 %v2187, %v2197
      %v2206 = vadd.f32 %v2188, %v2198
      %v2207 = vadd.f32 %v2189, %v2199
      %v2208 = vadd.f32 %v2190, %v2200
      %v2209 = vadd.f32 %v2191, %v2201
      %v2210 = vld [vmem:[#allocation2 + $0xdd] sm:$0xff]
      %v2211 = vperm.slane %v1893, 6
      %v2212 = vmul.f32 %v1911, %v2211
      %v2213 = vmul.f32 %v1912, %v2211
      %v2214 = vmul.f32 %v1913, %v2211
      %v2215 = vmul.f32 %v1914, %v2211
      %v2216 = vmul.f32 %v1915, %v2211
      %v2217 = vmul.f32 %v1916, %v2211
      %v2218 = vmul.f32 %v2084, %v2211
      %v2219 = vmul.f32 %v2210, %v2211
      %v2220 = vadd.f32 %v2202, %v2212
      %v2221 = vadd.f32 %v2203, %v2213
      %v2222 = vadd.f32 %v2204, %v2214
      %v2223 = vadd.f32 %v2205, %v2215
      %v2224 = vadd.f32 %v2206, %v2216
      %v2225 = vadd.f32 %v2207, %v2217
      %v2226 = vadd.f32 %v2208, %v2218
      %v2227 = vadd.f32 %v2209, %v2219
      %v2228 = vld [vmem:[#allocation2 + $0xde] sm:$0xff]
      %v2229 = vperm.slane %v1893, 7
      %v2230 = vmul.f32 %v1936, %v2229
      %v2231 = vmul.f32 %v1937, %v2229
      %v2232 = vmul.f32 %v1938, %v2229
      %v2233 = vmul.f32 %v1939, %v2229
      %v2234 = vmul.f32 %v1940, %v2229
      %v2235 = vmul.f32 %v1941, %v2229
      %v2236 = vmul.f32 %v2102, %v2229
      %v2237 = vmul.f32 %v2228, %v2229
      %v2238 = vadd.f32 %v2220, %v2230
      %v2239 = vadd.f32 %v2221, %v2231
      %v2240 = vadd.f32 %v2222, %v2232
      %v2241 = vadd.f32 %v2223, %v2233
      %v2242 = vadd.f32 %v2224, %v2234
      %v2243 = vadd.f32 %v2225, %v2235
      %v2244 = vadd.f32 %v2226, %v2236
      %v2245 = vadd.f32 %v2227, %v2237
      %v2246 = vld [vmem:[#allocation2 + $0xdf] sm:$0xff]
      %v2247 = vperm.slane %v1894, 0
      %v2248 = vmul.f32 %v1961, %v2247
      %v2249 = vmul.f32 %v1962, %v2247
      %v2250 = vmul.f32 %v1963, %v2247
      %v2251 = vmul.f32 %v1964, %v2247
      %v2252 = vmul.f32 %v1965, %v2247
      %v2253 = vmul.f32 %v1966, %v2247
      %v2254 = vmul.f32 %v2120, %v2247
      %v2255 = vmul.f32 %v2246, %v2247
      %v2256 = vadd.f32 %v2238, %v2248
      %v2257 = vadd.f32 %v2239, %v2249
      %v2258 = vadd.f32 %v2240, %v2250
      %v2259 = vadd.f32 %v2241, %v2251
      %v2260 = vadd.f32 %v2242, %v2252
      %v2261 = vadd.f32 %v2243, %v2253
      %v2262 = vadd.f32 %v2244, %v2254
      %v2263 = vadd.f32 %v2245, %v2255
      %v2264 = vld [vmem:[#allocation2 + $0xe0] sm:$0xff]
      %v2265 = vperm.slane %v1894, 1
      %v2266 = vmul.f32 %v1986, %v2265
      %v2267 = vmul.f32 %v1987, %v2265
      %v2268 = vmul.f32 %v1988, %v2265
      %v2269 = vmul.f32 %v1989, %v2265
      %v2270 = vmul.f32 %v1990, %v2265
      %v2271 = vmul.f32 %v1991, %v2265
      %v2272 = vmul.f32 %v2138, %v2265
      %v2273 = vmul.f32 %v2264, %v2265
      %v2274 = vadd.f32 %v2256, %v2266
      %v2275 = vadd.f32 %v2257, %v2267
      %v2276 = vadd.f32 %v2258, %v2268
      %v2277 = vadd.f32 %v2259, %v2269
      %v2278 = vadd.f32 %v2260, %v2270
      %v2279 = vadd.f32 %v2261, %v2271
      %v2280 = vadd.f32 %v2262, %v2272
      %v2281 = vadd.f32 %v2263, %v2273
      %v2282 = vld [vmem:[#allocation2 + $0xe1] sm:$0xff]
      %v2283 = vperm.slane %v1894, 2
      %v2284 = vmul.f32 %v2011, %v2283
      %v2285 = vmul.f32 %v2012, %v2283
      %v2286 = vmul.f32 %v2013, %v2283
      %v2287 = vmul.f32 %v2014, %v2283
      %v2288 = vmul.f32 %v2015, %v2283
      %v2289 = vmul.f32 %v2016, %v2283
      %v2290 = vmul.f32 %v2156, %v2283
      %v2291 = vmul.f32 %v2282, %v2283
      %v2292 = vadd.f32 %v2274, %v2284
      %v2293 = vadd.f32 %v2275, %v2285
      %v2294 = vadd.f32 %v2276, %v2286
      %v2295 = vadd.f32 %v2277, %v2287
      %v2296 = vadd.f32 %v2278, %v2288
      %v2297 = vadd.f32 %v2279, %v2289
      %v2298 = vadd.f32 %v2280, %v2290
      %v2299 = vadd.f32 %v2281, %v2291
      %v2300 = vld [vmem:[#allocation2 + $0xe2] sm:$0xff]
      %v2301 = vperm.slane %v1894, 3
      %v2302 = vmul.f32 %v2036, %v2301
      %v2303 = vmul.f32 %v2037, %v2301
      %v2304 = vmul.f32 %v2038, %v2301
      %v2305 = vmul.f32 %v2039, %v2301
      %v2306 = vmul.f32 %v2040, %v2301
      %v2307 = vmul.f32 %v2041, %v2301
      %v2308 = vmul.f32 %v2174, %v2301
      %v2309 = vmul.f32 %v2300, %v2301
      %v2310 = vadd.f32 %v2292, %v2302
      %v2311 = vadd.f32 %v2293, %v2303
      %v2312 = vadd.f32 %v2294, %v2304
      %v2313 = vadd.f32 %v2295, %v2305
      %v2314 = vadd.f32 %v2296, %v2306
      %v2315 = vadd.f32 %v2297, %v2307
      %v2316 = vadd.f32 %v2298, %v2308
      %v2317 = vadd.f32 %v2299, %v2309
      %v2318 = vld [vmem:[#allocation2 + $0xe3] sm:$0xff]
      %v2319 = vperm.slane %v1894, 4
      %v2320 = vmul.f32 %v2061, %v2319
      %v2321 = vmul.f32 %v2062, %v2319
      %v2322 = vmul.f32 %v2063, %v2319
      %v2323 = vmul.f32 %v2064, %v2319
      %v2324 = vmul.f32 %v2065, %v2319
      %v2325 = vmul.f32 %v2066, %v2319
      %v2326 = vmul.f32 %v2192, %v2319
      %v2327 = vmul.f32 %v2318, %v2319
      %v2328 = vadd.f32 %v2310, %v2320
      %v2329 = vadd.f32 %v2311, %v2321
      %v2330 = vadd.f32 %v2312, %v2322
      %v2331 = vadd.f32 %v2313, %v2323
      %v2332 = vadd.f32 %v2314, %v2324
      %v2333 = vadd.f32 %v2315, %v2325
      %v2334 = vadd.f32 %v2316, %v2326
      %v2335 = vadd.f32 %v2317, %v2327
      %v2336 = vld [vmem:[#allocation2 + $0xf5] sm:$0xff]
      %v2337 = vperm.slane %v1894, 5
      %v2338 = vmul.f32 %v1912, %v2337
      %v2339 = vmul.f32 %v1913, %v2337
      %v2340 = vmul.f32 %v1914, %v2337
      %v2341 = vmul.f32 %v1915, %v2337
      %v2342 = vmul.f32 %v1916, %v2337
      %v2343 = vmul.f32 %v2084, %v2337
      %v2344 = vmul.f32 %v2210, %v2337
      %v2345 = vmul.f32 %v2336, %v2337
      %v2346 = vadd.f32 %v2328, %v2338
      %v2347 = vadd.f32 %v2329, %v2339
      %v2348 = vadd.f32 %v2330, %v2340
      %v2349 = vadd.f32 %v2331, %v2341
      %v2350 = vadd.f32 %v2332, %v2342
      %v2351 = vadd.f32 %v2333, %v2343
      %v2352 = vadd.f32 %v2334, %v2344
      %v2353 = vadd.f32 %v2335, %v2345
      %v2354 = vld [vmem:[#allocation2 + $0xf6] sm:$0xff]
      %v2355 = vperm.slane %v1894, 6
      %v2356 = vmul.f32 %v1937, %v2355
      %v2357 = vmul.f32 %v1938, %v2355
      %v2358 = vmul.f32 %v1939, %v2355
      %v2359 = vmul.f32 %v1940, %v2355
      %v2360 = vmul.f32 %v1941, %v2355
      %v2361 = vmul.f32 %v2102, %v2355
      %v2362 = vmul.f32 %v2228, %v2355
      %v2363 = vmul.f32 %v2354, %v2355
      %v2364 = vadd.f32 %v2346, %v2356
      %v2365 = vadd.f32 %v2347, %v2357
      %v2366 = vadd.f32 %v2348, %v2358
      %v2367 = vadd.f32 %v2349, %v2359
      %v2368 = vadd.f32 %v2350, %v2360
      %v2369 = vadd.f32 %v2351, %v2361
      %v2370 = vadd.f32 %v2352, %v2362
      %v2371 = vadd.f32 %v2353, %v2363
      %v2372 = vld [vmem:[#allocation2 + $0xf7] sm:$0xff]
      %v2373 = vperm.slane %v1894, 7
      %v2374 = vmul.f32 %v1962, %v2373
      %v2375 = vmul.f32 %v1963, %v2373
      %v2376 = vmul.f32 %v1964, %v2373
      %v2377 = vmul.f32 %v1965, %v2373
      %v2378 = vmul.f32 %v1966, %v2373
      %v2379 = vmul.f32 %v2120, %v2373
      %v2380 = vmul.f32 %v2246, %v2373
      %v2381 = vmul.f32 %v2372, %v2373
      %v2382 = vadd.f32 %v2364, %v2374
      %v2383 = vadd.f32 %v2365, %v2375
      %v2384 = vadd.f32 %v2366, %v2376
      %v2385 = vadd.f32 %v2367, %v2377
      %v2386 = vadd.f32 %v2368, %v2378
      %v2387 = vadd.f32 %v2369, %v2379
      %v2388 = vadd.f32 %v2370, %v2380
      %v2389 = vadd.f32 %v2371, %v2381
      %v2390 = vld [vmem:[#allocation2 + $0xf8] sm:$0xff]
      %v2391 = vperm.slane %v1895, 0
      %v2392 = vmul.f32 %v1987, %v2391
      %v2393 = vmul.f32 %v1988, %v2391
      %v2394 = vmul.f32 %v1989, %v2391
      %v2395 = vmul.f32 %v1990, %v2391
      %v2396 = vmul.f32 %v1991, %v2391
      %v2397 = vmul.f32 %v2138, %v2391
      %v2398 = vmul.f32 %v2264, %v2391
      %v2399 = vmul.f32 %v2390, %v2391
      %v2400 = vadd.f32 %v2382, %v2392
      %v2401 = vadd.f32 %v2383, %v2393
      %v2402 = vadd.f32 %v2384, %v2394
      %v2403 = vadd.f32 %v2385, %v2395
      %v2404 = vadd.f32 %v2386, %v2396
      %v2405 = vadd.f32 %v2387, %v2397
      %v2406 = vadd.f32 %v2388, %v2398
      %v2407 = vadd.f32 %v2389, %v2399
      %v2408 = vld [vmem:[#allocation2 + $0xf9] sm:$0xff]
      %v2409 = vperm.slane %v1895, 1
      %v2410 = vmul.f32 %v2012, %v2409
      %v2411 = vmul.f32 %v2013, %v2409
      %v2412 = vmul.f32 %v2014, %v2409
      %v2413 = vmul.f32 %v2015, %v2409
      %v2414 = vmul.f32 %v2016, %v2409
      %v2415 = vmul.f32 %v2156, %v2409
      %v2416 = vmul.f32 %v2282, %v2409
      %v2417 = vmul.f32 %v2408, %v2409
      %v2418 = vadd.f32 %v2400, %v2410
      %v2419 = vadd.f32 %v2401, %v2411
      %v2420 = vadd.f32 %v2402, %v2412
      %v2421 = vadd.f32 %v2403, %v2413
      %v2422 = vadd.f32 %v2404, %v2414
      %v2423 = vadd.f32 %v2405, %v2415
      %v2424 = vadd.f32 %v2406, %v2416
      %v2425 = vadd.f32 %v2407, %v2417
      %v2426 = vld [vmem:[#allocation2 + $0xfa] sm:$0xff]
      %v2427 = vperm.slane %v1895, 2
      %v2428 = vmul.f32 %v2037, %v2427
      %v2429 = vmul.f32 %v2038, %v2427
      %v2430 = vmul.f32 %v2039, %v2427
      %v2431 = vmul.f32 %v2040, %v2427
      %v2432 = vmul.f32 %v2041, %v2427
      %v2433 = vmul.f32 %v2174, %v2427
      %v2434 = vmul.f32 %v2300, %v2427
      %v2435 = vmul.f32 %v2426, %v2427
      %v2436 = vadd.f32 %v2418, %v2428
      %v2437 = vadd.f32 %v2419, %v2429
      %v2438 = vadd.f32 %v2420, %v2430
      %v2439 = vadd.f32 %v2421, %v2431
      %v2440 = vadd.f32 %v2422, %v2432
      %v2441 = vadd.f32 %v2423, %v2433
      %v2442 = vadd.f32 %v2424, %v2434
      %v2443 = vadd.f32 %v2425, %v2435
      %v2444 = vld [vmem:[#allocation2 + $0xfb] sm:$0xff]
      %v2445 = vperm.slane %v1895, 3
      %v2446 = vmul.f32 %v2062, %v2445
      %v2447 = vmul.f32 %v2063, %v2445
      %v2448 = vmul.f32 %v2064, %v2445
      %v2449 = vmul.f32 %v2065, %v2445
      %v2450 = vmul.f32 %v2066, %v2445
      %v2451 = vmul.f32 %v2192, %v2445
      %v2452 = vmul.f32 %v2318, %v2445
      %v2453 = vmul.f32 %v2444, %v2445
      %v2454 = vadd.f32 %v2436, %v2446
      %v2455 = vadd.f32 %v2437, %v2447
      %v2456 = vadd.f32 %v2438, %v2448
      %v2457 = vadd.f32 %v2439, %v2449
      %v2458 = vadd.f32 %v2440, %v2450
      %v2459 = vadd.f32 %v2441, %v2451
      %v2460 = vadd.f32 %v2442, %v2452
      %v2461 = vadd.f32 %v2443, %v2453
      %v2462 = vld [vmem:[#allocation2 + $0x10d] sm:$0xff]
      %v2463 = vperm.slane %v1895, 4
      %v2464 = vmul.f32 %v1913, %v2463
      %v2465 = vmul.f32 %v1914, %v2463
      %v2466 = vmul.f32 %v1915, %v2463
      %v2467 = vmul.f32 %v1916, %v2463
      %v2468 = vmul.f32 %v2084, %v2463
      %v2469 = vmul.f32 %v2210, %v2463
      %v2470 = vmul.f32 %v2336, %v2463
      %v2471 = vmul.f32 %v2462, %v2463
      %v2472 = vadd.f32 %v2454, %v2464
      %v2473 = vadd.f32 %v2455, %v2465
      %v2474 = vadd.f32 %v2456, %v2466
      %v2475 = vadd.f32 %v2457, %v2467
      %v2476 = vadd.f32 %v2458, %v2468
      %v2477 = vadd.f32 %v2459, %v2469
      %v2478 = vadd.f32 %v2460, %v2470
      %v2479 = vadd.f32 %v2461, %v2471
      %v2480 = vld [vmem:[#allocation2 + $0x10e] sm:$0xff]
      %v2481 = vperm.slane %v1895, 5
      %v2482 = vmul.f32 %v1938, %v2481
      %v2483 = vmul.f32 %v1939, %v2481
      %v2484 = vmul.f32 %v1940, %v2481
      %v2485 = vmul.f32 %v1941, %v2481
      %v2486 = vmul.f32 %v2102, %v2481
      %v2487 = vmul.f32 %v2228, %v2481
      %v2488 = vmul.f32 %v2354, %v2481
      %v2489 = vmul.f32 %v2480, %v2481
      %v2490 = vadd.f32 %v2472, %v2482
      %v2491 = vadd.f32 %v2473, %v2483
      %v2492 = vadd.f32 %v2474, %v2484
      %v2493 = vadd.f32 %v2475, %v2485
      %v2494 = vadd.f32 %v2476, %v2486
      %v2495 = vadd.f32 %v2477, %v2487
      %v2496 = vadd.f32 %v2478, %v2488
      %v2497 = vadd.f32 %v2479, %v2489
      %v2498 = vld [vmem:[#allocation2 + $0x10f] sm:$0xff]
      %v2499 = vperm.slane %v1895, 6
      %v2500 = vmul.f32 %v1963, %v2499
      %v2501 = vmul.f32 %v1964, %v2499
      %v2502 = vmul.f32 %v1965, %v2499
      %v2503 = vmul.f32 %v1966, %v2499
      %v2504 = vmul.f32 %v2120, %v2499
      %v2505 = vmul.f32 %v2246, %v2499
      %v2506 = vmul.f32 %v2372, %v2499
      %v2507 = vmul.f32 %v2498, %v2499
      %v2508 = vadd.f32 %v2490, %v2500
      %v2509 = vadd.f32 %v2491, %v2501
      %v2510 = vadd.f32 %v2492, %v2502
      %v2511 = vadd.f32 %v2493, %v2503
      %v2512 = vadd.f32 %v2494, %v2504
      %v2513 = vadd.f32 %v2495, %v2505
      %v2514 = vadd.f32 %v2496, %v2506
      %v2515 = vadd.f32 %v2497, %v2507
      %v2516 = vld [vmem:[#allocation2 + $0x110] sm:$0xff]
      %v2517 = vperm.slane %v1895, 7
      %v2518 = vmul.f32 %v1988, %v2517
      %v2519 = vmul.f32 %v1989, %v2517
      %v2520 = vmul.f32 %v1990, %v2517
      %v2521 = vmul.f32 %v1991, %v2517
      %v2522 = vmul.f32 %v2138, %v2517
      %v2523 = vmul.f32 %v2264, %v2517
      %v2524 = vmul.f32 %v2390, %v2517
      %v2525 = vmul.f32 %v2516, %v2517
      %v2526 = vadd.f32 %v2508, %v2518
      %v2527 = vadd.f32 %v2509, %v2519
      %v2528 = vadd.f32 %v2510, %v2520
      %v2529 = vadd.f32 %v2511, %v2521
      %v2530 = vadd.f32 %v2512, %v2522
      %v2531 = vadd.f32 %v2513, %v2523
      %v2532 = vadd.f32 %v2514, %v2524
      %v2533 = vadd.f32 %v2515, %v2525
      %v2534 = vld [vmem:[#allocation2 + $0x111] sm:$0xff]
      %v2535 = vperm.slane %v1896, 0
      %v2536 = vmul.f32 %v2013, %v2535
      %v2537 = vmul.f32 %v2014, %v2535
      %v2538 = vmul.f32 %v2015, %v2535
      %v2539 = vmul.f32 %v2016, %v2535
      %v2540 = vmul.f32 %v2156, %v2535
      %v2541 = vmul.f32 %v2282, %v2535
      %v2542 = vmul.f32 %v2408, %v2535
      %v2543 = vmul.f32 %v2534, %v2535
      %v2544 = vadd.f32 %v2526, %v2536
      %v2545 = vadd.f32 %v2527, %v2537
      %v2546 = vadd.f32 %v2528, %v2538
      %v2547 = vadd.f32 %v2529, %v2539
      %v2548 = vadd.f32 %v2530, %v2540
      %v2549 = vadd.f32 %v2531, %v2541
      %v2550 = vadd.f32 %v2532, %v2542
      %v2551 = vadd.f32 %v2533, %v2543
      %v2552 = vld [vmem:[#allocation2 + $0x112] sm:$0xff]
      %v2553 = vperm.slane %v1896, 1
      %v2554 = vmul.f32 %v2038, %v2553
      %v2555 = vmul.f32 %v2039, %v2553
      %v2556 = vmul.f32 %v2040, %v2553
      %v2557 = vmul.f32 %v2041, %v2553
      %v2558 = vmul.f32 %v2174, %v2553
      %v2559 = vmul.f32 %v2300, %v2553
      %v2560 = vmul.f32 %v2426, %v2553
      %v2561 = vmul.f32 %v2552, %v2553
      %v2562 = vadd.f32 %v2544, %v2554
      %v2563 = vadd.f32 %v2545, %v2555
      %v2564 = vadd.f32 %v2546, %v2556
      %v2565 = vadd.f32 %v2547, %v2557
      %v2566 = vadd.f32 %v2548, %v2558
      %v2567 = vadd.f32 %v2549, %v2559
      %v2568 = vadd.f32 %v2550, %v2560
      %v2569 = vadd.f32 %v2551, %v2561
      %v2570 = vld [vmem:[#allocation2 + $0x113] sm:$0xff]
      %v2571 = vperm.slane %v1896, 2
      %v2572 = vmul.f32 %v2063, %v2571
      %v2573 = vmul.f32 %v2064, %v2571
      %v2574 = vmul.f32 %v2065, %v2571
      %v2575 = vmul.f32 %v2066, %v2571
      %v2576 = vmul.f32 %v2192, %v2571
      %v2577 = vmul.f32 %v2318, %v2571
      %v2578 = vmul.f32 %v2444, %v2571
      %v2579 = vmul.f32 %v2570, %v2571
      %v2580 = vadd.f32 %v2562, %v2572
      %v2581 = vadd.f32 %v2563, %v2573
      %v2582 = vadd.f32 %v2564, %v2574
      %v2583 = vadd.f32 %v2565, %v2575
      %v2584 = vadd.f32 %v2566, %v2576
      %v2585 = vadd.f32 %v2567, %v2577
      %v2586 = vadd.f32 %v2568, %v2578
      %v2587 = vadd.f32 %v2569, %v2579
      %v2588 = vld [vmem:[#allocation2 + $0x125] sm:$0xff]
      %v2589 = vperm.slane %v1896, 3
      %v2590 = vmul.f32 %v1914, %v2589
      %v2591 = vmul.f32 %v1915, %v2589
      %v2592 = vmul.f32 %v1916, %v2589
      %v2593 = vmul.f32 %v2084, %v2589
      %v2594 = vmul.f32 %v2210, %v2589
      %v2595 = vmul.f32 %v2336, %v2589
      %v2596 = vmul.f32 %v2462, %v2589
      %v2597 = vmul.f32 %v2588, %v2589
      %v2598 = vadd.f32 %v2580, %v2590
      %v2599 = vadd.f32 %v2581, %v2591
      %v2600 = vadd.f32 %v2582, %v2592
      %v2601 = vadd.f32 %v2583, %v2593
      %v2602 = vadd.f32 %v2584, %v2594
      %v2603 = vadd.f32 %v2585, %v2595
      %v2604 = vadd.f32 %v2586, %v2596
      %v2605 = vadd.f32 %v2587, %v2597
      %v2606 = vld [vmem:[#allocation2 + $0x126] sm:$0xff]
      %v2607 = vperm.slane %v1896, 4
      %v2608 = vmul.f32 %v1939, %v2607
      %v2609 = vmul.f32 %v1940, %v2607
      %v2610 = vmul.f32 %v1941, %v2607
      %v2611 = vmul.f32 %v2102, %v2607
      %v2612 = vmul.f32 %v2228, %v2607
      %v2613 = vmul.f32 %v2354, %v2607
      %v2614 = vmul.f32 %v2480, %v2607
      %v2615 = vmul.f32 %v2606, %v2607
      %v2616 = vadd.f32 %v2598, %v2608
      %v2617 = vadd.f32 %v2599, %v2609
      %v2618 = vadd.f32 %v2600, %v2610
      %v2619 = vadd.f32 %v2601, %v2611
      %v2620 = vadd.f32 %v2602, %v2612
      %v2621 = vadd.f32 %v2603, %v2613
      %v2622 = vadd.f32 %v2604, %v2614
      %v2623 = vadd.f32 %v2605, %v2615
      %v2624 = vld [vmem:[#allocation2 + $0x127] sm:$0xff]
      %v2625 = vperm.slane %v1896, 5
      %v2626 = vmul.f32 %v1964, %v2625
      %v2627 = vmul.f32 %v1965, %v2625
      %v2628 = vmul.f32 %v1966, %v2625
      %v2629 = vmul.f32 %v2120, %v2625
      %v2630 = vmul.f32 %v2246, %v2625
      %v2631 = vmul.f32 %v2372, %v2625
      %v2632 = vmul.f32 %v2498, %v2625
      %v2633 = vmul.f32 %v2624, %v2625
      %v2634 = vadd.f32 %v2616, %v2626
      %v2635 = vadd.f32 %v2617, %v2627
      %v2636 = vadd.f32 %v2618, %v2628
      %v2637 = vadd.f32 %v2619, %v2629
      %v2638 = vadd.f32 %v2620, %v2630
      %v2639 = vadd.f32 %v2621, %v2631
      %v2640 = vadd.f32 %v2622, %v2632
      %v2641 = vadd.f32 %v2623, %v2633
      %v2642 = vld [vmem:[#allocation2 + $0x128] sm:$0xff]
      %v2643 = vperm.slane %v1896, 6
      %v2644 = vmul.f32 %v1989, %v2643
      %v2645 = vmul.f32 %v1990, %v2643
      %v2646 = vmul.f32 %v1991, %v2643
      %v2647 = vmul.f32 %v2138, %v2643
      %v2648 = vmul.f32 %v2264, %v2643
      %v2649 = vmul.f32 %v2390, %v2643
      %v2650 = vmul.f32 %v2516, %v2643
      %v2651 = vmul.f32 %v2642, %v2643
      %v2652 = vadd.f32 %v2634, %v2644
      %v2653 = vadd.f32 %v2635, %v2645
      %v2654 = vadd.f32 %v2636, %v2646
      %v2655 = vadd.f32 %v2637, %v2647
      %v2656 = vadd.f32 %v2638, %v2648
      %v2657 = vadd.f32 %v2639, %v2649
      %v2658 = vadd.f32 %v2640, %v2650
      %v2659 = vadd.f32 %v2641, %v2651
      %v2660 = vld [vmem:[#allocation2 + $0x129] sm:$0xff]
      %v2661 = vperm.slane %v1896, 7
      %v2662 = vmul.f32 %v2014, %v2661
      %v2663 = vmul.f32 %v2015, %v2661
      %v2664 = vmul.f32 %v2016, %v2661
      %v2665 = vmul.f32 %v2156, %v2661
      %v2666 = vmul.f32 %v2282, %v2661
      %v2667 = vmul.f32 %v2408, %v2661
      %v2668 = vmul.f32 %v2534, %v2661
      %v2669 = vmul.f32 %v2660, %v2661
      %v2670 = vadd.f32 %v2652, %v2662
      %v2671 = vadd.f32 %v2653, %v2663
      %v2672 = vadd.f32 %v2654, %v2664
      %v2673 = vadd.f32 %v2655, %v2665
      %v2674 = vadd.f32 %v2656, %v2666
      %v2675 = vadd.f32 %v2657, %v2667
      %v2676 = vadd.f32 %v2658, %v2668
      %v2677 = vadd.f32 %v2659, %v2669
      %v2678 = vld [vmem:[#allocation2 + $0x12a] sm:$0xff]
      %v2679 = vperm.slane %v1897, 0
      %v2680 = vmul.f32 %v2039, %v2679
      %v2681 = vmul.f32 %v2040, %v2679
      %v2682 = vmul.f32 %v2041, %v2679
      %v2683 = vmul.f32 %v2174, %v2679
      %v2684 = vmul.f32 %v2300, %v2679
      %v2685 = vmul.f32 %v2426, %v2679
      %v2686 = vmul.f32 %v2552, %v2679
      %v2687 = vmul.f32 %v2678, %v2679
      %v2688 = vadd.f32 %v2670, %v2680
      %v2689 = vadd.f32 %v2671, %v2681
      %v2690 = vadd.f32 %v2672, %v2682
      %v2691 = vadd.f32 %v2673, %v2683
      %v2692 = vadd.f32 %v2674, %v2684
      %v2693 = vadd.f32 %v2675, %v2685
      %v2694 = vadd.f32 %v2676, %v2686
      %v2695 = vadd.f32 %v2677, %v2687
      %v2696 = vld [vmem:[#allocation2 + $0x12b] sm:$0xff]
      %v2697 = vperm.slane %v1897, 1
      %v2698 = vmul.f32 %v2064, %v2697
      %v2699 = vmul.f32 %v2065, %v2697
      %v2700 = vmul.f32 %v2066, %v2697
      %v2701 = vmul.f32 %v2192, %v2697
      %v2702 = vmul.f32 %v2318, %v2697
      %v2703 = vmul.f32 %v2444, %v2697
      %v2704 = vmul.f32 %v2570, %v2697
      %v2705 = vmul.f32 %v2696, %v2697
      %v2706 = vadd.f32 %v2688, %v2698
      %v2707 = vadd.f32 %v2689, %v2699
      %v2708 = vadd.f32 %v2690, %v2700
      %v2709 = vadd.f32 %v2691, %v2701
      %v2710 = vadd.f32 %v2692, %v2702
      %v2711 = vadd.f32 %v2693, %v2703
      %v2712 = vadd.f32 %v2694, %v2704
      %v2713 = vadd.f32 %v2695, %v2705
      %v2714 = vld [vmem:[#allocation2 + $0x13d] sm:$0xff]
      %v2715 = vperm.slane %v1897, 2
      %v2716 = vmul.f32 %v1915, %v2715
      %v2717 = vmul.f32 %v1916, %v2715
      %v2718 = vmul.f32 %v2084, %v2715
      %v2719 = vmul.f32 %v2210, %v2715
      %v2720 = vmul.f32 %v2336, %v2715
      %v2721 = vmul.f32 %v2462, %v2715
      %v2722 = vmul.f32 %v2588, %v2715
      %v2723 = vmul.f32 %v2714, %v2715
      %v2724 = vadd.f32 %v2706, %v2716
      %v2725 = vadd.f32 %v2707, %v2717
      %v2726 = vadd.f32 %v2708, %v2718
      %v2727 = vadd.f32 %v2709, %v2719
      %v2728 = vadd.f32 %v2710, %v2720
      %v2729 = vadd.f32 %v2711, %v2721
      %v2730 = vadd.f32 %v2712, %v2722
      %v2731 = vadd.f32 %v2713, %v2723
      %v2732 = vld [vmem:[#allocation2 + $0x13e] sm:$0xff]
      %v2733 = vperm.slane %v1897, 3
      %v2734 = vmul.f32 %v1940, %v2733
      %v2735 = vmul.f32 %v1941, %v2733
      %v2736 = vmul.f32 %v2102, %v2733
      %v2737 = vmul.f32 %v2228, %v2733
      %v2738 = vmul.f32 %v2354, %v2733
      %v2739 = vmul.f32 %v2480, %v2733
      %v2740 = vmul.f32 %v2606, %v2733
      %v2741 = vmul.f32 %v2732, %v2733
      %v2742 = vadd.f32 %v2724, %v2734
      %v2743 = vadd.f32 %v2725, %v2735
      %v2744 = vadd.f32 %v2726, %v2736
      %v2745 = vadd.f32 %v2727, %v2737
      %v2746 = vadd.f32 %v2728, %v2738
      %v2747 = vadd.f32 %v2729, %v2739
      %v2748 = vadd.f32 %v2730, %v2740
      %v2749 = vadd.f32 %v2731, %v2741
      %v2750 = vld [vmem:[#allocation2 + $0x13f] sm:$0xff]
      %v2751 = vperm.slane %v1897, 4
      %v2752 = vmul.f32 %v1965, %v2751
      %v2753 = vmul.f32 %v1966, %v2751
      %v2754 = vmul.f32 %v2120, %v2751
      %v2755 = vmul.f32 %v2246, %v2751
      %v2756 = vmul.f32 %v2372, %v2751
      %v2757 = vmul.f32 %v2498, %v2751
      %v2758 = vmul.f32 %v2624, %v2751
      %v2759 = vmul.f32 %v2750, %v2751
      %v2760 = vadd.f32 %v2742, %v2752
      %v2761 = vadd.f32 %v2743, %v2753
      %v2762 = vadd.f32 %v2744, %v2754
      %v2763 = vadd.f32 %v2745, %v2755
      %v2764 = vadd.f32 %v2746, %v2756
      %v2765 = vadd.f32 %v2747, %v2757
      %v2766 = vadd.f32 %v2748, %v2758
      %v2767 = vadd.f32 %v2749, %v2759
      %v2768 = vld [vmem:[#allocation2 + $0x140] sm:$0xff]
      %v2769 = vperm.slane %v1897, 5
      %v2770 = vmul.f32 %v1990, %v2769
      %v2771 = vmul.f32 %v1991, %v2769
      %v2772 = vmul.f32 %v2138, %v2769
      %v2773 = vmul.f32 %v2264, %v2769
      %v2774 = vmul.f32 %v2390, %v2769
      %v2775 = vmul.f32 %v2516, %v2769
      %v2776 = vmul.f32 %v2642, %v2769
      %v2777 = vmul.f32 %v2768, %v2769
      %v2778 = vadd.f32 %v2760, %v2770
      %v2779 = vadd.f32 %v2761, %v2771
      %v2780 = vadd.f32 %v2762, %v2772
      %v2781 = vadd.f32 %v2763, %v2773
      %v2782 = vadd.f32 %v2764, %v2774
      %v2783 = vadd.f32 %v2765, %v2775
      %v2784 = vadd.f32 %v2766, %v2776
      %v2785 = vadd.f32 %v2767, %v2777
      %v2786 = vld [vmem:[#allocation2 + $0x141] sm:$0xff]
      %v2787 = vperm.slane %v1897, 6
      %v2788 = vmul.f32 %v2015, %v2787
      %v2789 = vmul.f32 %v2016, %v2787
      %v2790 = vmul.f32 %v2156, %v2787
      %v2791 = vmul.f32 %v2282, %v2787
      %v2792 = vmul.f32 %v2408, %v2787
      %v2793 = vmul.f32 %v2534, %v2787
      %v2794 = vmul.f32 %v2660, %v2787
      %v2795 = vmul.f32 %v2786, %v2787
      %v2796 = vadd.f32 %v2778, %v2788
      %v2797 = vadd.f32 %v2779, %v2789
      %v2798 = vadd.f32 %v2780, %v2790
      %v2799 = vadd.f32 %v2781, %v2791
      %v2800 = vadd.f32 %v2782, %v2792
      %v2801 = vadd.f32 %v2783, %v2793
      %v2802 = vadd.f32 %v2784, %v2794
      %v2803 = vadd.f32 %v2785, %v2795
      %v2804 = vld [vmem:[#allocation2 + $0x142] sm:$0xff]
      %v2805 = vperm.slane %v1897, 7
      %v2806 = vmul.f32 %v2040, %v2805
      %v2807 = vmul.f32 %v2041, %v2805
      %v2808 = vmul.f32 %v2174, %v2805
      %v2809 = vmul.f32 %v2300, %v2805
      %v2810 = vmul.f32 %v2426, %v2805
      %v2811 = vmul.f32 %v2552, %v2805
      %v2812 = vmul.f32 %v2678, %v2805
      %v2813 = vmul.f32 %v2804, %v2805
      %v2814 = vadd.f32 %v2796, %v2806
      %v2815 = vadd.f32 %v2797, %v2807
      %v2816 = vadd.f32 %v2798, %v2808
      %v2817 = vadd.f32 %v2799, %v2809
      %v2818 = vadd.f32 %v2800, %v2810
      %v2819 = vadd.f32 %v2801, %v2811
      %v2820 = vadd.f32 %v2802, %v2812
      %v2821 = vadd.f32 %v2803, %v2813
      %v2822 = vld [vmem:[#allocation2 + $0x143] sm:$0xff]
      %v2823 = vperm.slane %v1898, 0
      %v2824 = vmul.f32 %v2065, %v2823
      %v2825 = vmul.f32 %v2066, %v2823
      %v2826 = vmul.f32 %v2192, %v2823
      %v2827 = vmul.f32 %v2318, %v2823
      %v2828 = vmul.f32 %v2444, %v2823
      %v2829 = vmul.f32 %v2570, %v2823
      %v2830 = vmul.f32 %v2696, %v2823
      %v2831 = vmul.f32 %v2822, %v2823
      %v2832 = vadd.f32 %v2814, %v2824
      %v2833 = vadd.f32 %v2815, %v2825
      %v2834 = vadd.f32 %v2816, %v2826
      %v2835 = vadd.f32 %v2817, %v2827
      %v2836 = vadd.f32 %v2818, %v2828
      %v2837 = vadd.f32 %v2819, %v2829
      %v2838 = vadd.f32 %v2820, %v2830
      %v2839 = vadd.f32 %v2821, %v2831
      %v2841 = vperm.slane %v1900, 0
      %v2843 = vadd.f32 %v2832, %v2841
      %2844 = vst.msk [vmem:[#allocation3] sm:$0xff] %vm1087, %v2843
      %v2845 = vadd.f32 %v2833, %v2841
      %2846 = vst.msk [vmem:[#allocation3 + $0x8] sm:$0xff] %vm1087, %v2845
      %v2847 = vadd.f32 %v2834, %v2841
      %2848 = vst.msk [vmem:[#allocation3 + $0x10] sm:$0xff] %vm1087, %v2847
      %v2849 = vadd.f32 %v2835, %v2841
      %2850 = vst.msk [vmem:[#allocation3 + $0x18] sm:$0xff] %vm1087, %v2849
      %v2851 = vadd.f32 %v2836, %v2841
      %2852 = vst.msk [vmem:[#allocation3 + $0x20] sm:$0xff] %vm1087, %v2851
      %v2853 = vadd.f32 %v2837, %v2841
      %2854 = vst.msk [vmem:[#allocation3 + $0x28] sm:$0xff] %vm1087, %v2853
      %v2855 = vadd.f32 %v2838, %v2841
      %2856 = vst.msk [vmem:[#allocation3 + $0x30] sm:$0xff] %vm1087, %v2855
      %v2857 = vadd.f32 %v2839, %v2841
      %2858 = vst.msk [vmem:[#allocation3 + $0x38] sm:$0xff] %vm1087, %v2857
      %v2859 = vld [vmem:[#allocation3] sm:$0xff]
      %v2860 = vld [vmem:[#allocation3 + $0x8] sm:$0xff]
      %v2861 = vld [vmem:[#allocation3 + $0x10] sm:$0xff]
      %v2862 = vld [vmem:[#allocation3 + $0x18] sm:$0xff]
      %v2863 = vld [vmem:[#allocation3 + $0x20] sm:$0xff]
      %v2864 = vld [vmem:[#allocation3 + $0x28] sm:$0xff]
      %v2865 = vld [vmem:[#allocation3 + $0x30] sm:$0xff]
      %v2866 = vld [vmem:[#allocation3 + $0x38] sm:$0xff]
      %v2867 = vmul.f32 %v1567, %v2859
      %v2868 = vmul.f32 %v1569, %v2860
      %v2869 = vmul.f32 %v1572, %v2861
      %v2870 = vmul.f32 %v1574, %v2862
      %v2871 = vmul.f32 %v1577, %v2863
      %v2872 = vmul.f32 %v1579, %v2864
      %v2873 = vmul.f32 %v1582, %v2865
      %v2874 = vmul.f32 %v1584, %v2866
      %v2876 = vsel %vm1087, %v1876, 0
      %v2879 = vsel %vm1087, %v1877, 0
      %v2882 = vsel %vm1087, %v1878, 0
      %v2885 = vsel %vm1087, %v1879, 0
      %2887 = vmatpush.bf16.msra.mxu0 0
      %2888 = vmatpush.bf16.msra.mxu0 0
      %2889 = vmatpush.bf16.msra.mxu0 0
      %2890 = vmatpush.bf16.msra.mxu0 0
      %2891 = vmatpush.bf16.msra.mxu0 0
      %2892 = vmatpush.bf16.msra.mxu0 0
      %2893 = vmatpush.bf16.msra.mxu0 %v1881
      %2894 = vmatpush.bf16.msra.mxu0 %v1880
      %2895 = vmatmul.bf16.gmra.mxu0 %v2876
      %v2896 = vpop.f32.mrf.mxu0
      %v2897 = vadd.f32 %v2867, %v2896
      %v2898 = vpop.f32.mrf.mxu0
      %v2899 = vadd.f32 %v2868, %v2898
      %2900 = vmatmul.bf16.gmra.mxu0 %v2879
      %v2901 = vpop.f32.mrf.mxu0
      %v2902 = vadd.f32 %v2869, %v2901
      %v2903 = vpop.f32.mrf.mxu0
      %v2904 = vadd.f32 %v2870, %v2903
      %2905 = vmatmul.bf16.gmra.mxu0 %v2882
      %v2906 = vpop.f32.mrf.mxu0
      %v2907 = vadd.f32 %v2871, %v2906
      %v2908 = vpop.f32.mrf.mxu0
      %v2909 = vadd.f32 %v2872, %v2908
      %2910 = vmatmul.bf16.gmra.mxu0 %v2885
      %v2911 = vpop.f32.mrf.mxu0
      %v2912 = vadd.f32 %v2873, %v2911
      %v2913 = vpop.f32.mrf.mxu0
      %v2914 = vadd.f32 %v2874, %v2913
      %2915 = vdwg.mxu0
      %v2916 = vld [vmem:[%s980] sm:$0xf]
      %v2917 = vld [vmem:[%s980 + $0x4] sm:$0xf]
      %v2918 = vld [vmem:[%s980 + $0x8] sm:$0xf]
      %v2919 = vld [vmem:[%s980 + $0xc] sm:$0xf]
      %v2920 = vpack.c.bf16 %v2899, %v2897
      %v2921 = vpack.c.bf16 %v2904, %v2902
      %v2922 = vpack.c.bf16 %v2909, %v2907
      %v2923 = vpack.c.bf16 %v2914, %v2912
      %v2924 = vld [vmem:[%s983] sm:$0x1]
      %v2926 = vperm.slane %v2924, 0
      %v2932 = vunpack.c.l.b16 %v2916
      %v2933 = vunpack.c.l.b16 %v2917
      %v2934 = vunpack.c.l.b16 %v2918
      %v2935 = vunpack.c.l.b16 %v2919
      %v2936 = vpack.c.b16 %v2933, %v2932
      %v2937 = vpack.c.b16 %v2935, %v2934
      %v2941 = vsel %vm1087, %v2920, 0
      %v2944 = vsel %vm1087, %v2921, 0
      %v2947 = vsel %vm1087, %v2922, 0
      %v2950 = vsel %vm1087, %v2923, 0
      %2952 = vmatpush.bf16.msra.mxu0 0
      %2953 = vmatpush.bf16.msra.mxu0 0
      %2954 = vmatpush.bf16.msra.mxu0 0
      %2955 = vmatpush.bf16.msra.mxu0 0
      %2956 = vmatpush.bf16.msra.mxu0 0
      %2957 = vmatpush.bf16.msra.mxu0 0
      %2958 = vmatpush.bf16.msra.mxu0 %v2937
      %2959 = vmatpush.bf16.msra.mxu0 %v2936
      %2960 = vmatmul.bf16.gmra.mxu0 %v2941
      %v2961 = vpop.f32.mrf.mxu0
      %v2962 = vadd.f32 %v2926, %v2961
      %v2963 = vpop.f32.mrf.mxu0
      %v2964 = vadd.f32 %v2926, %v2963
      %2965 = vmatmul.bf16.gmra.mxu0 %v2944
      %v2966 = vpop.f32.mrf.mxu0
      %v2967 = vadd.f32 %v2926, %v2966
      %v2968 = vpop.f32.mrf.mxu0
      %v2969 = vadd.f32 %v2926, %v2968
      %2970 = vmatmul.bf16.gmra.mxu0 %v2947
      %v2971 = vpop.f32.mrf.mxu0
      %v2972 = vadd.f32 %v2926, %v2971
      %v2973 = vpop.f32.mrf.mxu0
      %v2974 = vadd.f32 %v2926, %v2973
      %2975 = vmatmul.bf16.gmra.mxu0 %v2950
      %v2976 = vpop.f32.mrf.mxu0
      %v2977 = vadd.f32 %v2926, %v2976
      %v2978 = vpop.f32.mrf.mxu0
      %v2979 = vadd.f32 %v2926, %v2978
      %2980 = vdwg.mxu0
      %v2981 = vadd.f32 %v1306, %v2962
      %v2982 = vadd.f32 %v1307, %v2964
      %v2983 = vadd.f32 %v1308, %v2967
      %v2984 = vadd.f32 %v1309, %v2969
      %v2985 = vadd.f32 %v1310, %v2972
      %v2986 = vadd.f32 %v1311, %v2974
      %v2987 = vadd.f32 %v1312, %v2977
      %v2988 = vadd.f32 %v1313, %v2979
      %v2989 = vld [vmem:[%s986] sm:$0x1]
      %v2990 = vld [vmem:[%s989] sm:$0x1]
      %v2991 = vsel %vm1087, %v2981, 0.0
      %2992 = vadd.xlane.f32.xlu0 %v2991
      %v2993 = vpop.xlane.xlu0 %2992
      %v2994 = vsel %vm1087, %v2982, 0.0
      %2995 = vadd.xlane.f32.xlu0 %v2994
      %v2996 = vpop.xlane.xlu0 %2995
      %v2997 = vsel %vm1087, %v2983, 0.0
      %2998 = vadd.xlane.f32.xlu0 %v2997
      %v2999 = vpop.xlane.xlu0 %2998
      %v3000 = vsel %vm1087, %v2984, 0.0
      %3001 = vadd.xlane.f32.xlu0 %v3000
      %v3002 = vpop.xlane.xlu0 %3001
      %v3003 = vsel %vm1087, %v2985, 0.0
      %3004 = vadd.xlane.f32.xlu0 %v3003
      %v3005 = vpop.xlane.xlu0 %3004
      %v3006 = vsel %vm1087, %v2986, 0.0
      %3007 = vadd.xlane.f32.xlu0 %v3006
      %v3008 = vpop.xlane.xlu0 %3007
      %v3009 = vsel %vm1087, %v2987, 0.0
      %3010 = vadd.xlane.f32.xlu0 %v3009
      %v3011 = vpop.xlane.xlu0 %3010
      %v3012 = vsel %vm1087, %v2988, 0.0
      %3013 = vadd.xlane.f32.xlu0 %v3012
      %v3014 = vpop.xlane.xlu0 %3013
      %v3015 = vmul.f32 %v2993, %v1346
      %v3016 = vmul.f32 %v2996, %v1346
      %v3017 = vmul.f32 %v2999, %v1346
      %v3018 = vmul.f32 %v3002, %v1346
      %v3019 = vmul.f32 %v3005, %v1346
      %v3020 = vmul.f32 %v3008, %v1346
      %v3021 = vmul.f32 %v3011, %v1346
      %v3022 = vmul.f32 %v3014, %v1346
      %v3023 = vsub.f32 %v2981, %v3015
      %v3024 = vsub.f32 %v2982, %v3016
      %v3025 = vsub.f32 %v2983, %v3017
      %v3026 = vsub.f32 %v2984, %v3018
      %v3027 = vsub.f32 %v2985, %v3019
      %v3028 = vsub.f32 %v2986, %v3020
      %v3029 = vsub.f32 %v2987, %v3021
      %v3030 = vsub.f32 %v2988, %v3022
      %v3031 = vmul.f32 %v3023, %v3023
      %v3032 = vmul.f32 %v3024, %v3024
      %v3033 = vmul.f32 %v3025, %v3025
      %v3034 = vmul.f32 %v3026, %v3026
      %v3035 = vmul.f32 %v3027, %v3027
      %v3036 = vmul.f32 %v3028, %v3028
      %v3037 = vmul.f32 %v3029, %v3029
      %v3038 = vmul.f32 %v3030, %v3030
      %v3039 = vsel %vm1087, %v3031, 0.0
      %3040 = vadd.xlane.f32.xlu0 %v3039
      %v3041 = vpop.xlane.xlu0 %3040
      %v3042 = vsel %vm1087, %v3032, 0.0
      %3043 = vadd.xlane.f32.xlu0 %v3042
      %v3044 = vpop.xlane.xlu0 %3043
      %v3045 = vsel %vm1087, %v3033, 0.0
      %3046 = vadd.xlane.f32.xlu0 %v3045
      %v3047 = vpop.xlane.xlu0 %3046
      %v3048 = vsel %vm1087, %v3034, 0.0
      %3049 = vadd.xlane.f32.xlu0 %v3048
      %v3050 = vpop.xlane.xlu0 %3049
      %v3051 = vsel %vm1087, %v3035, 0.0
      %3052 = vadd.xlane.f32.xlu0 %v3051
      %v3053 = vpop.xlane.xlu0 %3052
      %v3054 = vsel %vm1087, %v3036, 0.0
      %3055 = vadd.xlane.f32.xlu0 %v3054
      %v3056 = vpop.xlane.xlu0 %3055
      %v3057 = vsel %vm1087, %v3037, 0.0
      %3058 = vadd.xlane.f32.xlu0 %v3057
      %v3059 = vpop.xlane.xlu0 %3058
      %v3060 = vsel %vm1087, %v3038, 0.0
      %3061 = vadd.xlane.f32.xlu0 %v3060
      %v3062 = vpop.xlane.xlu0 %3061
      %v3063 = vmul.f32 %v3041, %v1346
      %v3064 = vmul.f32 %v3044, %v1346
      %v3065 = vmul.f32 %v3047, %v1346
      %v3066 = vmul.f32 %v3050, %v1346
      %v3067 = vmul.f32 %v3053, %v1346
      %v3068 = vmul.f32 %v3056, %v1346
      %v3069 = vmul.f32 %v3059, %v1346
      %v3070 = vmul.f32 %v3062, %v1346
      %v3071 = vadd.f32 %v3063, 1e-05
      %v3072 = vadd.f32 %v3064, 1e-05
      %v3073 = vadd.f32 %v3065, 1e-05
      %v3074 = vadd.f32 %v3066, 1e-05
      %v3075 = vadd.f32 %v3067, 1e-05
      %v3076 = vadd.f32 %v3068, 1e-05
      %v3077 = vadd.f32 %v3069, 1e-05
      %v3078 = vadd.f32 %v3070, 1e-05
      %v3079 = vrsqrt.pop %v3071
      %v3080 = vmul.f32 %v3079, %v3071
      %v3081 = vmul.f32 %v3080, %v3079
      %v3082 = vmul.f32 0.5, %v3081
      %v3083 = vsub.f32 1.5, %v3082
      %v3084 = vmul.f32 %v3079, %v3083
      %vm3085 = vweird.f32 %v3071
      %vm3086 = vweird.f32 %v3079
      %vm3087 = vmor %vm3085, %vm3086
      %v3088 = vsel %vm3087, %v3079, %v3084
      %v3089 = vrsqrt.pop %v3072
      %v3090 = vmul.f32 %v3089, %v3072
      %v3091 = vmul.f32 %v3090, %v3089
      %v3092 = vmul.f32 0.5, %v3091
      %v3093 = vsub.f32 1.5, %v3092
      %v3094 = vmul.f32 %v3089, %v3093
      %vm3095 = vweird.f32 %v3072
      %vm3096 = vweird.f32 %v3089
      %vm3097 = vmor %vm3095, %vm3096
      %v3098 = vsel %vm3097, %v3089, %v3094
      %v3099 = vrsqrt.pop %v3073
      %v3100 = vmul.f32 %v3099, %v3073
      %v3101 = vmul.f32 %v3100, %v3099
      %v3102 = vmul.f32 0.5, %v3101
      %v3103 = vsub.f32 1.5, %v3102
      %v3104 = vmul.f32 %v3099, %v3103
      %vm3105 = vweird.f32 %v3073
      %vm3106 = vweird.f32 %v3099
      %vm3107 = vmor %vm3105, %vm3106
      %v3108 = vsel %vm3107, %v3099, %v3104
      %v3109 = vrsqrt.pop %v3074
      %v3110 = vmul.f32 %v3109, %v3074
      %v3111 = vmul.f32 %v3110, %v3109
      %v3112 = vmul.f32 0.5, %v3111
      %v3113 = vsub.f32 1.5, %v3112
      %v3114 = vmul.f32 %v3109, %v3113
      %vm3115 = vweird.f32 %v3074
      %vm3116 = vweird.f32 %v3109
      %vm3117 = vmor %vm3115, %vm3116
      %v3118 = vsel %vm3117, %v3109, %v3114
      %v3119 = vrsqrt.pop %v3075
      %v3120 = vmul.f32 %v3119, %v3075
      %v3121 = vmul.f32 %v3120, %v3119
      %v3122 = vmul.f32 0.5, %v3121
      %v3123 = vsub.f32 1.5, %v3122
      %v3124 = vmul.f32 %v3119, %v3123
      %vm3125 = vweird.f32 %v3075
      %vm3126 = vweird.f32 %v3119
      %vm3127 = vmor %vm3125, %vm3126
      %v3128 = vsel %vm3127, %v3119, %v3124
      %v3129 = vrsqrt.pop %v3076
      %v3130 = vmul.f32 %v3129, %v3076
      %v3131 = vmul.f32 %v3130, %v3129
      %v3132 = vmul.f32 0.5, %v3131
      %v3133 = vsub.f32 1.5, %v3132
      %v3134 = vmul.f32 %v3129, %v3133
      %vm3135 = vweird.f32 %v3076
      %vm3136 = vweird.f32 %v3129
      %vm3137 = vmor %vm3135, %vm3136
      %v3138 = vsel %vm3137, %v3129, %v3134
      %v3139 = vrsqrt.pop %v3077
      %v3140 = vmul.f32 %v3139, %v3077
      %v3141 = vmul.f32 %v3140, %v3139
      %v3142 = vmul.f32 0.5, %v3141
      %v3143 = vsub.f32 1.5, %v3142
      %v3144 = vmul.f32 %v3139, %v3143
      %vm3145 = vweird.f32 %v3077
      %vm3146 = vweird.f32 %v3139
      %vm3147 = vmor %vm3145, %vm3146
      %v3148 = vsel %vm3147, %v3139, %v3144
      %v3149 = vrsqrt.pop %v3078
      %v3150 = vmul.f32 %v3149, %v3078
      %v3151 = vmul.f32 %v3150, %v3149
      %v3152 = vmul.f32 0.5, %v3151
      %v3153 = vsub.f32 1.5, %v3152
      %v3154 = vmul.f32 %v3149, %v3153
      %vm3155 = vweird.f32 %v3078
      %vm3156 = vweird.f32 %v3149
      %vm3157 = vmor %vm3155, %vm3156
      %v3158 = vsel %vm3157, %v3149, %v3154
      %v3159 = vmul.f32 %v3023, %v3088
      %v3160 = vmul.f32 %v3024, %v3098
      %v3161 = vmul.f32 %v3025, %v3108
      %v3162 = vmul.f32 %v3026, %v3118
      %v3163 = vmul.f32 %v3027, %v3128
      %v3164 = vmul.f32 %v3028, %v3138
      %v3165 = vmul.f32 %v3029, %v3148
      %v3166 = vmul.f32 %v3030, %v3158
      %v3168 = vperm.slane %v2989, 0
      %v3170 = vmul.f32 %v3159, %v3168
      %v3171 = vmul.f32 %v3160, %v3168
      %v3172 = vmul.f32 %v3161, %v3168
      %v3173 = vmul.f32 %v3162, %v3168
      %v3174 = vmul.f32 %v3163, %v3168
      %v3175 = vmul.f32 %v3164, %v3168
      %v3176 = vmul.f32 %v3165, %v3168
      %v3177 = vmul.f32 %v3166, %v3168
      %v3179 = vperm.slane %v2990, 0
      %v3181 = vadd.f32 %v3170, %v3179
      %v3182 = vadd.f32 %v3171, %v3179
      %v3183 = vadd.f32 %v3172, %v3179
      %v3184 = vadd.f32 %v3173, %v3179
      %v3185 = vadd.f32 %v3174, %v3179
      %v3186 = vadd.f32 %v3175, %v3179
      %v3187 = vadd.f32 %v3176, %v3179
      %v3188 = vadd.f32 %v3177, %v3179
      %v3189 = vld [vmem:[%s994] sm:$0xf]
      %v3190 = vld [vmem:[%s994 + $0x4] sm:$0xf]
      %v3191 = vld [vmem:[%s994 + $0x8] sm:$0xf]
      %v3192 = vld [vmem:[%s994 + $0xc] sm:$0xf]
      %v3193 = vpack.c.bf16 %v3182, %v3181
      %v3194 = vpack.c.bf16 %v3184, %v3183
      %v3195 = vpack.c.bf16 %v3186, %v3185
      %v3196 = vpack.c.bf16 %v3188, %v3187
      %v3197 = vld [vmem:[%s997] sm:$0x1]
      %v3199 = vperm.slane %v3197, 0
      %v3205 = vunpack.c.l.b16 %v3189
      %v3206 = vunpack.c.l.b16 %v3190
      %v3207 = vunpack.c.l.b16 %v3191
      %v3208 = vunpack.c.l.b16 %v3192
      %v3209 = vpack.c.b16 %v3206, %v3205
      %v3210 = vpack.c.b16 %v3208, %v3207
      %v3214 = vsel %vm1087, %v3193, 0
      %v3217 = vsel %vm1087, %v3194, 0
      %v3220 = vsel %vm1087, %v3195, 0
      %v3223 = vsel %vm1087, %v3196, 0
      %3225 = vmatpush.bf16.msra.mxu0 0
      %3226 = vmatpush.bf16.msra.mxu0 0
      %3227 = vmatpush.bf16.msra.mxu0 0
      %3228 = vmatpush.bf16.msra.mxu0 0
      %3229 = vmatpush.bf16.msra.mxu0 0
      %3230 = vmatpush.bf16.msra.mxu0 0
      %3231 = vmatpush.bf16.msra.mxu0 %v3210
      %3232 = vmatpush.bf16.msra.mxu0 %v3209
      %3233 = vmatmul.bf16.gmra.mxu0 %v3214
      %v3234 = vpop.f32.mrf.mxu0
      %v3235 = vadd.f32 %v3199, %v3234
      %v3236 = vpop.f32.mrf.mxu0
      %v3237 = vadd.f32 %v3199, %v3236
      %3238 = vmatmul.bf16.gmra.mxu0 %v3217
      %v3239 = vpop.f32.mrf.mxu0
      %v3240 = vadd.f32 %v3199, %v3239
      %v3241 = vpop.f32.mrf.mxu0
      %v3242 = vadd.f32 %v3199, %v3241
      %3243 = vmatmul.bf16.gmra.mxu0 %v3220
      %v3244 = vpop.f32.mrf.mxu0
      %v3245 = vadd.f32 %v3199, %v3244
      %v3246 = vpop.f32.mrf.mxu0
      %v3247 = vadd.f32 %v3199, %v3246
      %3248 = vmatmul.bf16.gmra.mxu0 %v3223
      %v3249 = vpop.f32.mrf.mxu0
      %v3250 = vadd.f32 %v3199, %v3249
      %v3251 = vpop.f32.mrf.mxu0
      %v3252 = vadd.f32 %v3199, %v3251
      %3253 = vdwg.mxu0
      %v3254 = vmul.f32 %v3235, 0.5
      %v3255 = vmul.f32 %v3237, 0.5
      %v3256 = vmul.f32 %v3240, 0.5
      %v3257 = vmul.f32 %v3242, 0.5
      %v3258 = vmul.f32 %v3245, 0.5
      %v3259 = vmul.f32 %v3247, 0.5
      %v3260 = vmul.f32 %v3250, 0.5
      %v3261 = vmul.f32 %v3252, 0.5
      %v3262 = vmul.f32 %v3235, 0.044715
      %v3263 = vmul.f32 %v3237, 0.044715
      %v3264 = vmul.f32 %v3240, 0.044715
      %v3265 = vmul.f32 %v3242, 0.044715
      %v3266 = vmul.f32 %v3245, 0.044715
      %v3267 = vmul.f32 %v3247, 0.044715
      %v3268 = vmul.f32 %v3250, 0.044715
      %v3269 = vmul.f32 %v3252, 0.044715
      %v3270 = vmul.f32 %v3262, %v3235
      %v3271 = vmul.f32 %v3263, %v3237
      %v3272 = vmul.f32 %v3264, %v3240
      %v3273 = vmul.f32 %v3265, %v3242
      %v3274 = vmul.f32 %v3266, %v3245
      %v3275 = vmul.f32 %v3267, %v3247
      %v3276 = vmul.f32 %v3268, %v3250
      %v3277 = vmul.f32 %v3269, %v3252
      %v3278 = vmul.f32 %v3270, %v3235
      %v3279 = vmul.f32 %v3271, %v3237
      %v3280 = vmul.f32 %v3272, %v3240
      %v3281 = vmul.f32 %v3273, %v3242
      %v3282 = vmul.f32 %v3274, %v3245
      %v3283 = vmul.f32 %v3275, %v3247
      %v3284 = vmul.f32 %v3276, %v3250
      %v3285 = vmul.f32 %v3277, %v3252
      %v3286 = vadd.f32 %v3235, %v3278
      %v3287 = vadd.f32 %v3237, %v3279
      %v3288 = vadd.f32 %v3240, %v3280
      %v3289 = vadd.f32 %v3242, %v3281
      %v3290 = vadd.f32 %v3245, %v3282
      %v3291 = vadd.f32 %v3247, %v3283
      %v3292 = vadd.f32 %v3250, %v3284
      %v3293 = vadd.f32 %v3252, %v3285
      %v3294 = vmul.f32 %v3286, 0.7978846
      %v3295 = vmul.f32 %v3287, 0.7978846
      %v3296 = vmul.f32 %v3288, 0.7978846
      %v3297 = vmul.f32 %v3289, 0.7978846
      %v3298 = vmul.f32 %v3290, 0.7978846
      %v3299 = vmul.f32 %v3291, 0.7978846
      %v3300 = vmul.f32 %v3292, 0.7978846
      %v3301 = vmul.f32 %v3293, 0.7978846
      %v3302 = vtanh.pop %v3294
      %v3303 = vtanh.pop %v3295
      %v3304 = vtanh.pop %v3296
      %v3305 = vtanh.pop %v3297
      %v3306 = vtanh.pop %v3298
      %v3307 = vtanh.pop %v3299
      %v3308 = vtanh.pop %v3300
      %v3309 = vtanh.pop %v3301
      %v3310 = vadd.f32 %v3302, 1.0
      %v3311 = vadd.f32 %v3303, 1.0
      %v3312 = vadd.f32 %v3304, 1.0
      %v3313 = vadd.f32 %v3305, 1.0
      %v3314 = vadd.f32 %v3306, 1.0
      %v3315 = vadd.f32 %v3307, 1.0
      %v3316 = vadd.f32 %v3308, 1.0
      %v3317 = vadd.f32 %v3309, 1.0
      %v3318 = vmul.f32 %v3254, %v3310
      %v3319 = vmul.f32 %v3255, %v3311
      %v3320 = vmul.f32 %v3256, %v3312
      %v3321 = vmul.f32 %v3257, %v3313
      %v3322 = vmul.f32 %v3258, %v3314
      %v3323 = vmul.f32 %v3259, %v3315
      %v3324 = vmul.f32 %v3260, %v3316
      %v3325 = vmul.f32 %v3261, %v3317
      %v3326 = vld [vmem:[%s1002] sm:$0xf]
      %v3327 = vld [vmem:[%s1002 + $0x4] sm:$0xf]
      %v3328 = vld [vmem:[%s1002 + $0x8] sm:$0xf]
      %v3329 = vld [vmem:[%s1002 + $0xc] sm:$0xf]
      %v3330 = vld [vmem:[%s1002 + $0x10] sm:$0xf]
      %v3331 = vld [vmem:[%s1002 + $0x14] sm:$0xf]
      %v3332 = vld [vmem:[%s1002 + $0x18] sm:$0xf]
      %v3333 = vld [vmem:[%s1002 + $0x1c] sm:$0xf]
      %v3334 = vld [vmem:[%s1002 + $0x20] sm:$0xf]
      %v3335 = vld [vmem:[%s1002 + $0x24] sm:$0xf]
      %v3336 = vld [vmem:[%s1002 + $0x28] sm:$0xf]
      %v3337 = vld [vmem:[%s1002 + $0x2c] sm:$0xf]
      %v3338 = vld [vmem:[%s1002 + $0x30] sm:$0xf]
      %v3339 = vld [vmem:[%s1002 + $0x34] sm:$0xf]
      %v3340 = vld [vmem:[%s1002 + $0x38] sm:$0xf]
      %v3341 = vld [vmem:[%s1002 + $0x3c] sm:$0xf]
      %v3342 = vpack.c.bf16 %v3319, %v3318
      %v3343 = vpack.c.bf16 %v3321, %v3320
      %v3344 = vpack.c.bf16 %v3323, %v3322
      %v3345 = vpack.c.bf16 %v3325, %v3324
      %v3346 = vld [vmem:[%s1005] sm:$0x1]
      %v3348 = vperm.slane %v3346, 0
      %v3366 = vunpack.c.l.b16 %v3326
      %v3367 = vunpack.c.l.b16 %v3327
      %v3368 = vunpack.c.l.b16 %v3328
      %v3369 = vunpack.c.l.b16 %v3329
      %v3370 = vunpack.c.l.b16 %v3330
      %v3371 = vunpack.c.l.b16 %v3331
      %v3372 = vunpack.c.l.b16 %v3332
      %v3373 = vunpack.c.l.b16 %v3333
      %v3374 = vunpack.c.l.b16 %v3334
      %v3375 = vunpack.c.l.b16 %v3335
      %v3376 = vunpack.c.l.b16 %v3336
      %v3377 = vunpack.c.l.b16 %v3337
      %v3378 = vunpack.c.l.b16 %v3338
      %v3379 = vunpack.c.l.b16 %v3339
      %v3380 = vunpack.c.l.b16 %v3340
      %v3381 = vunpack.c.l.b16 %v3341
      %v3382 = vpack.c.b16 %v3367, %v3366
      %v3383 = vpack.c.b16 %v3369, %v3368
      %v3384 = vpack.c.b16 %v3371, %v3370
      %v3385 = vpack.c.b16 %v3373, %v3372
      %v3386 = vpack.c.b16 %v3375, %v3374
      %v3387 = vpack.c.b16 %v3377, %v3376
      %v3388 = vpack.c.b16 %v3379, %v3378
      %v3389 = vpack.c.b16 %v3381, %v3380
      %3398 = vmatpush.bf16.msra.mxu0 %v3389
      %3399 = vmatpush.bf16.msra.mxu0 %v3388
      %3400 = vmatpush.bf16.msra.mxu0 %v3387
      %3401 = vmatpush.bf16.msra.mxu0 %v3386
      %3402 = vmatpush.bf16.msra.mxu0 %v3385
      %3403 = vmatpush.bf16.msra.mxu0 %v3384
      %3404 = vmatpush.bf16.msra.mxu0 %v3383
      %3405 = vmatpush.bf16.msra.mxu0 %v3382
      %3406 = vmatmul.bf16.gmra.mxu0 %v3342
      %v3407 = vpop.f32.mrf.mxu0
      %v3408 = vadd.f32 %v3348, %v3407
      %v3409 = vpop.f32.mrf.mxu0
      %v3410 = vadd.f32 %v3348, %v3409
      %3411 = vmatmul.bf16.gmra.mxu0 %v3343
      %v3412 = vpop.f32.mrf.mxu0
      %v3413 = vadd.f32 %v3348, %v3412
      %v3414 = vpop.f32.mrf.mxu0
      %v3415 = vadd.f32 %v3348, %v3414
      %3416 = vmatmul.bf16.gmra.mxu0 %v3344
      %v3417 = vpop.f32.mrf.mxu0
      %v3418 = vadd.f32 %v3348, %v3417
      %v3419 = vpop.f32.mrf.mxu0
      %v3420 = vadd.f32 %v3348, %v3419
      %3421 = vmatmul.bf16.gmra.mxu0 %v3345
      %v3422 = vpop.f32.mrf.mxu0
      %v3423 = vadd.f32 %v3348, %v3422
      %v3424 = vpop.f32.mrf.mxu0
      %v3425 = vadd.f32 %v3348, %v3424
      %3426 = vdwg.mxu0
      %v3427 = vadd.f32 %v2981, %v3408
      %v3428 = vadd.f32 %v2982, %v3410
      %v3429 = vadd.f32 %v2983, %v3413
      %v3430 = vadd.f32 %v2984, %v3415
      %v3431 = vadd.f32 %v2985, %v3418
      %v3432 = vadd.f32 %v2986, %v3420
      %v3433 = vadd.f32 %v2987, %v3423
      %v3434 = vadd.f32 %v2988, %v3425
      %3435 = vst.msk [vmem:[%s1010] sm:$0xff] %vm1087, %v3427
      %3436 = vst.msk [vmem:[%s1010 + $0x8] sm:$0xff] %vm1087, %v3428
      %3437 = vst.msk [vmem:[%s1010 + $0x10] sm:$0xff] %vm1087, %v3429
      %3438 = vst.msk [vmem:[%s1010 + $0x18] sm:$0xff] %vm1087, %v3430
      %3439 = vst.msk [vmem:[%s1010 + $0x20] sm:$0xff] %vm1087, %v3431
      %3440 = vst.msk [vmem:[%s1010 + $0x28] sm:$0xff] %vm1087, %v3432
      %3441 = vst.msk [vmem:[%s1010 + $0x30] sm:$0xff] %vm1087, %v3433
      %3442 = vst.msk [vmem:[%s1010 + $0x38] sm:$0xff] %vm1087, %v3434
      %p3443 = scmp.lt.s32.totalorder %s38, 1
      %s3444 = scalar_select %p3443, %s38, 1
      %s3445 = smul.addr %s3444, 8
      %s3446 = smul.addr %s3445, 8
      %s3447 = scalar_lea.vmem %s23, %s3446
      // Predicated region
      $region117: #{mhsa_stage_adapt.1} parent=111 // pred_check
        %p3448 = pneg %p639
      $region118: #{mhsa_stage_adapt.1} parent=111 // pred_check_branch
        %3450 = sbr.rel (%p3448) target = $region120
      $region119: #{mhsa_stage_adapt.1} parent=111 // pred_region
        _
      $region120: #{mhsa_stage_adapt.1} parent=111 // pred_fallthru
        _
    $region112: #{mhsa_stage_adapt.1} parent=5 // pred_fallthru
      _
    %p3451 = scmp.le.s32.totalorder 2, %s29
    // Predicated region
    $region121: #{mhsa_stage_adapt.1} parent=5 // pred_check
      %p3452 = pneg %p3451
    $region122: #{mhsa_stage_adapt.1} parent=5 // pred_check_branch
      %3454 = sbr.rel (%p3452) target = $region124
    $region123: #{mhsa_stage_adapt.1} parent=5 // pred_region
      %s3455 = ssub.s32 %s29, 2
      // Predicated region
      $region125: #{mhsa_stage_adapt.1} parent=123 // pred_check
        %p3456 = pneg %p645
      $region126: #{mhsa_stage_adapt.1} parent=123 // pred_check_branch
        %3458 = sbr.rel (%p3456) target = $region128
      $region127: #{mhsa_stage_adapt.1} parent=123 // pred_region
        %p3459 = scmp.lt.s32.totalorder %s40, 1
        %s3460 = scalar_select %p3459, %s40, 1
        %s3461 = smul.addr %s3460, 8
        %s3462 = smul.addr %s3461, 8
        %s3463 = scalar_lea.vmem %s23, %s3462
      $region128: #{mhsa_stage_adapt.1} parent=123 // pred_fallthru
        _
    $region124: #{mhsa_stage_adapt.1} parent=5 // pred_fallthru
      _
  $region6: #{mhsa_stage_adapt.1} parent=0 // loop_footer
    %s33 = sadd.s32 1, %s29
  $region7: #{mhsa_stage_adapt.1} parent=0 // loop_footer_branch
    %28 = sbr.rel target = $region3
  $region8: #{mhsa_stage_adapt.1} parent=0 // loop_exit
    _

</llo_original>
